<compile_context>
chip_gen: v7x
topology: tpu7x:2x2x1
jax: 0.10.0
libtpu: 0.0.40
codegen_flags: <defaults>
</compile_context>

<pallas_src>
import jax
import jax.numpy as jnp
from jax.experimental import pallas as pl
from jax.experimental.pallas import tpu as pltpu

IN_DIM = 28 * 28   # 784
HID = 512
OUT_DIM = 10
OUT_PAD = 128      # lane-dense padded output width (multiple of 128)
TM_MAX = 1024      # max batch-tile rows


def _round_up(n, m):
    return ((n + m - 1) // m) * m


def _mlp_kernel(x_ref, w1_ref, w2_ref, w3_ref, w4_ref, w5_ref, b_ref, o_ref):
    # x: (TM, 784) f32 or bf16 ; weights: bf16 (in, out) ;
    # b: (8, 512) bf16 packed biases (rows 0..3 = b1..b4, row 4 = b5 zero-padded,
    # rows 5..7 zero).
    b = b_ref[...]
    h = x_ref[...].astype(jnp.bfloat16)
    for idx, w_ref in enumerate((w1_ref, w2_ref, w3_ref, w4_ref)):
        acc = jnp.dot(h, w_ref[...], preferred_element_type=jnp.float32)
        # bf16 epilogue: bias-add + ReLU touch half the VALU elements of an f32
        # epilogue; the next dot consumes bf16 directly (no extra cast).
        h = jnp.maximum(acc.astype(jnp.bfloat16) + b[idx:idx + 1, :], 0.0)
    acc = jnp.dot(h, w5_ref[...], preferred_element_type=jnp.float32)
    o_ref[...] = acc.astype(jnp.bfloat16) + b[4:5, :OUT_PAD]


def prepare_params(params):
    """f32 (in, out) weights + (out,) biases -> bf16 weights (w5 padded to 128 cols)
    and a single packed (8, 512) bf16 bias array."""
    (w1, b1), (w2, b2), (w3, b3), (w4, b4), (w5, b5) = params
    w5p = jnp.zeros((HID, OUT_PAD), jnp.float32).at[:, :OUT_DIM].set(w5)
    ws = tuple(w.astype(jnp.bfloat16) for w in (w1, w2, w3, w4, w5p))
    b_all = jnp.zeros((8, HID), jnp.float32)
    b_all = b_all.at[0, :].set(b1.reshape(-1))
    b_all = b_all.at[1, :].set(b2.reshape(-1))
    b_all = b_all.at[2, :].set(b3.reshape(-1))
    b_all = b_all.at[3, :].set(b4.reshape(-1))
    b_all = b_all.at[4, :OUT_DIM].set(b5.reshape(-1))
    return ws, b_all.astype(jnp.bfloat16)


def neural_network_forward(x, params):
    """x: (B, 1, 28, 28) float32 (NCHW). Returns logits (B, 10) float32."""
    (w1, w2, w3, w4, w5p), b_all = prepare_params(params)

    B = x.shape[0]
    x_flat = x.reshape(B, -1).astype(jnp.float32)   # nn.Flatten -> (B, 784)

    # Batch tile: large tiles amortize the ~0.35us/grid-step overhead; once the
    # padded batch reaches 256 rows, force >= 2 grid steps so both v7x TensorCores
    # get work (each step still >= 128 MXU rows).
    Bp8 = _round_up(B, 8)
    if Bp8 >= 256:
        tm = min(TM_MAX, _round_up(pl.cdiv(Bp8, 2), 16))
    else:
        tm = Bp8
    Bp = _round_up(Bp8, tm)

    if Bp != B:
        # Pad and cast in one fused XLA pass: stream x as bf16 (halves x DMA).
        # Bit-identical result: the kernel casts x to bf16 before the dot anyway.
        x_in = jnp.pad(x_flat.astype(jnp.bfloat16), ((0, Bp - B), (0, 0)))
    else:
        # No pad pass to ride along with -> read f32 x directly; a standalone
        # f32->bf16 pass would cost more total HBM traffic than it saves.
        x_in = x_flat

    grid = (Bp // tm,)

    def full_spec(arr):
        # whole-array block, same tile every grid step -> fetched once, VMEM-resident
        return pl.BlockSpec(arr.shape, lambda i, _n=arr.ndim: (0,) * _n)

    in_specs = [pl.BlockSpec((tm, IN_DIM), lambda i: (i, 0))]          # x: batch-tiled
    in_specs += [full_spec(w) for w in (w1, w2, w3, w4, w5p)]          # weights: resident
    in_specs += [full_spec(b_all)]                                     # packed biases
    out_specs = pl.BlockSpec((tm, OUT_PAD), lambda i: (i, 0))

    flops = 2 * Bp * (IN_DIM * HID + 3 * HID * HID + HID * OUT_PAD)
    bytes_accessed = (int(x_in.size) * x_in.dtype.itemsize
                      + sum(int(w.size) * 2 for w in (w1, w2, w3, w4, w5p))
                      + int(b_all.size) * 2
                      + Bp * OUT_PAD * 2)

    out = pl.pallas_call(
        _mlp_kernel,
        out_shape=jax.ShapeDtypeStruct((Bp, OUT_PAD), jnp.bfloat16),
        grid=grid,
        in_specs=in_specs,
        out_specs=out_specs,
        compiler_params=pltpu.CompilerParams(
            # TODO(synk): switch to pltpu.CORE_PARALLEL on v7x for guaranteed 2-TC
            # sharding; plain "parallel" kept here for v5e/v6e portability.
            dimension_semantics=("parallel",),
            vmem_limit_bytes=48 << 20),
        cost_estimate=pl.CostEstimate(
            flops=flops, transcendentals=0, bytes_accessed=bytes_accessed),
    )(x_in, w1, w2, w3, w4, w5p, b_all)

    # TODO(synk): for the tiny-batch latency regime (B <~ 64) the call is bound by the
    # one-time ~2.4 MiB weight DMA; int8 (v5e/v6e) / fp8 (v7x) weights or cross-call
    # VMEM residency (P10) would be the next lever, not in-kernel tiling.
    return out[:B, :OUT_DIM].astype(jnp.float32)


def init_params(key):
    """Deterministic init mimicking torch.nn.Linear defaults (uniform +/- 1/sqrt(fan_in)).
    Weights stored transposed relative to torch, i.e. (in_features, out_features)."""
    dims = [(IN_DIM, HID), (HID, HID), (HID, HID), (HID, HID), (HID, OUT_DIM)]
    params = []
    for (fan_in, fan_out) in dims:
        key, kw, kb = jax.random.split(key, 3)
        bound = 1.0 / jnp.sqrt(float(fan_in))
        w = jax.random.uniform(kw, (fan_in, fan_out), jnp.float32, -bound, bound)
        b = jax.random.uniform(kb, (fan_out,), jnp.float32, -bound, bound)
        params.append((w, b))
    return params


if __name__ == "__main__":
    key = jax.random.PRNGKey(0)
    key, kx = jax.random.split(key)
    x = jax.random.normal(kx, (8, 1, 28, 28), jnp.float32)   # small MNIST-like batch
    params = init_params(key)

    logits = neural_network_forward(x, params)
    logits = jax.block_until_ready(logits)

    # Reference with the same precision contract (bf16 dot inputs/weights, f32 MXU
    # accumulation, bf16 bias-add/ReLU epilogue, bf16 logits upcast to f32).
    def ref(x, params):
        h = x.reshape(x.shape[0], -1).astype(jnp.bfloat16)
        for i, (w, b) in enumerate(params):
            acc = jnp.dot(h, w.astype(jnp.bfloat16),
                          preferred_element_type=jnp.float32)
            h = acc.astype(jnp.bfloat16) + b.astype(jnp.bfloat16).reshape(1, -1)
            if i < len(params) - 1:
                h = jnp.maximum(h, 0.0)
        return h.astype(jnp.float32)

    expected = ref(x, params)
    assert logits.shape == (8, 10)
    assert jnp.allclose(logits, expected, atol=2e-2, rtol=2e-2), "mismatch vs reference"
    print("KERNEL_OK")
</pallas_src>

<mosaic_0001>
module attributes {stable_mosaic.version = 11 : i64} {
  func.func @_mlp_kernel(%arg0: i32, %arg1: memref<8x784xf32, #tpu.memory_space<vmem>>, %arg2: memref<784x512xbf16, #tpu.memory_space<vmem>>, %arg3: memref<512x512xbf16, #tpu.memory_space<vmem>>, %arg4: memref<512x512xbf16, #tpu.memory_space<vmem>>, %arg5: memref<512x512xbf16, #tpu.memory_space<vmem>>, %arg6: memref<512x128xbf16, #tpu.memory_space<vmem>>, %arg7: memref<8x512xbf16, #tpu.memory_space<vmem>>, %arg8: memref<8x128xbf16, #tpu.memory_space<vmem>>) attributes {dimension_semantics = [#tpu.dimension_semantics<parallel>], iteration_bounds = array<i64: 1>, scalar_prefetch = 0 : i64, scratch_operands = 0 : i64, tpu.core_type = #tpu.core_type<tc>, window_params = [{transform_indices = @transform_0, window_bounds = array<i64: 8, 784>}, {pipeline_mode = #tpu.pipeline_mode<synchronous>, transform_indices = @transform_1, window_bounds = array<i64: 784, 512>}, {pipeline_mode = #tpu.pipeline_mode<synchronous>, transform_indices = @transform_2, window_bounds = array<i64: 512, 512>}, {pipeline_mode = #tpu.pipeline_mode<synchronous>, transform_indices = @transform_3, window_bounds = array<i64: 512, 512>}, {pipeline_mode = #tpu.pipeline_mode<synchronous>, transform_indices = @transform_4, window_bounds = array<i64: 512, 512>}, {pipeline_mode = #tpu.pipeline_mode<synchronous>, transform_indices = @transform_5, window_bounds = array<i64: 512, 128>}, {pipeline_mode = #tpu.pipeline_mode<synchronous>, transform_indices = @transform_6, window_bounds = array<i64: 8, 512>}, {transform_indices = @transform_7, window_bounds = array<i64: 8, 128>}]} {
    %c0 = arith.constant 0 : index
    %c0_0 = arith.constant 0 : index
    %0 = vector.load %arg7[%c0, %c0_0] : memref<8x512xbf16, #tpu.memory_space<vmem>>, vector<8x512xbf16>
    %c0_1 = arith.constant 0 : index
    %c0_2 = arith.constant 0 : index
    %1 = vector.load %arg1[%c0_1, %c0_2] : memref<8x784xf32, #tpu.memory_space<vmem>>, vector<8x784xf32>
    %2 = arith.truncf %1 : vector<8x784xf32> to vector<8x784xbf16>
    %c0_3 = arith.constant 0 : index
    %c0_4 = arith.constant 0 : index
    %3 = vector.load %arg2[%c0_3, %c0_4] : memref<784x512xbf16, #tpu.memory_space<vmem>>, vector<784x512xbf16>
    %cst = arith.constant dense<0.000000e+00> : vector<8x512xf32>
    %4 = tpu.matmul %2, %3, %cst {dimension_numbers = #tpu.dot_dimension_numbers<[1], [0], [0], [1], [0, 0, 1, 1], [], []>} : vector<8x784xbf16>, vector<784x512xbf16>, vector<8x512xf32> -> vector<8x512xf32>
    %5 = arith.truncf %4 : vector<8x512xf32> to vector<8x512xbf16>
    %6 = vector.extract_strided_slice %0 {offsets = [0, 0], sizes = [1, 512], strides = [1, 1]} : vector<8x512xbf16> to vector<1x512xbf16>
    %7 = vector.broadcast %6 : vector<1x512xbf16> to vector<8x512xbf16>
    %8 = arith.addf %5, %7 : vector<8x512xbf16>
    %cst_5 = arith.constant 0.000000e+00 : bf16
    %9 = vector.broadcast %cst_5 : bf16 to vector<8x512xbf16>
    %10 = arith.maximumf %8, %9 : vector<8x512xbf16>
    %c0_6 = arith.constant 0 : index
    %c0_7 = arith.constant 0 : index
    %11 = vector.load %arg3[%c0_6, %c0_7] : memref<512x512xbf16, #tpu.memory_space<vmem>>, vector<512x512xbf16>
    %cst_8 = arith.constant dense<0.000000e+00> : vector<8x512xf32>
    %12 = tpu.matmul %10, %11, %cst_8 {dimension_numbers = #tpu.dot_dimension_numbers<[1], [0], [0], [1], [0, 0, 1, 1], [], []>} : vector<8x512xbf16>, vector<512x512xbf16>, vector<8x512xf32> -> vector<8x512xf32>
    %13 = arith.truncf %12 : vector<8x512xf32> to vector<8x512xbf16>
    %14 = vector.extract_strided_slice %0 {offsets = [1, 0], sizes = [1, 512], strides = [1, 1]} : vector<8x512xbf16> to vector<1x512xbf16>
    %15 = vector.broadcast %14 : vector<1x512xbf16> to vector<8x512xbf16>
    %16 = arith.addf %13, %15 : vector<8x512xbf16>
    %cst_9 = arith.constant 0.000000e+00 : bf16
    %17 = vector.broadcast %cst_9 : bf16 to vector<8x512xbf16>
    %18 = arith.maximumf %16, %17 : vector<8x512xbf16>
    %c0_10 = arith.constant 0 : index
    %c0_11 = arith.constant 0 : index
    %19 = vector.load %arg4[%c0_10, %c0_11] : memref<512x512xbf16, #tpu.memory_space<vmem>>, vector<512x512xbf16>
    %cst_12 = arith.constant dense<0.000000e+00> : vector<8x512xf32>
    %20 = tpu.matmul %18, %19, %cst_12 {dimension_numbers = #tpu.dot_dimension_numbers<[1], [0], [0], [1], [0, 0, 1, 1], [], []>} : vector<8x512xbf16>, vector<512x512xbf16>, vector<8x512xf32> -> vector<8x512xf32>
    %21 = arith.truncf %20 : vector<8x512xf32> to vector<8x512xbf16>
    %22 = vector.extract_strided_slice %0 {offsets = [2, 0], sizes = [1, 512], strides = [1, 1]} : vector<8x512xbf16> to vector<1x512xbf16>
    %23 = vector.broadcast %22 : vector<1x512xbf16> to vector<8x512xbf16>
    %24 = arith.addf %21, %23 : vector<8x512xbf16>
    %cst_13 = arith.constant 0.000000e+00 : bf16
    %25 = vector.broadcast %cst_13 : bf16 to vector<8x512xbf16>
    %26 = arith.maximumf %24, %25 : vector<8x512xbf16>
    %c0_14 = arith.constant 0 : index
    %c0_15 = arith.constant 0 : index
    %27 = vector.load %arg5[%c0_14, %c0_15] : memref<512x512xbf16, #tpu.memory_space<vmem>>, vector<512x512xbf16>
    %cst_16 = arith.constant dense<0.000000e+00> : vector<8x512xf32>
    %28 = tpu.matmul %26, %27, %cst_16 {dimension_numbers = #tpu.dot_dimension_numbers<[1], [0], [0], [1], [0, 0, 1, 1], [], []>} : vector<8x512xbf16>, vector<512x512xbf16>, vector<8x512xf32> -> vector<8x512xf32>
    %29 = arith.truncf %28 : vector<8x512xf32> to vector<8x512xbf16>
    %30 = vector.extract_strided_slice %0 {offsets = [3, 0], sizes = [1, 512], strides = [1, 1]} : vector<8x512xbf16> to vector<1x512xbf16>
    %31 = vector.broadcast %30 : vector<1x512xbf16> to vector<8x512xbf16>
    %32 = arith.addf %29, %31 : vector<8x512xbf16>
    %cst_17 = arith.constant 0.000000e+00 : bf16
    %33 = vector.broadcast %cst_17 : bf16 to vector<8x512xbf16>
    %34 = arith.maximumf %32, %33 : vector<8x512xbf16>
    %c0_18 = arith.constant 0 : index
    %c0_19 = arith.constant 0 : index
    %35 = vector.load %arg6[%c0_18, %c0_19] : memref<512x128xbf16, #tpu.memory_space<vmem>>, vector<512x128xbf16>
    %cst_20 = arith.constant dense<0.000000e+00> : vector<8x128xf32>
    %36 = tpu.matmul %34, %35, %cst_20 {dimension_numbers = #tpu.dot_dimension_numbers<[1], [0], [0], [1], [0, 0, 1, 1], [], []>} : vector<8x512xbf16>, vector<512x128xbf16>, vector<8x128xf32> -> vector<8x128xf32>
    %37 = arith.truncf %36 : vector<8x128xf32> to vector<8x128xbf16>
    %38 = vector.extract_strided_slice %0 {offsets = [4, 0], sizes = [1, 128], strides = [1, 1]} : vector<8x512xbf16> to vector<1x128xbf16>
    %39 = vector.broadcast %38 : vector<1x128xbf16> to vector<8x128xbf16>
    %40 = arith.addf %37, %39 : vector<8x128xbf16>
    %c0_21 = arith.constant 0 : index
    %c0_22 = arith.constant 0 : index
    %41 = vector.load %arg8[%c0_21, %c0_22] : memref<8x128xbf16, #tpu.memory_space<vmem>>, vector<8x128xbf16>
    tpu.vector_store %arg8[%c0_21, %c0_22], %40 {strides = array<i32>} : memref<8x128xbf16, #tpu.memory_space<vmem>>, vector<8x128xbf16>,
    return
  }
  func.func @transform_0(%arg0: i32) -> (i32, i32) {
    %c0_i32 = arith.constant 0 : i32
    %c0_i32_0 = arith.constant 0 : i32
    return %arg0, %c0_i32 : i32, i32
  }
  func.func @transform_1(%arg0: i32) -> (i32, i32) {
    %c0_i32 = arith.constant 0 : i32
    %c0_i32_0 = arith.constant 0 : i32
    %c0_i32_1 = arith.constant 0 : i32
    return %c0_i32, %c0_i32_0 : i32, i32
  }
  func.func @transform_2(%arg0: i32) -> (i32, i32) {
    %c0_i32 = arith.constant 0 : i32
    %c0_i32_0 = arith.constant 0 : i32
    %c0_i32_1 = arith.constant 0 : i32
    return %c0_i32, %c0_i32_0 : i32, i32
  }
  func.func @transform_3(%arg0: i32) -> (i32, i32) {
    %c0_i32 = arith.constant 0 : i32
    %c0_i32_0 = arith.constant 0 : i32
    %c0_i32_1 = arith.constant 0 : i32
    return %c0_i32, %c0_i32_0 : i32, i32
  }
  func.func @transform_4(%arg0: i32) -> (i32, i32) {
    %c0_i32 = arith.constant 0 : i32
    %c0_i32_0 = arith.constant 0 : i32
    %c0_i32_1 = arith.constant 0 : i32
    return %c0_i32, %c0_i32_0 : i32, i32
  }
  func.func @transform_5(%arg0: i32) -> (i32, i32) {
    %c0_i32 = arith.constant 0 : i32
    %c0_i32_0 = arith.constant 0 : i32
    %c0_i32_1 = arith.constant 0 : i32
    return %c0_i32, %c0_i32_0 : i32, i32
  }
  func.func @transform_6(%arg0: i32) -> (i32, i32) {
    %c0_i32 = arith.constant 0 : i32
    %c0_i32_0 = arith.constant 0 : i32
    %c0_i32_1 = arith.constant 0 : i32
    return %c0_i32, %c0_i32_0 : i32, i32
  }
  func.func @transform_7(%arg0: i32) -> (i32, i32) {
    %c0_i32 = arith.constant 0 : i32
    %c0_i32_0 = arith.constant 0 : i32
    return %arg0, %c0_i32 : i32, i32
  }
}

</mosaic_0001>

<llo_original>
// kernel: tpu_custom_call.1
$region0: #{tpu_custom_call.1}
  #allocation0 [shape = 'u32[]', space=smem, size = 0x4, offset = 0x4, fixed_abs, tag = 'smem constant byte address 0x4 - core index']
  #allocation1 [shape = 'u32[144,128]{1,0:T(1,128)}', space=vmem, size = 0x12000, scoped, tag = 'internal scratch']
  %s0 = inlined_call_operand.hbm [shape: f32[8,784], index: 0, kind: input, shape index: {}]
  %s1 = inlined_call_operand.hbm [shape: bf16[784,512], index: 1, kind: input, shape index: {}]
  %s2 = inlined_call_operand.hbm [shape: bf16[512,512], index: 2, kind: input, shape index: {}]
  %s3 = inlined_call_operand.hbm [shape: bf16[512,512], index: 3, kind: input, shape index: {}]
  %s4 = inlined_call_operand.hbm [shape: bf16[512,512], index: 4, kind: input, shape index: {}]
  %s5 = inlined_call_operand.hbm [shape: bf16[512,128], index: 5, kind: input, shape index: {}]
  %s6 = inlined_call_operand.vmem [shape: bf16[8,512], index: 6, kind: input, shape index: {}]
  %s7 = inlined_call_operand.hbm [shape: bf16[8,128], index: 7, kind: output, shape index: {}]
  %s8 = sld [smem:[#allocation0]]
  $region62: #{tpu_custom_call.1} parent=0
    _
  %s10 = ssub.s32 1, %s8
  %s11 = scalar_select 0, %s10, %s8
  $region1: #{tpu_custom_call.1} parent=0
    #allocation2 [shape = 'u8[28672]{0}', space=vmem, size = 0x7000, scoped, tag = 'input window, operand 0, single buffered']
    #allocation3 [shape = 's32[1]{0}', space=sflag, size = 0x4, scoped, tag = 'scoped memory for tpu_custom_call.1']
    #allocation4 [shape = 's32[1]{0}', space=sflag, size = 0x4, scoped, tag = 'scoped memory for tpu_custom_call.1']
    #allocation5 [shape = 'u8[802816]{0}', space=vmem, size = 0xc4000, scoped, tag = 'input window, operand 1, single buffered']
    #allocation6 [shape = 's32[1]{0}', space=sflag, size = 0x4, scoped, tag = 'scoped memory for tpu_custom_call.1']
    #allocation7 [shape = 'u8[524288]{0}', space=vmem, size = 0x80000, scoped, tag = 'input window, operand 2, single buffered']
    #allocation8 [shape = 'u8[524288]{0}', space=vmem, size = 0x80000, scoped, tag = 'input window, operand 3, single buffered']
    #allocation9 [shape = 's32[1]{0}', space=sflag, size = 0x4, scoped, tag = 'scoped memory for tpu_custom_call.1']
    #allocation10 [shape = 'u8[524288]{0}', space=vmem, size = 0x80000, scoped, tag = 'input window, operand 4, single buffered']
    #allocation11 [shape = 'u8[131072]{0}', space=vmem, size = 0x20000, scoped, tag = 'input window, operand 5, single buffered']
    #allocation12 [shape = 's32[1]{0}', space=sflag, size = 0x4, scoped, tag = 'scoped memory for tpu_custom_call.1']
    #allocation13 [shape = 'u8[2048]{0}', space=vmem, size = 0x800, scoped, tag = 'output window, operand 0, single buffered']
    %12 = vsyncpa [#allocation3], 0
    %13 = vsyncpa [#allocation6], 0
    %14 = vsyncpa [#allocation9], 0
    %15 = vsyncpa [#allocation12], 0
    %16 = vsyncpa [#allocation4], 0
    // Predicated region
    $region2: #{tpu_custom_call.1} parent=1 // pred_check
      _
    $region3: #{tpu_custom_call.1} parent=1 // pred_check_branch
      %18 = sbr.rel (0) target = $region5
    $region4: #{tpu_custom_call.1} parent=1 // pred_region
      %s20 = ssub.s32 896, 896
      %21 = vsyncadd [#allocation3], %s20
      %s23 = sshll.u32 [#allocation2], 4
      %s24 = int_to_ptr.vmem [resolvable:$true] %s23
      %26 = dma.hbm_to_vmem [thread:$0]  %s0, 896, %s24, [#allocation3]
    $region5: #{tpu_custom_call.1} parent=1 // pred_fallthru
      _
    // Predicated region
    $region6: #{tpu_custom_call.1} parent=1 // pred_check
      _
    $region7: #{tpu_custom_call.1} parent=1 // pred_check_branch
      %28 = sbr.rel (0) target = $region9
    $region8: #{tpu_custom_call.1} parent=1 // pred_region
      %s30 = ssub.s32 25088, 25088
      %31 = vsyncadd [#allocation6], %s30
      %s32 = sshll.u32 [#allocation5], 4
      %s33 = int_to_ptr.vmem [resolvable:$true] %s32
      %38 = dma.hbm_to_vmem [thread:$0]  %s1, 25088, %s33, [#allocation6], 256, 256, 16
    $region9: #{tpu_custom_call.1} parent=1 // pred_fallthru
      _
    // Predicated region
    $region10: #{tpu_custom_call.1} parent=1 // pred_check
      _
    $region11: #{tpu_custom_call.1} parent=1 // pred_check_branch
      %40 = sbr.rel (0) target = $region13
    $region12: #{tpu_custom_call.1} parent=1 // pred_region
      %s42 = ssub.s32 16384, 16384
      %43 = vsyncadd [#allocation6], %s42
      %s44 = sshll.u32 [#allocation7], 4
      %s45 = int_to_ptr.vmem [resolvable:$true] %s44
      %50 = dma.hbm_to_vmem [thread:$0]  %s2, 16384, %s45, [#allocation6], 256, 256, 16
    $region13: #{tpu_custom_call.1} parent=1 // pred_fallthru
      _
    // Predicated region
    $region14: #{tpu_custom_call.1} parent=1 // pred_check
      _
    $region15: #{tpu_custom_call.1} parent=1 // pred_check_branch
      %52 = sbr.rel (0) target = $region17
    $region16: #{tpu_custom_call.1} parent=1 // pred_region
      %s54 = ssub.s32 16384, 16384
      %55 = vsyncadd [#allocation9], %s54
      %s56 = sshll.u32 [#allocation8], 4
      %s57 = int_to_ptr.vmem [resolvable:$true] %s56
      %62 = dma.hbm_to_vmem [thread:$0]  %s3, 16384, %s57, [#allocation9], 256, 256, 16
    $region17: #{tpu_custom_call.1} parent=1 // pred_fallthru
      _
    // Predicated region
    $region18: #{tpu_custom_call.1} parent=1 // pred_check
      _
    $region19: #{tpu_custom_call.1} parent=1 // pred_check_branch
      %64 = sbr.rel (0) target = $region21
    $region20: #{tpu_custom_call.1} parent=1 // pred_region
      %s66 = ssub.s32 16384, 16384
      %67 = vsyncadd [#allocation9], %s66
      %s68 = sshll.u32 [#allocation10], 4
      %s69 = int_to_ptr.vmem [resolvable:$true] %s68
      %74 = dma.hbm_to_vmem [thread:$0]  %s4, 16384, %s69, [#allocation9], 256, 256, 16
    $region21: #{tpu_custom_call.1} parent=1 // pred_fallthru
      _
    // Predicated region
    $region22: #{tpu_custom_call.1} parent=1 // pred_check
      _
    $region23: #{tpu_custom_call.1} parent=1 // pred_check_branch
      %76 = sbr.rel (0) target = $region25
    $region24: #{tpu_custom_call.1} parent=1 // pred_region
      %s78 = ssub.s32 4096, 4096
      %79 = vsyncadd [#allocation12], %s78
      %s80 = sshll.u32 [#allocation11], 4
      %s81 = int_to_ptr.vmem [resolvable:$true] %s80
      %86 = dma.hbm_to_vmem [thread:$0]  %s5, 4096, %s81, [#allocation12], 64, 64, 4
    $region25: #{tpu_custom_call.1} parent=1 // pred_fallthru
      _
    // Predicated region
    $region26: #{tpu_custom_call.1} parent=1 // pred_check
      _
    $region27: #{tpu_custom_call.1} parent=1 // pred_check_branch
      %88 = sbr.rel (0) target = $region29
    $region28: #{tpu_custom_call.1} parent=1 // pred_region
      _
    $region29: #{tpu_custom_call.1} parent=1 // pred_fallthru
      _
    // Predicated region
    $region30: #{tpu_custom_call.1} parent=1 // pred_check
      _
    $region31: #{tpu_custom_call.1} parent=1 // pred_check_branch
      %90 = sbr.rel (0) target = $region33
    $region32: #{tpu_custom_call.1} parent=1 // pred_region
      %91 = dma.done [#allocation3], 896
    $region33: #{tpu_custom_call.1} parent=1 // pred_fallthru
      _
    // Predicated region
    $region34: #{tpu_custom_call.1} parent=1 // pred_check
      _
    $region35: #{tpu_custom_call.1} parent=1 // pred_check_branch
      %93 = sbr.rel (0) target = $region37
    $region36: #{tpu_custom_call.1} parent=1 // pred_region
      %94 = dma.done [#allocation6], 25088
    $region37: #{tpu_custom_call.1} parent=1 // pred_fallthru
      _
    // Predicated region
    $region38: #{tpu_custom_call.1} parent=1 // pred_check
      _
    $region39: #{tpu_custom_call.1} parent=1 // pred_check_branch
      %96 = sbr.rel (0) target = $region41
    $region40: #{tpu_custom_call.1} parent=1 // pred_region
      %97 = dma.done [#allocation6], 16384
    $region41: #{tpu_custom_call.1} parent=1 // pred_fallthru
      _
    // Predicated region
    $region42: #{tpu_custom_call.1} parent=1 // pred_check
      _
    $region43: #{tpu_custom_call.1} parent=1 // pred_check_branch
      %99 = sbr.rel (0) target = $region45
    $region44: #{tpu_custom_call.1} parent=1 // pred_region
      %100 = dma.done [#allocation9], 16384
    $region45: #{tpu_custom_call.1} parent=1 // pred_fallthru
      _
    // Predicated region
    $region46: #{tpu_custom_call.1} parent=1 // pred_check
      _
    $region47: #{tpu_custom_call.1} parent=1 // pred_check_branch
      %102 = sbr.rel (0) target = $region49
    $region48: #{tpu_custom_call.1} parent=1 // pred_region
      %103 = dma.done [#allocation9], 16384
    $region49: #{tpu_custom_call.1} parent=1 // pred_fallthru
      _
    // Predicated region
    $region50: #{tpu_custom_call.1} parent=1 // pred_check
      _
    $region51: #{tpu_custom_call.1} parent=1 // pred_check_branch
      %105 = sbr.rel (0) target = $region53
    $region52: #{tpu_custom_call.1} parent=1 // pred_region
      %106 = dma.done [#allocation12], 4096
    $region53: #{tpu_custom_call.1} parent=1 // pred_fallthru
      _
    %v108 = vld [vmem:[%s6] sm:$0xff]
    %v109 = vld [vmem:[%s6 + $0x8] sm:$0xff]
    %v110 = vld [vmem:[#allocation2] sm:$0xff]
    %v111 = vld [vmem:[#allocation2 + $0x8] sm:$0xff]
    %v112 = vld [vmem:[#allocation2 + $0x10] sm:$0xff]
    %v113 = vld [vmem:[#allocation2 + $0x18] sm:$0xff]
    %v114 = vld [vmem:[#allocation2 + $0x20] sm:$0xff]
    %v115 = vld [vmem:[#allocation2 + $0x28] sm:$0xff]
    %v116 = vld [vmem:[#allocation2 + $0x30] sm:$0xff]
    %v117 = vpack.c.bf16 %v110, %v110
    %v118 = vpack.c.bf16 %v111, %v111
    %v119 = vpack.c.bf16 %v112, %v112
    %v120 = vpack.c.bf16 %v113, %v113
    %v121 = vpack.c.bf16 %v114, %v114
    %v122 = vpack.c.bf16 %v115, %v115
    %v123 = vpack.c.bf16 %v116, %v116
    %v124 = vld [vmem:[#allocation5] sm:$0xff]
    %v125 = vld [vmem:[#allocation5 + $0x8] sm:$0xff]
    %v126 = vld [vmem:[#allocation5 + $0x10] sm:$0xff]
    %v127 = vld [vmem:[#allocation5 + $0x18] sm:$0xff]
    %v128 = vld [vmem:[#allocation5 + $0x20] sm:$0xff]
    %v129 = vld [vmem:[#allocation5 + $0x28] sm:$0xff]
    %v130 = vld [vmem:[#allocation5 + $0x30] sm:$0xff]
    %v131 = vld [vmem:[#allocation5 + $0x38] sm:$0xff]
    %v132 = vld [vmem:[#allocation5 + $0x40] sm:$0xff]
    %v133 = vld [vmem:[#allocation5 + $0x48] sm:$0xff]
    %v134 = vld [vmem:[#allocation5 + $0x50] sm:$0xff]
    %v135 = vld [vmem:[#allocation5 + $0x58] sm:$0xff]
    %v136 = vld [vmem:[#allocation5 + $0x60] sm:$0xff]
    %v137 = vld [vmem:[#allocation5 + $0x68] sm:$0xff]
    %v138 = vld [vmem:[#allocation5 + $0x70] sm:$0xff]
    %v139 = vld [vmem:[#allocation5 + $0x78] sm:$0xff]
    %v140 = vld [vmem:[#allocation5 + $0x80] sm:$0xff]
    %v141 = vld [vmem:[#allocation5 + $0x88] sm:$0xff]
    %v142 = vld [vmem:[#allocation5 + $0x90] sm:$0xff]
    %v143 = vld [vmem:[#allocation5 + $0x98] sm:$0xff]
    %v144 = vld [vmem:[#allocation5 + $0xa0] sm:$0xff]
    %v145 = vld [vmem:[#allocation5 + $0xa8] sm:$0xff]
    %v146 = vld [vmem:[#allocation5 + $0xb0] sm:$0xff]
    %v147 = vld [vmem:[#allocation5 + $0xb8] sm:$0xff]
    %v148 = vld [vmem:[#allocation5 + $0xc0] sm:$0xff]
    %v149 = vld [vmem:[#allocation5 + $0xc8] sm:$0xff]
    %v150 = vld [vmem:[#allocation5 + $0xd0] sm:$0xff]
    %v151 = vld [vmem:[#allocation5 + $0xd8] sm:$0xff]
    %v152 = vld [vmem:[#allocation5 + $0xe0] sm:$0xff]
    %v153 = vld [vmem:[#allocation5 + $0xe8] sm:$0xff]
    %v154 = vld [vmem:[#allocation5 + $0xf0] sm:$0xff]
    %v155 = vld [vmem:[#allocation5 + $0xf8] sm:$0xff]
    %v156 = vld [vmem:[#allocation5 + $0x100] sm:$0xff]
    %v157 = vld [vmem:[#allocation5 + $0x108] sm:$0xff]
    %v158 = vld [vmem:[#allocation5 + $0x110] sm:$0xff]
    %v159 = vld [vmem:[#allocation5 + $0x118] sm:$0xff]
    %v160 = vld [vmem:[#allocation5 + $0x120] sm:$0xff]
    %v161 = vld [vmem:[#allocation5 + $0x128] sm:$0xff]
    %v162 = vld [vmem:[#allocation5 + $0x130] sm:$0xff]
    %v163 = vld [vmem:[#allocation5 + $0x138] sm:$0xff]
    %v164 = vld [vmem:[#allocation5 + $0x140] sm:$0xff]
    %v165 = vld [vmem:[#allocation5 + $0x148] sm:$0xff]
    %v166 = vld [vmem:[#allocation5 + $0x150] sm:$0xff]
    %v167 = vld [vmem:[#allocation5 + $0x158] sm:$0xff]
    %v168 = vld [vmem:[#allocation5 + $0x160] sm:$0xff]
    %v169 = vld [vmem:[#allocation5 + $0x168] sm:$0xff]
    %v170 = vld [vmem:[#allocation5 + $0x170] sm:$0xff]
    %v171 = vld [vmem:[#allocation5 + $0x178] sm:$0xff]
    %v172 = vld [vmem:[#allocation5 + $0x180] sm:$0xff]
    %v173 = vld [vmem:[#allocation5 + $0x188] sm:$0xff]
    %v174 = vld [vmem:[#allocation5 + $0x190] sm:$0xff]
    %v175 = vld [vmem:[#allocation5 + $0x198] sm:$0xff]
    %v176 = vld [vmem:[#allocation5 + $0x1a0] sm:$0xff]
    %v177 = vld [vmem:[#allocation5 + $0x1a8] sm:$0xff]
    %v178 = vld [vmem:[#allocation5 + $0x1b0] sm:$0xff]
    %v179 = vld [vmem:[#allocation5 + $0x1b8] sm:$0xff]
    %v180 = vld [vmem:[#allocation5 + $0x1c0] sm:$0xff]
    %v181 = vld [vmem:[#allocation5 + $0x1c8] sm:$0xff]
    %v182 = vld [vmem:[#allocation5 + $0x1d0] sm:$0xff]
    %v183 = vld [vmem:[#allocation5 + $0x1d8] sm:$0xff]
    %v184 = vld [vmem:[#allocation5 + $0x1e0] sm:$0xff]
    %v185 = vld [vmem:[#allocation5 + $0x1e8] sm:$0xff]
    %v186 = vld [vmem:[#allocation5 + $0x1f0] sm:$0xff]
    %v187 = vld [vmem:[#allocation5 + $0x1f8] sm:$0xff]
    %v188 = vld [vmem:[#allocation5 + $0x200] sm:$0xff]
    %v189 = vld [vmem:[#allocation5 + $0x208] sm:$0xff]
    %v190 = vld [vmem:[#allocation5 + $0x210] sm:$0xff]
    %v191 = vld [vmem:[#allocation5 + $0x218] sm:$0xff]
    %v192 = vld [vmem:[#allocation5 + $0x220] sm:$0xff]
    %v193 = vld [vmem:[#allocation5 + $0x228] sm:$0xff]
    %v194 = vld [vmem:[#allocation5 + $0x230] sm:$0xff]
    %v195 = vld [vmem:[#allocation5 + $0x238] sm:$0xff]
    %v196 = vld [vmem:[#allocation5 + $0x240] sm:$0xff]
    %v197 = vld [vmem:[#allocation5 + $0x248] sm:$0xff]
    %v198 = vld [vmem:[#allocation5 + $0x250] sm:$0xff]
    %v199 = vld [vmem:[#allocation5 + $0x258] sm:$0xff]
    %v200 = vld [vmem:[#allocation5 + $0x260] sm:$0xff]
    %v201 = vld [vmem:[#allocation5 + $0x268] sm:$0xff]
    %v202 = vld [vmem:[#allocation5 + $0x270] sm:$0xff]
    %v203 = vld [vmem:[#allocation5 + $0x278] sm:$0xff]
    %v204 = vld [vmem:[#allocation5 + $0x280] sm:$0xff]
    %v205 = vld [vmem:[#allocation5 + $0x288] sm:$0xff]
    %v206 = vld [vmem:[#allocation5 + $0x290] sm:$0xff]
    %v207 = vld [vmem:[#allocation5 + $0x298] sm:$0xff]
    %v208 = vld [vmem:[#allocation5 + $0x2a0] sm:$0xff]
    %v209 = vld [vmem:[#allocation5 + $0x2a8] sm:$0xff]
    %v210 = vld [vmem:[#allocation5 + $0x2b0] sm:$0xff]
    %v211 = vld [vmem:[#allocation5 + $0x2b8] sm:$0xff]
    %v212 = vld [vmem:[#allocation5 + $0x2c0] sm:$0xff]
    %v213 = vld [vmem:[#allocation5 + $0x2c8] sm:$0xff]
    %v214 = vld [vmem:[#allocation5 + $0x2d0] sm:$0xff]
    %v215 = vld [vmem:[#allocation5 + $0x2d8] sm:$0xff]
    %v216 = vld [vmem:[#allocation5 + $0x2e0] sm:$0xff]
    %v217 = vld [vmem:[#allocation5 + $0x2e8] sm:$0xff]
    %v218 = vld [vmem:[#allocation5 + $0x2f0] sm:$0xff]
    %v219 = vld [vmem:[#allocation5 + $0x2f8] sm:$0xff]
    %v220 = vld [vmem:[#allocation5 + $0x300] sm:$0xff]
    %v221 = vld [vmem:[#allocation5 + $0x308] sm:$0xff]
    %v222 = vld [vmem:[#allocation5 + $0x310] sm:$0xff]
    %v223 = vld [vmem:[#allocation5 + $0x318] sm:$0xff]
    %v224 = vld [vmem:[#allocation5 + $0x320] sm:$0xff]
    %v225 = vld [vmem:[#allocation5 + $0x328] sm:$0xff]
    %v226 = vld [vmem:[#allocation5 + $0x330] sm:$0xff]
    %v227 = vld [vmem:[#allocation5 + $0x338] sm:$0xff]
    %v228 = vld [vmem:[#allocation5 + $0x340] sm:$0xff]
    %v229 = vld [vmem:[#allocation5 + $0x348] sm:$0xff]
    %v230 = vld [vmem:[#allocation5 + $0x350] sm:$0xff]
    %v231 = vld [vmem:[#allocation5 + $0x358] sm:$0xff]
    %v232 = vld [vmem:[#allocation5 + $0x360] sm:$0xff]
    %v233 = vld [vmem:[#allocation5 + $0x368] sm:$0xff]
    %v234 = vld [vmem:[#allocation5 + $0x370] sm:$0xff]
    %v235 = vld [vmem:[#allocation5 + $0x378] sm:$0xff]
    %v236 = vld [vmem:[#allocation5 + $0x380] sm:$0xff]
    %v237 = vld [vmem:[#allocation5 + $0x388] sm:$0xff]
    %v238 = vld [vmem:[#allocation5 + $0x390] sm:$0xff]
    %v239 = vld [vmem:[#allocation5 + $0x398] sm:$0xff]
    %v240 = vld [vmem:[#allocation5 + $0x3a0] sm:$0xff]
    %v241 = vld [vmem:[#allocation5 + $0x3a8] sm:$0xff]
    %v242 = vld [vmem:[#allocation5 + $0x3b0] sm:$0xff]
    %v243 = vld [vmem:[#allocation5 + $0x3b8] sm:$0xff]
    %v244 = vld [vmem:[#allocation5 + $0x3c0] sm:$0xff]
    %v245 = vld [vmem:[#allocation5 + $0x3c8] sm:$0xff]
    %v246 = vld [vmem:[#allocation5 + $0x3d0] sm:$0xff]
    %v247 = vld [vmem:[#allocation5 + $0x3d8] sm:$0xff]
    %v248 = vld [vmem:[#allocation5 + $0x3e0] sm:$0xff]
    %v249 = vld [vmem:[#allocation5 + $0x3e8] sm:$0xff]
    %v250 = vld [vmem:[#allocation5 + $0x3f0] sm:$0xff]
    %v251 = vld [vmem:[#allocation5 + $0x3f8] sm:$0xff]
    %v252 = vld [vmem:[#allocation5 + $0x400] sm:$0xff]
    %v253 = vld [vmem:[#allocation5 + $0x408] sm:$0xff]
    %v254 = vld [vmem:[#allocation5 + $0x410] sm:$0xff]
    %v255 = vld [vmem:[#allocation5 + $0x418] sm:$0xff]
    %v256 = vld [vmem:[#allocation5 + $0x420] sm:$0xff]
    %v257 = vld [vmem:[#allocation5 + $0x428] sm:$0xff]
    %v258 = vld [vmem:[#allocation5 + $0x430] sm:$0xff]
    %v259 = vld [vmem:[#allocation5 + $0x438] sm:$0xff]
    %v260 = vld [vmem:[#allocation5 + $0x440] sm:$0xff]
    %v261 = vld [vmem:[#allocation5 + $0x448] sm:$0xff]
    %v262 = vld [vmem:[#allocation5 + $0x450] sm:$0xff]
    %v263 = vld [vmem:[#allocation5 + $0x458] sm:$0xff]
    %v264 = vld [vmem:[#allocation5 + $0x460] sm:$0xff]
    %v265 = vld [vmem:[#allocation5 + $0x468] sm:$0xff]
    %v266 = vld [vmem:[#allocation5 + $0x470] sm:$0xff]
    %v267 = vld [vmem:[#allocation5 + $0x478] sm:$0xff]
    %v268 = vld [vmem:[#allocation5 + $0x480] sm:$0xff]
    %v269 = vld [vmem:[#allocation5 + $0x488] sm:$0xff]
    %v270 = vld [vmem:[#allocation5 + $0x490] sm:$0xff]
    %v271 = vld [vmem:[#allocation5 + $0x498] sm:$0xff]
    %v272 = vld [vmem:[#allocation5 + $0x4a0] sm:$0xff]
    %v273 = vld [vmem:[#allocation5 + $0x4a8] sm:$0xff]
    %v274 = vld [vmem:[#allocation5 + $0x4b0] sm:$0xff]
    %v275 = vld [vmem:[#allocation5 + $0x4b8] sm:$0xff]
    %v276 = vld [vmem:[#allocation5 + $0x4c0] sm:$0xff]
    %v277 = vld [vmem:[#allocation5 + $0x4c8] sm:$0xff]
    %v278 = vld [vmem:[#allocation5 + $0x4d0] sm:$0xff]
    %v279 = vld [vmem:[#allocation5 + $0x4d8] sm:$0xff]
    %v280 = vld [vmem:[#allocation5 + $0x4e0] sm:$0xff]
    %v281 = vld [vmem:[#allocation5 + $0x4e8] sm:$0xff]
    %v282 = vld [vmem:[#allocation5 + $0x4f0] sm:$0xff]
    %v283 = vld [vmem:[#allocation5 + $0x4f8] sm:$0xff]
    %v284 = vld [vmem:[#allocation5 + $0x500] sm:$0xff]
    %v285 = vld [vmem:[#allocation5 + $0x508] sm:$0xff]
    %v286 = vld [vmem:[#allocation5 + $0x510] sm:$0xff]
    %v287 = vld [vmem:[#allocation5 + $0x518] sm:$0xff]
    %v288 = vld [vmem:[#allocation5 + $0x520] sm:$0xff]
    %v289 = vld [vmem:[#allocation5 + $0x528] sm:$0xff]
    %v290 = vld [vmem:[#allocation5 + $0x530] sm:$0xff]
    %v291 = vld [vmem:[#allocation5 + $0x538] sm:$0xff]
    %v292 = vld [vmem:[#allocation5 + $0x540] sm:$0xff]
    %v293 = vld [vmem:[#allocation5 + $0x548] sm:$0xff]
    %v294 = vld [vmem:[#allocation5 + $0x550] sm:$0xff]
    %v295 = vld [vmem:[#allocation5 + $0x558] sm:$0xff]
    %v296 = vld [vmem:[#allocation5 + $0x560] sm:$0xff]
    %v297 = vld [vmem:[#allocation5 + $0x568] sm:$0xff]
    %v298 = vld [vmem:[#allocation5 + $0x570] sm:$0xff]
    %v299 = vld [vmem:[#allocation5 + $0x578] sm:$0xff]
    %v300 = vld [vmem:[#allocation5 + $0x580] sm:$0xff]
    %v301 = vld [vmem:[#allocation5 + $0x588] sm:$0xff]
    %v302 = vld [vmem:[#allocation5 + $0x590] sm:$0xff]
    %v303 = vld [vmem:[#allocation5 + $0x598] sm:$0xff]
    %v304 = vld [vmem:[#allocation5 + $0x5a0] sm:$0xff]
    %v305 = vld [vmem:[#allocation5 + $0x5a8] sm:$0xff]
    %v306 = vld [vmem:[#allocation5 + $0x5b0] sm:$0xff]
    %v307 = vld [vmem:[#allocation5 + $0x5b8] sm:$0xff]
    %v308 = vld [vmem:[#allocation5 + $0x5c0] sm:$0xff]
    %v309 = vld [vmem:[#allocation5 + $0x5c8] sm:$0xff]
    %v310 = vld [vmem:[#allocation5 + $0x5d0] sm:$0xff]
    %v311 = vld [vmem:[#allocation5 + $0x5d8] sm:$0xff]
    %v312 = vld [vmem:[#allocation5 + $0x5e0] sm:$0xff]
    %v313 = vld [vmem:[#allocation5 + $0x5e8] sm:$0xff]
    %v314 = vld [vmem:[#allocation5 + $0x5f0] sm:$0xff]
    %v315 = vld [vmem:[#allocation5 + $0x5f8] sm:$0xff]
    %v316 = vld [vmem:[#allocation5 + $0x600] sm:$0xff]
    %v317 = vld [vmem:[#allocation5 + $0x608] sm:$0xff]
    %v318 = vld [vmem:[#allocation5 + $0x610] sm:$0xff]
    %v319 = vld [vmem:[#allocation5 + $0x618] sm:$0xff]
    %v516 = vunpack.c.l.b16 %v124
    %v517 = vunpack.c.h.b16 %v124
    %v518 = vunpack.c.l.b16 %v125
    %v519 = vunpack.c.h.b16 %v125
    %v520 = vunpack.c.l.b16 %v126
    %v521 = vunpack.c.h.b16 %v126
    %v522 = vunpack.c.l.b16 %v127
    %v523 = vunpack.c.h.b16 %v127
    %v524 = vunpack.c.l.b16 %v128
    %v525 = vunpack.c.h.b16 %v128
    %v526 = vunpack.c.l.b16 %v129
    %v527 = vunpack.c.h.b16 %v129
    %v528 = vunpack.c.l.b16 %v130
    %v529 = vunpack.c.h.b16 %v130
    %v530 = vunpack.c.l.b16 %v131
    %v531 = vunpack.c.h.b16 %v131
    %v532 = vunpack.c.l.b16 %v132
    %v533 = vunpack.c.h.b16 %v132
    %v534 = vunpack.c.l.b16 %v133
    %v535 = vunpack.c.h.b16 %v133
    %v536 = vunpack.c.l.b16 %v134
    %v537 = vunpack.c.h.b16 %v134
    %v538 = vunpack.c.l.b16 %v135
    %v539 = vunpack.c.h.b16 %v135
    %v540 = vunpack.c.l.b16 %v136
    %v541 = vunpack.c.h.b16 %v136
    %v542 = vunpack.c.l.b16 %v137
    %v543 = vunpack.c.h.b16 %v137
    %v544 = vunpack.c.l.b16 %v138
    %v545 = vunpack.c.h.b16 %v138
    %v546 = vunpack.c.l.b16 %v139
    %v547 = vunpack.c.h.b16 %v139
    %v548 = vunpack.c.l.b16 %v140
    %v549 = vunpack.c.h.b16 %v140
    %v550 = vunpack.c.l.b16 %v141
    %v551 = vunpack.c.h.b16 %v141
    %v552 = vunpack.c.l.b16 %v142
    %v553 = vunpack.c.h.b16 %v142
    %v554 = vunpack.c.l.b16 %v143
    %v555 = vunpack.c.h.b16 %v143
    %v556 = vunpack.c.l.b16 %v144
    %v557 = vunpack.c.h.b16 %v144
    %v558 = vunpack.c.l.b16 %v145
    %v559 = vunpack.c.h.b16 %v145
    %v560 = vunpack.c.l.b16 %v146
    %v561 = vunpack.c.h.b16 %v146
    %v562 = vunpack.c.l.b16 %v147
    %v563 = vunpack.c.h.b16 %v147
    %v564 = vunpack.c.l.b16 %v148
    %v565 = vunpack.c.h.b16 %v148
    %v566 = vunpack.c.l.b16 %v149
    %v567 = vunpack.c.h.b16 %v149
    %v568 = vunpack.c.l.b16 %v150
    %v569 = vunpack.c.h.b16 %v150
    %v570 = vunpack.c.l.b16 %v151
    %v571 = vunpack.c.h.b16 %v151
    %v572 = vunpack.c.l.b16 %v152
    %v573 = vunpack.c.h.b16 %v152
    %v574 = vunpack.c.l.b16 %v153
    %v575 = vunpack.c.h.b16 %v153
    %v576 = vunpack.c.l.b16 %v154
    %v577 = vunpack.c.h.b16 %v154
    %v578 = vunpack.c.l.b16 %v155
    %v579 = vunpack.c.h.b16 %v155
    %v580 = vunpack.c.l.b16 %v156
    %v581 = vunpack.c.h.b16 %v156
    %v582 = vunpack.c.l.b16 %v157
    %v583 = vunpack.c.h.b16 %v157
    %v584 = vunpack.c.l.b16 %v158
    %v585 = vunpack.c.h.b16 %v158
    %v586 = vunpack.c.l.b16 %v159
    %v587 = vunpack.c.h.b16 %v159
    %v588 = vunpack.c.l.b16 %v160
    %v589 = vunpack.c.h.b16 %v160
    %v590 = vunpack.c.l.b16 %v161
    %v591 = vunpack.c.h.b16 %v161
    %v592 = vunpack.c.l.b16 %v162
    %v593 = vunpack.c.h.b16 %v162
    %v594 = vunpack.c.l.b16 %v163
    %v595 = vunpack.c.h.b16 %v163
    %v596 = vunpack.c.l.b16 %v164
    %v597 = vunpack.c.h.b16 %v164
    %v598 = vunpack.c.l.b16 %v165
    %v599 = vunpack.c.h.b16 %v165
    %v600 = vunpack.c.l.b16 %v166
    %v601 = vunpack.c.h.b16 %v166
    %v602 = vunpack.c.l.b16 %v167
    %v603 = vunpack.c.h.b16 %v167
    %v604 = vunpack.c.l.b16 %v168
    %v605 = vunpack.c.h.b16 %v168
    %v606 = vunpack.c.l.b16 %v169
    %v607 = vunpack.c.h.b16 %v169
    %v608 = vunpack.c.l.b16 %v170
    %v609 = vunpack.c.h.b16 %v170
    %v610 = vunpack.c.l.b16 %v171
    %v611 = vunpack.c.h.b16 %v171
    %v612 = vunpack.c.l.b16 %v172
    %v613 = vunpack.c.h.b16 %v172
    %v614 = vunpack.c.l.b16 %v173
    %v615 = vunpack.c.h.b16 %v173
    %v616 = vunpack.c.l.b16 %v174
    %v617 = vunpack.c.h.b16 %v174
    %v618 = vunpack.c.l.b16 %v175
    %v619 = vunpack.c.h.b16 %v175
    %v620 = vunpack.c.l.b16 %v176
    %v621 = vunpack.c.h.b16 %v176
    %v622 = vunpack.c.l.b16 %v177
    %v623 = vunpack.c.h.b16 %v177
    %v624 = vunpack.c.l.b16 %v178
    %v625 = vunpack.c.h.b16 %v178
    %v626 = vunpack.c.l.b16 %v179
    %v627 = vunpack.c.h.b16 %v179
    %v628 = vunpack.c.l.b16 %v180
    %v629 = vunpack.c.h.b16 %v180
    %v630 = vunpack.c.l.b16 %v181
    %v631 = vunpack.c.h.b16 %v181
    %v632 = vunpack.c.l.b16 %v182
    %v633 = vunpack.c.h.b16 %v182
    %v634 = vunpack.c.l.b16 %v183
    %v635 = vunpack.c.h.b16 %v183
    %v636 = vunpack.c.l.b16 %v184
    %v637 = vunpack.c.h.b16 %v184
    %v638 = vunpack.c.l.b16 %v185
    %v639 = vunpack.c.h.b16 %v185
    %v640 = vunpack.c.l.b16 %v186
    %v641 = vunpack.c.h.b16 %v186
    %v642 = vunpack.c.l.b16 %v187
    %v643 = vunpack.c.h.b16 %v187
    %v644 = vunpack.c.l.b16 %v188
    %v645 = vunpack.c.h.b16 %v188
    %v646 = vunpack.c.l.b16 %v189
    %v647 = vunpack.c.h.b16 %v189
    %v648 = vunpack.c.l.b16 %v190
    %v649 = vunpack.c.h.b16 %v190
    %v650 = vunpack.c.l.b16 %v191
    %v651 = vunpack.c.h.b16 %v191
    %v652 = vunpack.c.l.b16 %v192
    %v653 = vunpack.c.h.b16 %v192
    %v654 = vunpack.c.l.b16 %v193
    %v655 = vunpack.c.h.b16 %v193
    %v656 = vunpack.c.l.b16 %v194
    %v657 = vunpack.c.h.b16 %v194
    %v658 = vunpack.c.l.b16 %v195
    %v659 = vunpack.c.h.b16 %v195
    %v660 = vunpack.c.l.b16 %v196
    %v661 = vunpack.c.h.b16 %v196
    %v662 = vunpack.c.l.b16 %v197
    %v663 = vunpack.c.h.b16 %v197
    %v664 = vunpack.c.l.b16 %v198
    %v665 = vunpack.c.h.b16 %v198
    %v666 = vunpack.c.l.b16 %v199
    %v667 = vunpack.c.h.b16 %v199
    %v668 = vunpack.c.l.b16 %v200
    %v669 = vunpack.c.h.b16 %v200
    %v670 = vunpack.c.l.b16 %v201
    %v671 = vunpack.c.h.b16 %v201
    %v672 = vunpack.c.l.b16 %v202
    %v673 = vunpack.c.h.b16 %v202
    %v674 = vunpack.c.l.b16 %v203
    %v675 = vunpack.c.h.b16 %v203
    %v676 = vunpack.c.l.b16 %v204
    %v677 = vunpack.c.h.b16 %v204
    %v678 = vunpack.c.l.b16 %v205
    %v679 = vunpack.c.h.b16 %v205
    %v680 = vunpack.c.l.b16 %v206
    %v681 = vunpack.c.h.b16 %v206
    %v682 = vunpack.c.l.b16 %v207
    %v683 = vunpack.c.h.b16 %v207
    %v684 = vunpack.c.l.b16 %v208
    %v685 = vunpack.c.h.b16 %v208
    %v686 = vunpack.c.l.b16 %v209
    %v687 = vunpack.c.h.b16 %v209
    %v688 = vunpack.c.l.b16 %v210
    %v689 = vunpack.c.h.b16 %v210
    %v690 = vunpack.c.l.b16 %v211
    %v691 = vunpack.c.h.b16 %v211
    %v692 = vunpack.c.l.b16 %v212
    %v693 = vunpack.c.h.b16 %v212
    %v694 = vunpack.c.l.b16 %v213
    %v695 = vunpack.c.h.b16 %v213
    %v696 = vunpack.c.l.b16 %v214
    %v697 = vunpack.c.h.b16 %v214
    %v698 = vunpack.c.l.b16 %v215
    %v699 = vunpack.c.h.b16 %v215
    %v700 = vunpack.c.l.b16 %v216
    %v701 = vunpack.c.h.b16 %v216
    %v702 = vunpack.c.l.b16 %v217
    %v703 = vunpack.c.h.b16 %v217
    %v704 = vunpack.c.l.b16 %v218
    %v705 = vunpack.c.h.b16 %v218
    %v706 = vunpack.c.l.b16 %v219
    %v707 = vunpack.c.h.b16 %v219
    %v708 = vunpack.c.l.b16 %v220
    %v709 = vunpack.c.h.b16 %v220
    %v710 = vunpack.c.l.b16 %v221
    %v711 = vunpack.c.h.b16 %v221
    %v712 = vunpack.c.l.b16 %v222
    %v713 = vunpack.c.h.b16 %v222
    %v714 = vunpack.c.l.b16 %v223
    %v715 = vunpack.c.h.b16 %v223
    %v716 = vunpack.c.l.b16 %v224
    %v717 = vunpack.c.h.b16 %v224
    %v718 = vunpack.c.l.b16 %v225
    %v719 = vunpack.c.h.b16 %v225
    %v720 = vunpack.c.l.b16 %v226
    %v721 = vunpack.c.h.b16 %v226
    %v722 = vunpack.c.l.b16 %v227
    %v723 = vunpack.c.h.b16 %v227
    %v724 = vunpack.c.l.b16 %v228
    %v725 = vunpack.c.h.b16 %v228
    %v726 = vunpack.c.l.b16 %v229
    %v727 = vunpack.c.h.b16 %v229
    %v728 = vunpack.c.l.b16 %v230
    %v729 = vunpack.c.h.b16 %v230
    %v730 = vunpack.c.l.b16 %v231
    %v731 = vunpack.c.h.b16 %v231
    %v732 = vunpack.c.l.b16 %v232
    %v733 = vunpack.c.h.b16 %v232
    %v734 = vunpack.c.l.b16 %v233
    %v735 = vunpack.c.h.b16 %v233
    %v736 = vunpack.c.l.b16 %v234
    %v737 = vunpack.c.h.b16 %v234
    %v738 = vunpack.c.l.b16 %v235
    %v739 = vunpack.c.h.b16 %v235
    %v740 = vunpack.c.l.b16 %v236
    %v741 = vunpack.c.h.b16 %v236
    %v742 = vunpack.c.l.b16 %v237
    %v743 = vunpack.c.h.b16 %v237
    %v744 = vunpack.c.l.b16 %v238
    %v745 = vunpack.c.h.b16 %v238
    %v746 = vunpack.c.l.b16 %v239
    %v747 = vunpack.c.h.b16 %v239
    %v748 = vunpack.c.l.b16 %v240
    %v749 = vunpack.c.h.b16 %v240
    %v750 = vunpack.c.l.b16 %v241
    %v751 = vunpack.c.h.b16 %v241
    %v752 = vunpack.c.l.b16 %v242
    %v753 = vunpack.c.h.b16 %v242
    %v754 = vunpack.c.l.b16 %v243
    %v755 = vunpack.c.h.b16 %v243
    %v756 = vunpack.c.l.b16 %v244
    %v757 = vunpack.c.h.b16 %v244
    %v758 = vunpack.c.l.b16 %v245
    %v759 = vunpack.c.h.b16 %v245
    %v760 = vunpack.c.l.b16 %v246
    %v761 = vunpack.c.h.b16 %v246
    %v762 = vunpack.c.l.b16 %v247
    %v763 = vunpack.c.h.b16 %v247
    %v764 = vunpack.c.l.b16 %v248
    %v765 = vunpack.c.h.b16 %v248
    %v766 = vunpack.c.l.b16 %v249
    %v767 = vunpack.c.h.b16 %v249
    %v768 = vunpack.c.l.b16 %v250
    %v769 = vunpack.c.h.b16 %v250
    %v770 = vunpack.c.l.b16 %v251
    %v771 = vunpack.c.h.b16 %v251
    %v772 = vunpack.c.l.b16 %v252
    %v773 = vunpack.c.h.b16 %v252
    %v774 = vunpack.c.l.b16 %v253
    %v775 = vunpack.c.h.b16 %v253
    %v776 = vunpack.c.l.b16 %v254
    %v777 = vunpack.c.h.b16 %v254
    %v778 = vunpack.c.l.b16 %v255
    %v779 = vunpack.c.h.b16 %v255
    %v780 = vunpack.c.l.b16 %v256
    %v781 = vunpack.c.h.b16 %v256
    %v782 = vunpack.c.l.b16 %v257
    %v783 = vunpack.c.h.b16 %v257
    %v784 = vunpack.c.l.b16 %v258
    %v785 = vunpack.c.h.b16 %v258
    %v786 = vunpack.c.l.b16 %v259
    %v787 = vunpack.c.h.b16 %v259
    %v788 = vunpack.c.l.b16 %v260
    %v789 = vunpack.c.h.b16 %v260
    %v790 = vunpack.c.l.b16 %v261
    %v791 = vunpack.c.h.b16 %v261
    %v792 = vunpack.c.l.b16 %v262
    %v793 = vunpack.c.h.b16 %v262
    %v794 = vunpack.c.l.b16 %v263
    %v795 = vunpack.c.h.b16 %v263
    %v796 = vunpack.c.l.b16 %v264
    %v797 = vunpack.c.h.b16 %v264
    %v798 = vunpack.c.l.b16 %v265
    %v799 = vunpack.c.h.b16 %v265
    %v800 = vunpack.c.l.b16 %v266
    %v801 = vunpack.c.h.b16 %v266
    %v802 = vunpack.c.l.b16 %v267
    %v803 = vunpack.c.h.b16 %v267
    %v804 = vunpack.c.l.b16 %v268
    %v805 = vunpack.c.h.b16 %v268
    %v806 = vunpack.c.l.b16 %v269
    %v807 = vunpack.c.h.b16 %v269
    %v808 = vunpack.c.l.b16 %v270
    %v809 = vunpack.c.h.b16 %v270
    %v810 = vunpack.c.l.b16 %v271
    %v811 = vunpack.c.h.b16 %v271
    %v812 = vunpack.c.l.b16 %v272
    %v813 = vunpack.c.h.b16 %v272
    %v814 = vunpack.c.l.b16 %v273
    %v815 = vunpack.c.h.b16 %v273
    %v816 = vunpack.c.l.b16 %v274
    %v817 = vunpack.c.h.b16 %v274
    %v818 = vunpack.c.l.b16 %v275
    %v819 = vunpack.c.h.b16 %v275
    %v820 = vunpack.c.l.b16 %v276
    %v821 = vunpack.c.h.b16 %v276
    %v822 = vunpack.c.l.b16 %v277
    %v823 = vunpack.c.h.b16 %v277
    %v824 = vunpack.c.l.b16 %v278
    %v825 = vunpack.c.h.b16 %v278
    %v826 = vunpack.c.l.b16 %v279
    %v827 = vunpack.c.h.b16 %v279
    %v828 = vunpack.c.l.b16 %v280
    %v829 = vunpack.c.h.b16 %v280
    %v830 = vunpack.c.l.b16 %v281
    %v831 = vunpack.c.h.b16 %v281
    %v832 = vunpack.c.l.b16 %v282
    %v833 = vunpack.c.h.b16 %v282
    %v834 = vunpack.c.l.b16 %v283
    %v835 = vunpack.c.h.b16 %v283
    %v836 = vunpack.c.l.b16 %v284
    %v837 = vunpack.c.h.b16 %v284
    %v838 = vunpack.c.l.b16 %v285
    %v839 = vunpack.c.h.b16 %v285
    %v840 = vunpack.c.l.b16 %v286
    %v841 = vunpack.c.h.b16 %v286
    %v842 = vunpack.c.l.b16 %v287
    %v843 = vunpack.c.h.b16 %v287
    %v844 = vunpack.c.l.b16 %v288
    %v845 = vunpack.c.h.b16 %v288
    %v846 = vunpack.c.l.b16 %v289
    %v847 = vunpack.c.h.b16 %v289
    %v848 = vunpack.c.l.b16 %v290
    %v849 = vunpack.c.h.b16 %v290
    %v850 = vunpack.c.l.b16 %v291
    %v851 = vunpack.c.h.b16 %v291
    %v852 = vunpack.c.l.b16 %v292
    %v853 = vunpack.c.h.b16 %v292
    %v854 = vunpack.c.l.b16 %v293
    %v855 = vunpack.c.h.b16 %v293
    %v856 = vunpack.c.l.b16 %v294
    %v857 = vunpack.c.h.b16 %v294
    %v858 = vunpack.c.l.b16 %v295
    %v859 = vunpack.c.h.b16 %v295
    %v860 = vunpack.c.l.b16 %v296
    %v861 = vunpack.c.h.b16 %v296
    %v862 = vunpack.c.l.b16 %v297
    %v863 = vunpack.c.h.b16 %v297
    %v864 = vunpack.c.l.b16 %v298
    %v865 = vunpack.c.h.b16 %v298
    %v866 = vunpack.c.l.b16 %v299
    %v867 = vunpack.c.h.b16 %v299
    %v868 = vunpack.c.l.b16 %v300
    %v869 = vunpack.c.h.b16 %v300
    %v870 = vunpack.c.l.b16 %v301
    %v871 = vunpack.c.h.b16 %v301
    %v872 = vunpack.c.l.b16 %v302
    %v873 = vunpack.c.h.b16 %v302
    %v874 = vunpack.c.l.b16 %v303
    %v875 = vunpack.c.h.b16 %v303
    %v876 = vunpack.c.l.b16 %v304
    %v877 = vunpack.c.h.b16 %v304
    %v878 = vunpack.c.l.b16 %v305
    %v879 = vunpack.c.h.b16 %v305
    %v880 = vunpack.c.l.b16 %v306
    %v881 = vunpack.c.h.b16 %v306
    %v882 = vunpack.c.l.b16 %v307
    %v883 = vunpack.c.h.b16 %v307
    %v884 = vunpack.c.l.b16 %v308
    %v885 = vunpack.c.h.b16 %v308
    %v886 = vunpack.c.l.b16 %v309
    %v887 = vunpack.c.h.b16 %v309
    %v888 = vunpack.c.l.b16 %v310
    %v889 = vunpack.c.h.b16 %v310
    %v890 = vunpack.c.l.b16 %v311
    %v891 = vunpack.c.h.b16 %v311
    %v892 = vunpack.c.l.b16 %v312
    %v893 = vunpack.c.h.b16 %v312
    %v894 = vunpack.c.l.b16 %v313
    %v895 = vunpack.c.h.b16 %v313
    %v896 = vunpack.c.l.b16 %v314
    %v897 = vunpack.c.h.b16 %v314
    %v898 = vunpack.c.l.b16 %v315
    %v899 = vunpack.c.h.b16 %v315
    %v900 = vunpack.c.l.b16 %v316
    %v901 = vunpack.c.h.b16 %v316
    %v902 = vunpack.c.l.b16 %v317
    %v903 = vunpack.c.h.b16 %v317
    %v904 = vunpack.c.l.b16 %v318
    %v905 = vunpack.c.h.b16 %v318
    %v906 = vunpack.c.l.b16 %v319
    %v907 = vunpack.c.h.b16 %v319
    %v908 = vpack.c.b16 %v520, %v516
    %v909 = vpack.c.b16 %v521, %v517
    %v910 = vpack.c.b16 %v522, %v518
    %v911 = vpack.c.b16 %v523, %v519
    %v912 = vpack.c.b16 %v528, %v524
    %v913 = vpack.c.b16 %v529, %v525
    %v914 = vpack.c.b16 %v530, %v526
    %v915 = vpack.c.b16 %v531, %v527
    %v916 = vpack.c.b16 %v536, %v532
    %v917 = vpack.c.b16 %v537, %v533
    %v918 = vpack.c.b16 %v538, %v534
    %v919 = vpack.c.b16 %v539, %v535
    %v920 = vpack.c.b16 %v544, %v540
    %v921 = vpack.c.b16 %v545, %v541
    %v922 = vpack.c.b16 %v546, %v542
    %v923 = vpack.c.b16 %v547, %v543
    %v924 = vpack.c.b16 %v552, %v548
    %v925 = vpack.c.b16 %v553, %v549
    %v926 = vpack.c.b16 %v554, %v550
    %v927 = vpack.c.b16 %v555, %v551
    %v928 = vpack.c.b16 %v560, %v556
    %v929 = vpack.c.b16 %v561, %v557
    %v930 = vpack.c.b16 %v562, %v558
    %v931 = vpack.c.b16 %v563, %v559
    %v932 = vpack.c.b16 %v568, %v564
    %v933 = vpack.c.b16 %v569, %v565
    %v934 = vpack.c.b16 %v570, %v566
    %v935 = vpack.c.b16 %v571, %v567
    %v936 = vpack.c.b16 %v576, %v572
    %v937 = vpack.c.b16 %v577, %v573
    %v938 = vpack.c.b16 %v578, %v574
    %v939 = vpack.c.b16 %v579, %v575
    %v940 = vpack.c.b16 %v584, %v580
    %v941 = vpack.c.b16 %v585, %v581
    %v942 = vpack.c.b16 %v586, %v582
    %v943 = vpack.c.b16 %v587, %v583
    %v944 = vpack.c.b16 %v592, %v588
    %v945 = vpack.c.b16 %v593, %v589
    %v946 = vpack.c.b16 %v594, %v590
    %v947 = vpack.c.b16 %v595, %v591
    %v948 = vpack.c.b16 %v600, %v596
    %v949 = vpack.c.b16 %v601, %v597
    %v950 = vpack.c.b16 %v602, %v598
    %v951 = vpack.c.b16 %v603, %v599
    %v952 = vpack.c.b16 %v608, %v604
    %v953 = vpack.c.b16 %v609, %v605
    %v954 = vpack.c.b16 %v610, %v606
    %v955 = vpack.c.b16 %v611, %v607
    %v956 = vpack.c.b16 %v616, %v612
    %v957 = vpack.c.b16 %v617, %v613
    %v958 = vpack.c.b16 %v618, %v614
    %v959 = vpack.c.b16 %v619, %v615
    %v960 = vpack.c.b16 %v624, %v620
    %v961 = vpack.c.b16 %v625, %v621
    %v962 = vpack.c.b16 %v626, %v622
    %v963 = vpack.c.b16 %v627, %v623
    %v964 = vpack.c.b16 %v632, %v628
    %v965 = vpack.c.b16 %v633, %v629
    %v966 = vpack.c.b16 %v634, %v630
    %v967 = vpack.c.b16 %v635, %v631
    %v968 = vpack.c.b16 %v640, %v636
    %v969 = vpack.c.b16 %v641, %v637
    %v970 = vpack.c.b16 %v642, %v638
    %v971 = vpack.c.b16 %v643, %v639
    %v972 = vpack.c.b16 %v648, %v644
    %v973 = vpack.c.b16 %v649, %v645
    %v974 = vpack.c.b16 %v650, %v646
    %v975 = vpack.c.b16 %v651, %v647
    %v976 = vpack.c.b16 %v656, %v652
    %v977 = vpack.c.b16 %v657, %v653
    %v978 = vpack.c.b16 %v658, %v654
    %v979 = vpack.c.b16 %v659, %v655
    %v980 = vpack.c.b16 %v664, %v660
    %v981 = vpack.c.b16 %v665, %v661
    %v982 = vpack.c.b16 %v666, %v662
    %v983 = vpack.c.b16 %v667, %v663
    %v984 = vpack.c.b16 %v672, %v668
    %v985 = vpack.c.b16 %v673, %v669
    %v986 = vpack.c.b16 %v674, %v670
    %v987 = vpack.c.b16 %v675, %v671
    %v988 = vpack.c.b16 %v680, %v676
    %v989 = vpack.c.b16 %v681, %v677
    %v990 = vpack.c.b16 %v682, %v678
    %v991 = vpack.c.b16 %v683, %v679
    %v992 = vpack.c.b16 %v688, %v684
    %v993 = vpack.c.b16 %v689, %v685
    %v994 = vpack.c.b16 %v690, %v686
    %v995 = vpack.c.b16 %v691, %v687
    %v996 = vpack.c.b16 %v696, %v692
    %v997 = vpack.c.b16 %v697, %v693
    %v998 = vpack.c.b16 %v698, %v694
    %v999 = vpack.c.b16 %v699, %v695
    %v1000 = vpack.c.b16 %v704, %v700
    %v1001 = vpack.c.b16 %v705, %v701
    %v1002 = vpack.c.b16 %v706, %v702
    %v1003 = vpack.c.b16 %v707, %v703
    %v1004 = vpack.c.b16 %v712, %v708
    %v1005 = vpack.c.b16 %v713, %v709
    %v1006 = vpack.c.b16 %v714, %v710
    %v1007 = vpack.c.b16 %v715, %v711
    %v1008 = vpack.c.b16 %v720, %v716
    %v1009 = vpack.c.b16 %v721, %v717
    %v1010 = vpack.c.b16 %v722, %v718
    %v1011 = vpack.c.b16 %v723, %v719
    %v1012 = vpack.c.b16 %v728, %v724
    %v1013 = vpack.c.b16 %v729, %v725
    %v1014 = vpack.c.b16 %v730, %v726
    %v1015 = vpack.c.b16 %v731, %v727
    %v1016 = vpack.c.b16 %v736, %v732
    %v1017 = vpack.c.b16 %v737, %v733
    %v1018 = vpack.c.b16 %v738, %v734
    %v1019 = vpack.c.b16 %v739, %v735
    %v1020 = vpack.c.b16 %v744, %v740
    %v1021 = vpack.c.b16 %v745, %v741
    %v1022 = vpack.c.b16 %v746, %v742
    %v1023 = vpack.c.b16 %v747, %v743
    %v1024 = vpack.c.b16 %v752, %v748
    %v1025 = vpack.c.b16 %v753, %v749
    %v1026 = vpack.c.b16 %v754, %v750
    %v1027 = vpack.c.b16 %v755, %v751
    %v1028 = vpack.c.b16 %v760, %v756
    %v1029 = vpack.c.b16 %v761, %v757
    %v1030 = vpack.c.b16 %v762, %v758
    %v1031 = vpack.c.b16 %v763, %v759
    %v1032 = vpack.c.b16 %v768, %v764
    %v1033 = vpack.c.b16 %v769, %v765
    %v1034 = vpack.c.b16 %v770, %v766
    %v1035 = vpack.c.b16 %v771, %v767
    %v1036 = vpack.c.b16 %v776, %v772
    %v1037 = vpack.c.b16 %v777, %v773
    %v1038 = vpack.c.b16 %v778, %v774
    %v1039 = vpack.c.b16 %v779, %v775
    %v1040 = vpack.c.b16 %v784, %v780
    %v1041 = vpack.c.b16 %v785, %v781
    %v1042 = vpack.c.b16 %v786, %v782
    %v1043 = vpack.c.b16 %v787, %v783
    %v1044 = vpack.c.b16 %v792, %v788
    %v1045 = vpack.c.b16 %v793, %v789
    %v1046 = vpack.c.b16 %v794, %v790
    %v1047 = vpack.c.b16 %v795, %v791
    %v1048 = vpack.c.b16 %v800, %v796
    %v1049 = vpack.c.b16 %v801, %v797
    %v1050 = vpack.c.b16 %v802, %v798
    %v1051 = vpack.c.b16 %v803, %v799
    %v1052 = vpack.c.b16 %v808, %v804
    %v1053 = vpack.c.b16 %v809, %v805
    %v1054 = vpack.c.b16 %v810, %v806
    %v1055 = vpack.c.b16 %v811, %v807
    %v1056 = vpack.c.b16 %v816, %v812
    %v1057 = vpack.c.b16 %v817, %v813
    %v1058 = vpack.c.b16 %v818, %v814
    %v1059 = vpack.c.b16 %v819, %v815
    %v1060 = vpack.c.b16 %v824, %v820
    %v1061 = vpack.c.b16 %v825, %v821
    %v1062 = vpack.c.b16 %v826, %v822
    %v1063 = vpack.c.b16 %v827, %v823
    %v1064 = vpack.c.b16 %v832, %v828
    %v1065 = vpack.c.b16 %v833, %v829
    %v1066 = vpack.c.b16 %v834, %v830
    %v1067 = vpack.c.b16 %v835, %v831
    %v1068 = vpack.c.b16 %v840, %v836
    %v1069 = vpack.c.b16 %v841, %v837
    %v1070 = vpack.c.b16 %v842, %v838
    %v1071 = vpack.c.b16 %v843, %v839
    %v1072 = vpack.c.b16 %v848, %v844
    %v1073 = vpack.c.b16 %v849, %v845
    %v1074 = vpack.c.b16 %v850, %v846
    %v1075 = vpack.c.b16 %v851, %v847
    %v1076 = vpack.c.b16 %v856, %v852
    %v1077 = vpack.c.b16 %v857, %v853
    %v1078 = vpack.c.b16 %v858, %v854
    %v1079 = vpack.c.b16 %v859, %v855
    %v1080 = vpack.c.b16 %v864, %v860
    %v1081 = vpack.c.b16 %v865, %v861
    %v1082 = vpack.c.b16 %v866, %v862
    %v1083 = vpack.c.b16 %v867, %v863
    %v1084 = vpack.c.b16 %v872, %v868
    %v1085 = vpack.c.b16 %v873, %v869
    %v1086 = vpack.c.b16 %v874, %v870
    %v1087 = vpack.c.b16 %v875, %v871
    %v1088 = vpack.c.b16 %v880, %v876
    %v1089 = vpack.c.b16 %v881, %v877
    %v1090 = vpack.c.b16 %v882, %v878
    %v1091 = vpack.c.b16 %v883, %v879
    %v1092 = vpack.c.b16 %v888, %v884
    %v1093 = vpack.c.b16 %v889, %v885
    %v1094 = vpack.c.b16 %v890, %v886
    %v1095 = vpack.c.b16 %v891, %v887
    %v1096 = vpack.c.b16 %v896, %v892
    %v1097 = vpack.c.b16 %v897, %v893
    %v1098 = vpack.c.b16 %v898, %v894
    %v1099 = vpack.c.b16 %v899, %v895
    %v1100 = vpack.c.b16 %v904, %v900
    %v1101 = vpack.c.b16 %v905, %v901
    %v1102 = vpack.c.b16 %v906, %v902
    %v1103 = vpack.c.b16 %v907, %v903
    %vm1300 = vcmask 130048
    %v1302 = vsel %vm1300, %v123, 0
    %1304 = vmatprep.subr.bf16.mxu0 %v909
    %1305 = vmatpush1.bf16.msra.mxu0 %v908
    %1306 = vmatprep.subr.bf16.mxu0 %v913
    %1307 = vmatpush1.bf16.msra.mxu0 %v912
    %1308 = vmatprep.subr.bf16.mxu0 %v917
    %1309 = vmatpush1.bf16.msra.mxu0 %v916
    %1310 = vmatprep.subr.bf16.mxu0 %v921
    %1311 = vmatpush1.bf16.msra.mxu0 %v920
    %1312 = vmatprep.subr.bf16.mxu0 %v925
    %1313 = vmatpush1.bf16.msra.mxu0 %v924
    %1314 = vmatprep.subr.bf16.mxu0 %v929
    %1315 = vmatpush1.bf16.msra.mxu0 %v928
    %1316 = vmatprep.subr.bf16.mxu0 %v933
    %1317 = vmatpush1.bf16.msra.mxu0 %v932
    %1318 = vmatprep.subr.bf16.mxu0 %v937
    %1319 = vmatpush1.bf16.msra.mxu0 %v936
    %1320 = vmatprep.subr.bf16.mxu0 %v941
    %1321 = vmatpush1.bf16.msra.mxu0 %v940
    %1322 = vmatprep.subr.bf16.mxu0 %v945
    %1323 = vmatpush1.bf16.msra.mxu0 %v944
    %1324 = vmatprep.subr.bf16.mxu0 %v949
    %1325 = vmatpush1.bf16.msra.mxu0 %v948
    %1326 = vmatprep.subr.bf16.mxu0 %v953
    %1327 = vmatpush1.bf16.msra.mxu0 %v952
    %1328 = vmatprep.subr.bf16.mxu0 %v957
    %1329 = vmatpush1.bf16.msra.mxu0 %v956
    %1330 = vmatprep.subr.bf16.mxu0 %v961
    %1331 = vmatpush1.bf16.msra.mxu0 %v960
    %1332 = vmatprep.subr.bf16.mxu0 %v965
    %1333 = vmatpush1.bf16.msra.mxu0 %v964
    %1334 = vmatprep.subr.bf16.mxu0 %v969
    %1335 = vmatpush1.bf16.msra.mxu0 %v968
    %1336 = vmatprep.mubr.bf16.mxu0 %v118
    %1337 = vmatmul.mubr.bf16.gmra.mrb[0].mxu0 %v117
    %v1338 = vpop.f32.mrb[0].mxu0
    %v1339 = vadd.f32 0.0, %v1338
    %v1340 = vpop.f32.mrb[0].mxu0
    %v1341 = vadd.f32 0.0, %v1340
    %v1342 = vpop.f32.mrb[0].mxu0
    %v1343 = vpop.f32.mrb[0].mxu0
    %1344 = vdwg.mxu0
    %1345 = vmatprep.subr.bf16.mxu0 %v973
    %1346 = vmatpush1.bf16.msra.mxu0 %v972
    %1347 = vmatprep.subr.bf16.mxu0 %v977
    %1348 = vmatpush1.bf16.msra.mxu0 %v976
    %1349 = vmatprep.subr.bf16.mxu0 %v981
    %1350 = vmatpush1.bf16.msra.mxu0 %v980
    %1351 = vmatprep.subr.bf16.mxu0 %v985
    %1352 = vmatpush1.bf16.msra.mxu0 %v984
    %1353 = vmatprep.subr.bf16.mxu0 %v989
    %1354 = vmatpush1.bf16.msra.mxu0 %v988
    %1355 = vmatprep.subr.bf16.mxu0 %v993
    %1356 = vmatpush1.bf16.msra.mxu0 %v992
    %1357 = vmatprep.subr.bf16.mxu0 %v997
    %1358 = vmatpush1.bf16.msra.mxu0 %v996
    %1359 = vmatprep.subr.bf16.mxu0 %v1001
    %1360 = vmatpush1.bf16.msra.mxu0 %v1000
    %1361 = vmatprep.subr.bf16.mxu0 %v1005
    %1362 = vmatpush1.bf16.msra.mxu0 %v1004
    %1363 = vmatprep.subr.bf16.mxu0 %v1009
    %1364 = vmatpush1.bf16.msra.mxu0 %v1008
    %1365 = vmatprep.subr.bf16.mxu0 %v1013
    %1366 = vmatpush1.bf16.msra.mxu0 %v1012
    %1367 = vmatprep.subr.bf16.mxu0 %v1017
    %1368 = vmatpush1.bf16.msra.mxu0 %v1016
    %1369 = vmatprep.subr.bf16.mxu0 %v1021
    %1370 = vmatpush1.bf16.msra.mxu0 %v1020
    %1371 = vmatprep.subr.bf16.mxu0 %v1025
    %1372 = vmatpush1.bf16.msra.mxu0 %v1024
    %1373 = vmatprep.subr.bf16.mxu0 %v1029
    %1374 = vmatpush1.bf16.msra.mxu0 %v1028
    %1375 = vmatprep.subr.bf16.mxu0 %v1033
    %1376 = vmatpush1.bf16.msra.mxu0 %v1032
    %1377 = vmatprep.mubr.bf16.mxu0 %v120
    %1378 = vmatmul.mubr.bf16.gmra.mrb[0].mxu0 %v119
    %v1379 = vpop.f32.mrb[0].mxu0
    %v1380 = vadd.f32 %v1339, %v1379
    %v1381 = vpop.f32.mrb[0].mxu0
    %v1382 = vadd.f32 %v1341, %v1381
    %v1383 = vpop.f32.mrb[0].mxu0
    %v1384 = vpop.f32.mrb[0].mxu0
    %1385 = vdwg.mxu0
    %1386 = vmatprep.subr.bf16.mxu0 %v1037
    %1387 = vmatpush1.bf16.msra.mxu0 %v1036
    %1388 = vmatprep.subr.bf16.mxu0 %v1041
    %1389 = vmatpush1.bf16.msra.mxu0 %v1040
    %1390 = vmatprep.subr.bf16.mxu0 %v1045
    %1391 = vmatpush1.bf16.msra.mxu0 %v1044
    %1392 = vmatprep.subr.bf16.mxu0 %v1049
    %1393 = vmatpush1.bf16.msra.mxu0 %v1048
    %1394 = vmatprep.subr.bf16.mxu0 %v1053
    %1395 = vmatpush1.bf16.msra.mxu0 %v1052
    %1396 = vmatprep.subr.bf16.mxu0 %v1057
    %1397 = vmatpush1.bf16.msra.mxu0 %v1056
    %1398 = vmatprep.subr.bf16.mxu0 %v1061
    %1399 = vmatpush1.bf16.msra.mxu0 %v1060
    %1400 = vmatprep.subr.bf16.mxu0 %v1065
    %1401 = vmatpush1.bf16.msra.mxu0 %v1064
    %1402 = vmatprep.subr.bf16.mxu0 %v1069
    %1403 = vmatpush1.bf16.msra.mxu0 %v1068
    %1404 = vmatprep.subr.bf16.mxu0 %v1073
    %1405 = vmatpush1.bf16.msra.mxu0 %v1072
    %1406 = vmatprep.subr.bf16.mxu0 %v1077
    %1407 = vmatpush1.bf16.msra.mxu0 %v1076
    %1408 = vmatprep.subr.bf16.mxu0 %v1081
    %1409 = vmatpush1.bf16.msra.mxu0 %v1080
    %1410 = vmatprep.subr.bf16.mxu0 %v1085
    %1411 = vmatpush1.bf16.msra.mxu0 %v1084
    %1412 = vmatprep.subr.bf16.mxu0 %v1089
    %1413 = vmatpush1.bf16.msra.mxu0 %v1088
    %1414 = vmatprep.subr.bf16.mxu0 %v1093
    %1415 = vmatpush1.bf16.msra.mxu0 %v1092
    %1416 = vmatprep.subr.bf16.mxu0 %v1097
    %1417 = vmatpush1.bf16.msra.mxu0 %v1096
    %1418 = vmatprep.mubr.bf16.mxu0 %v122
    %1419 = vmatmul.mubr.bf16.gmra.mrb[0].mxu0 %v121
    %v1420 = vpop.f32.mrb[0].mxu0
    %v1421 = vadd.f32 %v1380, %v1420
    %v1422 = vpop.f32.mrb[0].mxu0
    %v1423 = vadd.f32 %v1382, %v1422
    %v1424 = vpop.f32.mrb[0].mxu0
    %v1425 = vpop.f32.mrb[0].mxu0
    %1426 = vdwg.mxu0
    %1427 = vmatprep.subr.bf16.mxu0 %v1101
    %1428 = vmatpush1.bf16.msra.mxu0 %v1100
    %1429 = vmatprep.subr.bf16.mxu0 0
    %1430 = vmatpush1.bf16.msra.mxu0 0
    %1431 = vmatprep.subr.bf16.mxu0 0
    %1432 = vmatpush1.bf16.msra.mxu0 0
    %1433 = vmatprep.subr.bf16.mxu0 0
    %1434 = vmatpush1.bf16.msra.mxu0 0
    %1435 = vmatprep.subr.bf16.mxu0 0
    %1436 = vmatpush1.bf16.msra.mxu0 0
    %1437 = vmatprep.subr.bf16.mxu0 0
    %1438 = vmatpush1.bf16.msra.mxu0 0
    %1439 = vmatprep.subr.bf16.mxu0 0
    %1440 = vmatpush1.bf16.msra.mxu0 0
    %1441 = vmatprep.subr.bf16.mxu0 0
    %1442 = vmatpush1.bf16.msra.mxu0 0
    %1443 = vmatprep.subr.bf16.mxu0 0
    %1444 = vmatpush1.bf16.msra.mxu0 0
    %1445 = vmatprep.subr.bf16.mxu0 0
    %1446 = vmatpush1.bf16.msra.mxu0 0
    %1447 = vmatprep.subr.bf16.mxu0 0
    %1448 = vmatpush1.bf16.msra.mxu0 0
    %1449 = vmatprep.subr.bf16.mxu0 0
    %1450 = vmatpush1.bf16.msra.mxu0 0
    %1451 = vmatprep.subr.bf16.mxu0 0
    %1452 = vmatpush1.bf16.msra.mxu0 0
    %1453 = vmatprep.subr.bf16.mxu0 0
    %1454 = vmatpush1.bf16.msra.mxu0 0
    %1455 = vmatprep.subr.bf16.mxu0 0
    %1456 = vmatpush1.bf16.msra.mxu0 0
    %1457 = vmatprep.subr.bf16.mxu0 0
    %1458 = vmatpush1.bf16.msra.mxu0 0
    %1459 = vmatprep.mubr.bf16.mxu0 0
    %1460 = vmatmul.mubr.bf16.gmra.mrb[0].mxu0 %v1302
    %v1461 = vpop.f32.mrb[0].mxu0
    %v1462 = vadd.f32 %v1421, %v1461
    %v1463 = vpop.f32.mrb[0].mxu0
    %v1464 = vadd.f32 %v1423, %v1463
    %v1465 = vpop.f32.mrb[0].mxu0
    %v1466 = vpop.f32.mrb[0].mxu0
    %1467 = vdwg.mxu0
    %1468 = vmatprep.subr.bf16.mxu0 %v911
    %1469 = vmatpush1.bf16.msra.mxu0 %v910
    %1470 = vmatprep.subr.bf16.mxu0 %v915
    %1471 = vmatpush1.bf16.msra.mxu0 %v914
    %1472 = vmatprep.subr.bf16.mxu0 %v919
    %1473 = vmatpush1.bf16.msra.mxu0 %v918
    %1474 = vmatprep.subr.bf16.mxu0 %v923
    %1475 = vmatpush1.bf16.msra.mxu0 %v922
    %1476 = vmatprep.subr.bf16.mxu0 %v927
    %1477 = vmatpush1.bf16.msra.mxu0 %v926
    %1478 = vmatprep.subr.bf16.mxu0 %v931
    %1479 = vmatpush1.bf16.msra.mxu0 %v930
    %1480 = vmatprep.subr.bf16.mxu0 %v935
    %1481 = vmatpush1.bf16.msra.mxu0 %v934
    %1482 = vmatprep.subr.bf16.mxu0 %v939
    %1483 = vmatpush1.bf16.msra.mxu0 %v938
    %1484 = vmatprep.subr.bf16.mxu0 %v943
    %1485 = vmatpush1.bf16.msra.mxu0 %v942
    %1486 = vmatprep.subr.bf16.mxu0 %v947
    %1487 = vmatpush1.bf16.msra.mxu0 %v946
    %1488 = vmatprep.subr.bf16.mxu0 %v951
    %1489 = vmatpush1.bf16.msra.mxu0 %v950
    %1490 = vmatprep.subr.bf16.mxu0 %v955
    %1491 = vmatpush1.bf16.msra.mxu0 %v954
    %1492 = vmatprep.subr.bf16.mxu0 %v959
    %1493 = vmatpush1.bf16.msra.mxu0 %v958
    %1494 = vmatprep.subr.bf16.mxu0 %v963
    %1495 = vmatpush1.bf16.msra.mxu0 %v962
    %1496 = vmatprep.subr.bf16.mxu0 %v967
    %1497 = vmatpush1.bf16.msra.mxu0 %v966
    %1498 = vmatprep.subr.bf16.mxu0 %v971
    %1499 = vmatpush1.bf16.msra.mxu0 %v970
    %1500 = vmatprep.mubr.bf16.mxu0 %v118
    %1501 = vmatmul.mubr.bf16.gmra.mrb[0].mxu0 %v117
    %v1502 = vpop.f32.mrb[0].mxu0
    %v1503 = vadd.f32 0.0, %v1502
    %v1504 = vpop.f32.mrb[0].mxu0
    %v1505 = vadd.f32 0.0, %v1504
    %v1506 = vpop.f32.mrb[0].mxu0
    %v1507 = vpop.f32.mrb[0].mxu0
    %1508 = vdwg.mxu0
    %1509 = vmatprep.subr.bf16.mxu0 %v975
    %1510 = vmatpush1.bf16.msra.mxu0 %v974
    %1511 = vmatprep.subr.bf16.mxu0 %v979
    %1512 = vmatpush1.bf16.msra.mxu0 %v978
    %1513 = vmatprep.subr.bf16.mxu0 %v983
    %1514 = vmatpush1.bf16.msra.mxu0 %v982
    %1515 = vmatprep.subr.bf16.mxu0 %v987
    %1516 = vmatpush1.bf16.msra.mxu0 %v986
    %1517 = vmatprep.subr.bf16.mxu0 %v991
    %1518 = vmatpush1.bf16.msra.mxu0 %v990
    %1519 = vmatprep.subr.bf16.mxu0 %v995
    %1520 = vmatpush1.bf16.msra.mxu0 %v994
    %1521 = vmatprep.subr.bf16.mxu0 %v999
    %1522 = vmatpush1.bf16.msra.mxu0 %v998
    %1523 = vmatprep.subr.bf16.mxu0 %v1003
    %1524 = vmatpush1.bf16.msra.mxu0 %v1002
    %1525 = vmatprep.subr.bf16.mxu0 %v1007
    %1526 = vmatpush1.bf16.msra.mxu0 %v1006
    %1527 = vmatprep.subr.bf16.mxu0 %v1011
    %1528 = vmatpush1.bf16.msra.mxu0 %v1010
    %1529 = vmatprep.subr.bf16.mxu0 %v1015
    %1530 = vmatpush1.bf16.msra.mxu0 %v1014
    %1531 = vmatprep.subr.bf16.mxu0 %v1019
    %1532 = vmatpush1.bf16.msra.mxu0 %v1018
    %1533 = vmatprep.subr.bf16.mxu0 %v1023
    %1534 = vmatpush1.bf16.msra.mxu0 %v1022
    %1535 = vmatprep.subr.bf16.mxu0 %v1027
    %1536 = vmatpush1.bf16.msra.mxu0 %v1026
    %1537 = vmatprep.subr.bf16.mxu0 %v1031
    %1538 = vmatpush1.bf16.msra.mxu0 %v1030
    %1539 = vmatprep.subr.bf16.mxu0 %v1035
    %1540 = vmatpush1.bf16.msra.mxu0 %v1034
    %1541 = vmatprep.mubr.bf16.mxu0 %v120
    %1542 = vmatmul.mubr.bf16.gmra.mrb[0].mxu0 %v119
    %v1543 = vpop.f32.mrb[0].mxu0
    %v1544 = vadd.f32 %v1503, %v1543
    %v1545 = vpop.f32.mrb[0].mxu0
    %v1546 = vadd.f32 %v1505, %v1545
    %v1547 = vpop.f32.mrb[0].mxu0
    %v1548 = vpop.f32.mrb[0].mxu0
    %1549 = vdwg.mxu0
    %1550 = vmatprep.subr.bf16.mxu0 %v1039
    %1551 = vmatpush1.bf16.msra.mxu0 %v1038
    %1552 = vmatprep.subr.bf16.mxu0 %v1043
    %1553 = vmatpush1.bf16.msra.mxu0 %v1042
    %1554 = vmatprep.subr.bf16.mxu0 %v1047
    %1555 = vmatpush1.bf16.msra.mxu0 %v1046
    %1556 = vmatprep.subr.bf16.mxu0 %v1051
    %1557 = vmatpush1.bf16.msra.mxu0 %v1050
    %1558 = vmatprep.subr.bf16.mxu0 %v1055
    %1559 = vmatpush1.bf16.msra.mxu0 %v1054
    %1560 = vmatprep.subr.bf16.mxu0 %v1059
    %1561 = vmatpush1.bf16.msra.mxu0 %v1058
    %1562 = vmatprep.subr.bf16.mxu0 %v1063
    %1563 = vmatpush1.bf16.msra.mxu0 %v1062
    %1564 = vmatprep.subr.bf16.mxu0 %v1067
    %1565 = vmatpush1.bf16.msra.mxu0 %v1066
    %1566 = vmatprep.subr.bf16.mxu0 %v1071
    %1567 = vmatpush1.bf16.msra.mxu0 %v1070
    %1568 = vmatprep.subr.bf16.mxu0 %v1075
    %1569 = vmatpush1.bf16.msra.mxu0 %v1074
    %1570 = vmatprep.subr.bf16.mxu0 %v1079
    %1571 = vmatpush1.bf16.msra.mxu0 %v1078
    %1572 = vmatprep.subr.bf16.mxu0 %v1083
    %1573 = vmatpush1.bf16.msra.mxu0 %v1082
    %1574 = vmatprep.subr.bf16.mxu0 %v1087
    %1575 = vmatpush1.bf16.msra.mxu0 %v1086
    %1576 = vmatprep.subr.bf16.mxu0 %v1091
    %1577 = vmatpush1.bf16.msra.mxu0 %v1090
    %1578 = vmatprep.subr.bf16.mxu0 %v1095
    %1579 = vmatpush1.bf16.msra.mxu0 %v1094
    %1580 = vmatprep.subr.bf16.mxu0 %v1099
    %1581 = vmatpush1.bf16.msra.mxu0 %v1098
    %1582 = vmatprep.mubr.bf16.mxu0 %v122
    %1583 = vmatmul.mubr.bf16.gmra.mrb[0].mxu0 %v121
    %v1584 = vpop.f32.mrb[0].mxu0
    %v1585 = vadd.f32 %v1544, %v1584
    %v1586 = vpop.f32.mrb[0].mxu0
    %v1587 = vadd.f32 %v1546, %v1586
    %v1588 = vpop.f32.mrb[0].mxu0
    %v1589 = vpop.f32.mrb[0].mxu0
    %1590 = vdwg.mxu0
    %1591 = vmatprep.subr.bf16.mxu0 %v1103
    %1592 = vmatpush1.bf16.msra.mxu0 %v1102
    %1593 = vmatprep.subr.bf16.mxu0 0
    %1594 = vmatpush1.bf16.msra.mxu0 0
    %1595 = vmatprep.subr.bf16.mxu0 0
    %1596 = vmatpush1.bf16.msra.mxu0 0
    %1597 = vmatprep.subr.bf16.mxu0 0
    %1598 = vmatpush1.bf16.msra.mxu0 0
    %1599 = vmatprep.subr.bf16.mxu0 0
    %1600 = vmatpush1.bf16.msra.mxu0 0
    %1601 = vmatprep.subr.bf16.mxu0 0
    %1602 = vmatpush1.bf16.msra.mxu0 0
    %1603 = vmatprep.subr.bf16.mxu0 0
    %1604 = vmatpush1.bf16.msra.mxu0 0
    %1605 = vmatprep.subr.bf16.mxu0 0
    %1606 = vmatpush1.bf16.msra.mxu0 0
    %1607 = vmatprep.subr.bf16.mxu0 0
    %1608 = vmatpush1.bf16.msra.mxu0 0
    %1609 = vmatprep.subr.bf16.mxu0 0
    %1610 = vmatpush1.bf16.msra.mxu0 0
    %1611 = vmatprep.subr.bf16.mxu0 0
    %1612 = vmatpush1.bf16.msra.mxu0 0
    %1613 = vmatprep.subr.bf16.mxu0 0
    %1614 = vmatpush1.bf16.msra.mxu0 0
    %1615 = vmatprep.subr.bf16.mxu0 0
    %1616 = vmatpush1.bf16.msra.mxu0 0
    %1617 = vmatprep.subr.bf16.mxu0 0
    %1618 = vmatpush1.bf16.msra.mxu0 0
    %1619 = vmatprep.subr.bf16.mxu0 0
    %1620 = vmatpush1.bf16.msra.mxu0 0
    %1621 = vmatprep.subr.bf16.mxu0 0
    %1622 = vmatpush1.bf16.msra.mxu0 0
    %1623 = vmatprep.mubr.bf16.mxu0 0
    %1624 = vmatmul.mubr.bf16.gmra.mrb[0].mxu0 %v1302
    %v1625 = vpop.f32.mrb[0].mxu0
    %v1626 = vadd.f32 %v1585, %v1625
    %v1627 = vpop.f32.mrb[0].mxu0
    %v1628 = vadd.f32 %v1587, %v1627
    %v1629 = vpop.f32.mrb[0].mxu0
    %v1630 = vpop.f32.mrb[0].mxu0
    %1631 = vdwg.mxu0
    %v1632 = vpack.c.bf16 %v1462, %v1462
    %v1633 = vpack.c.bf16 %v1464, %v1464
    %v1634 = vpack.c.bf16 %v1626, %v1626
    %v1635 = vpack.c.bf16 %v1628, %v1628
    %v1638 = vunpack.c.l.b16 %v108
    %v1639 = vunpack.c.h.b16 %v108
    %v1640 = vunpack.c.l.b16 %v109
    %v1641 = vunpack.c.h.b16 %v109
    %v1642 = vpack.c.b16 %v1638, %v1638
    %v1643 = vpack.c.b16 %v1639, %v1639
    %v1644 = vpack.c.b16 %v1640, %v1640
    %v1645 = vpack.c.b16 %v1641, %v1641
    %v1647 = vpack.i.b16 %v1642, %v1642
    %v1649 = vlaneseq
    %v1650 = vshrl.u32 %v1649, 7
    %v1651 = vsub.s32 0, %v1650
    %v1652 = vrot.slane %v1647, %v1651
    %v1654 = vpack.i.b16 %v1643, %v1643
    %v1656 = vlaneseq
    %v1657 = vshrl.u32 %v1656, 7
    %v1658 = vsub.s32 0, %v1657
    %v1659 = vrot.slane %v1654, %v1658
    %v1661 = vpack.i.b16 %v1644, %v1644
    %v1663 = vlaneseq
    %v1664 = vshrl.u32 %v1663, 7
    %v1665 = vsub.s32 0, %v1664
    %v1666 = vrot.slane %v1661, %v1665
    %v1668 = vpack.i.b16 %v1645, %v1645
    %v1670 = vlaneseq
    %v1671 = vshrl.u32 %v1670, 7
    %v1672 = vsub.s32 0, %v1671
    %v1673 = vrot.slane %v1668, %v1672
    %v1674 = vadd.bf16 %v1632, %v1652
    %v1675 = vadd.bf16 %v1633, %v1659
    %v1676 = vadd.bf16 %v1634, %v1666
    %v1677 = vadd.bf16 %v1635, %v1673
    %v1678 = vmax.bf16 %v1674, 0
    %v1679 = vmax.bf16 %v1675, 0
    %v1680 = vmax.bf16 %v1676, 0
    %v1681 = vmax.bf16 %v1677, 0
    %v1682 = vld [vmem:[#allocation7] sm:$0xff]
    %v1683 = vld [vmem:[#allocation7 + $0x8] sm:$0xff]
    %v1684 = vld [vmem:[#allocation7 + $0x10] sm:$0xff]
    %v1685 = vld [vmem:[#allocation7 + $0x18] sm:$0xff]
    %v1686 = vld [vmem:[#allocation7 + $0x20] sm:$0xff]
    %v1687 = vld [vmem:[#allocation7 + $0x28] sm:$0xff]
    %v1688 = vld [vmem:[#allocation7 + $0x30] sm:$0xff]
    %v1689 = vld [vmem:[#allocation7 + $0x38] sm:$0xff]
    %v1690 = vld [vmem:[#allocation7 + $0x40] sm:$0xff]
    %v1691 = vld [vmem:[#allocation7 + $0x48] sm:$0xff]
    %v1692 = vld [vmem:[#allocation7 + $0x50] sm:$0xff]
    %v1693 = vld [vmem:[#allocation7 + $0x58] sm:$0xff]
    %v1694 = vld [vmem:[#allocation7 + $0x60] sm:$0xff]
    %v1695 = vld [vmem:[#allocation7 + $0x68] sm:$0xff]
    %v1696 = vld [vmem:[#allocation7 + $0x70] sm:$0xff]
    %v1697 = vld [vmem:[#allocation7 + $0x78] sm:$0xff]
    %v1698 = vld [vmem:[#allocation7 + $0x80] sm:$0xff]
    %v1699 = vld [vmem:[#allocation7 + $0x88] sm:$0xff]
    %v1700 = vld [vmem:[#allocation7 + $0x90] sm:$0xff]
    %v1701 = vld [vmem:[#allocation7 + $0x98] sm:$0xff]
    %v1702 = vld [vmem:[#allocation7 + $0xa0] sm:$0xff]
    %v1703 = vld [vmem:[#allocation7 + $0xa8] sm:$0xff]
    %v1704 = vld [vmem:[#allocation7 + $0xb0] sm:$0xff]
    %v1705 = vld [vmem:[#allocation7 + $0xb8] sm:$0xff]
    %v1706 = vld [vmem:[#allocation7 + $0xc0] sm:$0xff]
    %v1707 = vld [vmem:[#allocation7 + $0xc8] sm:$0xff]
    %v1708 = vld [vmem:[#allocation7 + $0xd0] sm:$0xff]
    %v1709 = vld [vmem:[#allocation7 + $0xd8] sm:$0xff]
    %v1710 = vld [vmem:[#allocation7 + $0xe0] sm:$0xff]
    %v1711 = vld [vmem:[#allocation7 + $0xe8] sm:$0xff]
    %v1712 = vld [vmem:[#allocation7 + $0xf0] sm:$0xff]
    %v1713 = vld [vmem:[#allocation7 + $0xf8] sm:$0xff]
    %v1714 = vld [vmem:[#allocation7 + $0x100] sm:$0xff]
    %v1715 = vld [vmem:[#allocation7 + $0x108] sm:$0xff]
    %v1716 = vld [vmem:[#allocation7 + $0x110] sm:$0xff]
    %v1717 = vld [vmem:[#allocation7 + $0x118] sm:$0xff]
    %v1718 = vld [vmem:[#allocation7 + $0x120] sm:$0xff]
    %v1719 = vld [vmem:[#allocation7 + $0x128] sm:$0xff]
    %v1720 = vld [vmem:[#allocation7 + $0x130] sm:$0xff]
    %v1721 = vld [vmem:[#allocation7 + $0x138] sm:$0xff]
    %v1722 = vld [vmem:[#allocation7 + $0x140] sm:$0xff]
    %v1723 = vld [vmem:[#allocation7 + $0x148] sm:$0xff]
    %v1724 = vld [vmem:[#allocation7 + $0x150] sm:$0xff]
    %v1725 = vld [vmem:[#allocation7 + $0x158] sm:$0xff]
    %v1726 = vld [vmem:[#allocation7 + $0x160] sm:$0xff]
    %v1727 = vld [vmem:[#allocation7 + $0x168] sm:$0xff]
    %v1728 = vld [vmem:[#allocation7 + $0x170] sm:$0xff]
    %v1729 = vld [vmem:[#allocation7 + $0x178] sm:$0xff]
    %v1730 = vld [vmem:[#allocation7 + $0x180] sm:$0xff]
    %v1731 = vld [vmem:[#allocation7 + $0x188] sm:$0xff]
    %v1732 = vld [vmem:[#allocation7 + $0x190] sm:$0xff]
    %v1733 = vld [vmem:[#allocation7 + $0x198] sm:$0xff]
    %v1734 = vld [vmem:[#allocation7 + $0x1a0] sm:$0xff]
    %v1735 = vld [vmem:[#allocation7 + $0x1a8] sm:$0xff]
    %v1736 = vld [vmem:[#allocation7 + $0x1b0] sm:$0xff]
    %v1737 = vld [vmem:[#allocation7 + $0x1b8] sm:$0xff]
    %v1738 = vld [vmem:[#allocation7 + $0x1c0] sm:$0xff]
    %v1739 = vld [vmem:[#allocation7 + $0x1c8] sm:$0xff]
    %v1740 = vld [vmem:[#allocation7 + $0x1d0] sm:$0xff]
    %v1741 = vld [vmem:[#allocation7 + $0x1d8] sm:$0xff]
    %v1742 = vld [vmem:[#allocation7 + $0x1e0] sm:$0xff]
    %v1743 = vld [vmem:[#allocation7 + $0x1e8] sm:$0xff]
    %v1744 = vld [vmem:[#allocation7 + $0x1f0] sm:$0xff]
    %v1745 = vld [vmem:[#allocation7 + $0x1f8] sm:$0xff]
    %v1746 = vld [vmem:[#allocation7 + $0x200] sm:$0xff]
    %v1747 = vld [vmem:[#allocation7 + $0x208] sm:$0xff]
    %v1748 = vld [vmem:[#allocation7 + $0x210] sm:$0xff]
    %v1749 = vld [vmem:[#allocation7 + $0x218] sm:$0xff]
    %v1750 = vld [vmem:[#allocation7 + $0x220] sm:$0xff]
    %v1751 = vld [vmem:[#allocation7 + $0x228] sm:$0xff]
    %v1752 = vld [vmem:[#allocation7 + $0x230] sm:$0xff]
    %v1753 = vld [vmem:[#allocation7 + $0x238] sm:$0xff]
    %v1754 = vld [vmem:[#allocation7 + $0x240] sm:$0xff]
    %v1755 = vld [vmem:[#allocation7 + $0x248] sm:$0xff]
    %v1756 = vld [vmem:[#allocation7 + $0x250] sm:$0xff]
    %v1757 = vld [vmem:[#allocation7 + $0x258] sm:$0xff]
    %v1758 = vld [vmem:[#allocation7 + $0x260] sm:$0xff]
    %v1759 = vld [vmem:[#allocation7 + $0x268] sm:$0xff]
    %v1760 = vld [vmem:[#allocation7 + $0x270] sm:$0xff]
    %v1761 = vld [vmem:[#allocation7 + $0x278] sm:$0xff]
    %v1762 = vld [vmem:[#allocation7 + $0x280] sm:$0xff]
    %v1763 = vld [vmem:[#allocation7 + $0x288] sm:$0xff]
    %v1764 = vld [vmem:[#allocation7 + $0x290] sm:$0xff]
    %v1765 = vld [vmem:[#allocation7 + $0x298] sm:$0xff]
    %v1766 = vld [vmem:[#allocation7 + $0x2a0] sm:$0xff]
    %v1767 = vld [vmem:[#allocation7 + $0x2a8] sm:$0xff]
    %v1768 = vld [vmem:[#allocation7 + $0x2b0] sm:$0xff]
    %v1769 = vld [vmem:[#allocation7 + $0x2b8] sm:$0xff]
    %v1770 = vld [vmem:[#allocation7 + $0x2c0] sm:$0xff]
    %v1771 = vld [vmem:[#allocation7 + $0x2c8] sm:$0xff]
    %v1772 = vld [vmem:[#allocation7 + $0x2d0] sm:$0xff]
    %v1773 = vld [vmem:[#allocation7 + $0x2d8] sm:$0xff]
    %v1774 = vld [vmem:[#allocation7 + $0x2e0] sm:$0xff]
    %v1775 = vld [vmem:[#allocation7 + $0x2e8] sm:$0xff]
    %v1776 = vld [vmem:[#allocation7 + $0x2f0] sm:$0xff]
    %v1777 = vld [vmem:[#allocation7 + $0x2f8] sm:$0xff]
    %v1778 = vld [vmem:[#allocation7 + $0x300] sm:$0xff]
    %v1779 = vld [vmem:[#allocation7 + $0x308] sm:$0xff]
    %v1780 = vld [vmem:[#allocation7 + $0x310] sm:$0xff]
    %v1781 = vld [vmem:[#allocation7 + $0x318] sm:$0xff]
    %v1782 = vld [vmem:[#allocation7 + $0x320] sm:$0xff]
    %v1783 = vld [vmem:[#allocation7 + $0x328] sm:$0xff]
    %v1784 = vld [vmem:[#allocation7 + $0x330] sm:$0xff]
    %v1785 = vld [vmem:[#allocation7 + $0x338] sm:$0xff]
    %v1786 = vld [vmem:[#allocation7 + $0x340] sm:$0xff]
    %v1787 = vld [vmem:[#allocation7 + $0x348] sm:$0xff]
    %v1788 = vld [vmem:[#allocation7 + $0x350] sm:$0xff]
    %v1789 = vld [vmem:[#allocation7 + $0x358] sm:$0xff]
    %v1790 = vld [vmem:[#allocation7 + $0x360] sm:$0xff]
    %v1791 = vld [vmem:[#allocation7 + $0x368] sm:$0xff]
    %v1792 = vld [vmem:[#allocation7 + $0x370] sm:$0xff]
    %v1793 = vld [vmem:[#allocation7 + $0x378] sm:$0xff]
    %v1794 = vld [vmem:[#allocation7 + $0x380] sm:$0xff]
    %v1795 = vld [vmem:[#allocation7 + $0x388] sm:$0xff]
    %v1796 = vld [vmem:[#allocation7 + $0x390] sm:$0xff]
    %v1797 = vld [vmem:[#allocation7 + $0x398] sm:$0xff]
    %v1798 = vld [vmem:[#allocation7 + $0x3a0] sm:$0xff]
    %v1799 = vld [vmem:[#allocation7 + $0x3a8] sm:$0xff]
    %v1800 = vld [vmem:[#allocation7 + $0x3b0] sm:$0xff]
    %v1801 = vld [vmem:[#allocation7 + $0x3b8] sm:$0xff]
    %v1802 = vld [vmem:[#allocation7 + $0x3c0] sm:$0xff]
    %v1803 = vld [vmem:[#allocation7 + $0x3c8] sm:$0xff]
    %v1804 = vld [vmem:[#allocation7 + $0x3d0] sm:$0xff]
    %v1805 = vld [vmem:[#allocation7 + $0x3d8] sm:$0xff]
    %v1806 = vld [vmem:[#allocation7 + $0x3e0] sm:$0xff]
    %v1807 = vld [vmem:[#allocation7 + $0x3e8] sm:$0xff]
    %v1808 = vld [vmem:[#allocation7 + $0x3f0] sm:$0xff]
    %v1809 = vld [vmem:[#allocation7 + $0x3f8] sm:$0xff]
    %v1938 = vunpack.c.l.b16 %v1682
    %v1939 = vunpack.c.h.b16 %v1682
    %v1940 = vunpack.c.l.b16 %v1683
    %v1941 = vunpack.c.h.b16 %v1683
    %v1942 = vunpack.c.l.b16 %v1684
    %v1943 = vunpack.c.h.b16 %v1684
    %v1944 = vunpack.c.l.b16 %v1685
    %v1945 = vunpack.c.h.b16 %v1685
    %v1946 = vunpack.c.l.b16 %v1686
    %v1947 = vunpack.c.h.b16 %v1686
    %v1948 = vunpack.c.l.b16 %v1687
    %v1949 = vunpack.c.h.b16 %v1687
    %v1950 = vunpack.c.l.b16 %v1688
    %v1951 = vunpack.c.h.b16 %v1688
    %v1952 = vunpack.c.l.b16 %v1689
    %v1953 = vunpack.c.h.b16 %v1689
    %v1954 = vunpack.c.l.b16 %v1690
    %v1955 = vunpack.c.h.b16 %v1690
    %v1956 = vunpack.c.l.b16 %v1691
    %v1957 = vunpack.c.h.b16 %v1691
    %v1958 = vunpack.c.l.b16 %v1692
    %v1959 = vunpack.c.h.b16 %v1692
    %v1960 = vunpack.c.l.b16 %v1693
    %v1961 = vunpack.c.h.b16 %v1693
    %v1962 = vunpack.c.l.b16 %v1694
    %v1963 = vunpack.c.h.b16 %v1694
    %v1964 = vunpack.c.l.b16 %v1695
    %v1965 = vunpack.c.h.b16 %v1695
    %v1966 = vunpack.c.l.b16 %v1696
    %v1967 = vunpack.c.h.b16 %v1696
    %v1968 = vunpack.c.l.b16 %v1697
    %v1969 = vunpack.c.h.b16 %v1697
    %v1970 = vunpack.c.l.b16 %v1698
    %v1971 = vunpack.c.h.b16 %v1698
    %v1972 = vunpack.c.l.b16 %v1699
    %v1973 = vunpack.c.h.b16 %v1699
    %v1974 = vunpack.c.l.b16 %v1700
    %v1975 = vunpack.c.h.b16 %v1700
    %v1976 = vunpack.c.l.b16 %v1701
    %v1977 = vunpack.c.h.b16 %v1701
    %v1978 = vunpack.c.l.b16 %v1702
    %v1979 = vunpack.c.h.b16 %v1702
    %v1980 = vunpack.c.l.b16 %v1703
    %v1981 = vunpack.c.h.b16 %v1703
    %v1982 = vunpack.c.l.b16 %v1704
    %v1983 = vunpack.c.h.b16 %v1704
    %v1984 = vunpack.c.l.b16 %v1705
    %v1985 = vunpack.c.h.b16 %v1705
    %v1986 = vunpack.c.l.b16 %v1706
    %v1987 = vunpack.c.h.b16 %v1706
    %v1988 = vunpack.c.l.b16 %v1707
    %v1989 = vunpack.c.h.b16 %v1707
    %v1990 = vunpack.c.l.b16 %v1708
    %v1991 = vunpack.c.h.b16 %v1708
    %v1992 = vunpack.c.l.b16 %v1709
    %v1993 = vunpack.c.h.b16 %v1709
    %v1994 = vunpack.c.l.b16 %v1710
    %v1995 = vunpack.c.h.b16 %v1710
    %v1996 = vunpack.c.l.b16 %v1711
    %v1997 = vunpack.c.h.b16 %v1711
    %v1998 = vunpack.c.l.b16 %v1712
    %v1999 = vunpack.c.h.b16 %v1712
    %v2000 = vunpack.c.l.b16 %v1713
    %v2001 = vunpack.c.h.b16 %v1713
    %v2002 = vunpack.c.l.b16 %v1714
    %v2003 = vunpack.c.h.b16 %v1714
    %v2004 = vunpack.c.l.b16 %v1715
    %v2005 = vunpack.c.h.b16 %v1715
    %v2006 = vunpack.c.l.b16 %v1716
    %v2007 = vunpack.c.h.b16 %v1716
    %v2008 = vunpack.c.l.b16 %v1717
    %v2009 = vunpack.c.h.b16 %v1717
    %v2010 = vunpack.c.l.b16 %v1718
    %v2011 = vunpack.c.h.b16 %v1718
    %v2012 = vunpack.c.l.b16 %v1719
    %v2013 = vunpack.c.h.b16 %v1719
    %v2014 = vunpack.c.l.b16 %v1720
    %v2015 = vunpack.c.h.b16 %v1720
    %v2016 = vunpack.c.l.b16 %v1721
    %v2017 = vunpack.c.h.b16 %v1721
    %v2018 = vunpack.c.l.b16 %v1722
    %v2019 = vunpack.c.h.b16 %v1722
    %v2020 = vunpack.c.l.b16 %v1723
    %v2021 = vunpack.c.h.b16 %v1723
    %v2022 = vunpack.c.l.b16 %v1724
    %v2023 = vunpack.c.h.b16 %v1724
    %v2024 = vunpack.c.l.b16 %v1725
    %v2025 = vunpack.c.h.b16 %v1725
    %v2026 = vunpack.c.l.b16 %v1726
    %v2027 = vunpack.c.h.b16 %v1726
    %v2028 = vunpack.c.l.b16 %v1727
    %v2029 = vunpack.c.h.b16 %v1727
    %v2030 = vunpack.c.l.b16 %v1728
    %v2031 = vunpack.c.h.b16 %v1728
    %v2032 = vunpack.c.l.b16 %v1729
    %v2033 = vunpack.c.h.b16 %v1729
    %v2034 = vunpack.c.l.b16 %v1730
    %v2035 = vunpack.c.h.b16 %v1730
    %v2036 = vunpack.c.l.b16 %v1731
    %v2037 = vunpack.c.h.b16 %v1731
    %v2038 = vunpack.c.l.b16 %v1732
    %v2039 = vunpack.c.h.b16 %v1732
    %v2040 = vunpack.c.l.b16 %v1733
    %v2041 = vunpack.c.h.b16 %v1733
    %v2042 = vunpack.c.l.b16 %v1734
    %v2043 = vunpack.c.h.b16 %v1734
    %v2044 = vunpack.c.l.b16 %v1735
    %v2045 = vunpack.c.h.b16 %v1735
    %v2046 = vunpack.c.l.b16 %v1736
    %v2047 = vunpack.c.h.b16 %v1736
    %v2048 = vunpack.c.l.b16 %v1737
    %v2049 = vunpack.c.h.b16 %v1737
    %v2050 = vunpack.c.l.b16 %v1738
    %v2051 = vunpack.c.h.b16 %v1738
    %v2052 = vunpack.c.l.b16 %v1739
    %v2053 = vunpack.c.h.b16 %v1739
    %v2054 = vunpack.c.l.b16 %v1740
    %v2055 = vunpack.c.h.b16 %v1740
    %v2056 = vunpack.c.l.b16 %v1741
    %v2057 = vunpack.c.h.b16 %v1741
    %v2058 = vunpack.c.l.b16 %v1742
    %v2059 = vunpack.c.h.b16 %v1742
    %v2060 = vunpack.c.l.b16 %v1743
    %v2061 = vunpack.c.h.b16 %v1743
    %v2062 = vunpack.c.l.b16 %v1744
    %v2063 = vunpack.c.h.b16 %v1744
    %v2064 = vunpack.c.l.b16 %v1745
    %v2065 = vunpack.c.h.b16 %v1745
    %v2066 = vunpack.c.l.b16 %v1746
    %v2067 = vunpack.c.h.b16 %v1746
    %v2068 = vunpack.c.l.b16 %v1747
    %v2069 = vunpack.c.h.b16 %v1747
    %v2070 = vunpack.c.l.b16 %v1748
    %v2071 = vunpack.c.h.b16 %v1748
    %v2072 = vunpack.c.l.b16 %v1749
    %v2073 = vunpack.c.h.b16 %v1749
    %v2074 = vunpack.c.l.b16 %v1750
    %v2075 = vunpack.c.h.b16 %v1750
    %v2076 = vunpack.c.l.b16 %v1751
    %v2077 = vunpack.c.h.b16 %v1751
    %v2078 = vunpack.c.l.b16 %v1752
    %v2079 = vunpack.c.h.b16 %v1752
    %v2080 = vunpack.c.l.b16 %v1753
    %v2081 = vunpack.c.h.b16 %v1753
    %v2082 = vunpack.c.l.b16 %v1754
    %v2083 = vunpack.c.h.b16 %v1754
    %v2084 = vunpack.c.l.b16 %v1755
    %v2085 = vunpack.c.h.b16 %v1755
    %v2086 = vunpack.c.l.b16 %v1756
    %v2087 = vunpack.c.h.b16 %v1756
    %v2088 = vunpack.c.l.b16 %v1757
    %v2089 = vunpack.c.h.b16 %v1757
    %v2090 = vunpack.c.l.b16 %v1758
    %v2091 = vunpack.c.h.b16 %v1758
    %v2092 = vunpack.c.l.b16 %v1759
    %v2093 = vunpack.c.h.b16 %v1759
    %v2094 = vunpack.c.l.b16 %v1760
    %v2095 = vunpack.c.h.b16 %v1760
    %v2096 = vunpack.c.l.b16 %v1761
    %v2097 = vunpack.c.h.b16 %v1761
    %v2098 = vunpack.c.l.b16 %v1762
    %v2099 = vunpack.c.h.b16 %v1762
    %v2100 = vunpack.c.l.b16 %v1763
    %v2101 = vunpack.c.h.b16 %v1763
    %v2102 = vunpack.c.l.b16 %v1764
    %v2103 = vunpack.c.h.b16 %v1764
    %v2104 = vunpack.c.l.b16 %v1765
    %v2105 = vunpack.c.h.b16 %v1765
    %v2106 = vunpack.c.l.b16 %v1766
    %v2107 = vunpack.c.h.b16 %v1766
    %v2108 = vunpack.c.l.b16 %v1767
    %v2109 = vunpack.c.h.b16 %v1767
    %v2110 = vunpack.c.l.b16 %v1768
    %v2111 = vunpack.c.h.b16 %v1768
    %v2112 = vunpack.c.l.b16 %v1769
    %v2113 = vunpack.c.h.b16 %v1769
    %v2114 = vunpack.c.l.b16 %v1770
    %v2115 = vunpack.c.h.b16 %v1770
    %v2116 = vunpack.c.l.b16 %v1771
    %v2117 = vunpack.c.h.b16 %v1771
    %v2118 = vunpack.c.l.b16 %v1772
    %v2119 = vunpack.c.h.b16 %v1772
    %v2120 = vunpack.c.l.b16 %v1773
    %v2121 = vunpack.c.h.b16 %v1773
    %v2122 = vunpack.c.l.b16 %v1774
    %v2123 = vunpack.c.h.b16 %v1774
    %v2124 = vunpack.c.l.b16 %v1775
    %v2125 = vunpack.c.h.b16 %v1775
    %v2126 = vunpack.c.l.b16 %v1776
    %v2127 = vunpack.c.h.b16 %v1776
    %v2128 = vunpack.c.l.b16 %v1777
    %v2129 = vunpack.c.h.b16 %v1777
    %v2130 = vunpack.c.l.b16 %v1778
    %v2131 = vunpack.c.h.b16 %v1778
    %v2132 = vunpack.c.l.b16 %v1779
    %v2133 = vunpack.c.h.b16 %v1779
    %v2134 = vunpack.c.l.b16 %v1780
    %v2135 = vunpack.c.h.b16 %v1780
    %v2136 = vunpack.c.l.b16 %v1781
    %v2137 = vunpack.c.h.b16 %v1781
    %v2138 = vunpack.c.l.b16 %v1782
    %v2139 = vunpack.c.h.b16 %v1782
    %v2140 = vunpack.c.l.b16 %v1783
    %v2141 = vunpack.c.h.b16 %v1783
    %v2142 = vunpack.c.l.b16 %v1784
    %v2143 = vunpack.c.h.b16 %v1784
    %v2144 = vunpack.c.l.b16 %v1785
    %v2145 = vunpack.c.h.b16 %v1785
    %v2146 = vunpack.c.l.b16 %v1786
    %v2147 = vunpack.c.h.b16 %v1786
    %v2148 = vunpack.c.l.b16 %v1787
    %v2149 = vunpack.c.h.b16 %v1787
    %v2150 = vunpack.c.l.b16 %v1788
    %v2151 = vunpack.c.h.b16 %v1788
    %v2152 = vunpack.c.l.b16 %v1789
    %v2153 = vunpack.c.h.b16 %v1789
    %v2154 = vunpack.c.l.b16 %v1790
    %v2155 = vunpack.c.h.b16 %v1790
    %v2156 = vunpack.c.l.b16 %v1791
    %v2157 = vunpack.c.h.b16 %v1791
    %v2158 = vunpack.c.l.b16 %v1792
    %v2159 = vunpack.c.h.b16 %v1792
    %v2160 = vunpack.c.l.b16 %v1793
    %v2161 = vunpack.c.h.b16 %v1793
    %v2162 = vunpack.c.l.b16 %v1794
    %v2163 = vunpack.c.h.b16 %v1794
    %v2164 = vunpack.c.l.b16 %v1795
    %v2165 = vunpack.c.h.b16 %v1795
    %v2166 = vunpack.c.l.b16 %v1796
    %v2167 = vunpack.c.h.b16 %v1796
    %v2168 = vunpack.c.l.b16 %v1797
    %v2169 = vunpack.c.h.b16 %v1797
    %v2170 = vunpack.c.l.b16 %v1798
    %v2171 = vunpack.c.h.b16 %v1798
    %v2172 = vunpack.c.l.b16 %v1799
    %v2173 = vunpack.c.h.b16 %v1799
    %v2174 = vunpack.c.l.b16 %v1800
    %v2175 = vunpack.c.h.b16 %v1800
    %v2176 = vunpack.c.l.b16 %v1801
    %v2177 = vunpack.c.h.b16 %v1801
    %v2178 = vunpack.c.l.b16 %v1802
    %v2179 = vunpack.c.h.b16 %v1802
    %v2180 = vunpack.c.l.b16 %v1803
    %v2181 = vunpack.c.h.b16 %v1803
    %v2182 = vunpack.c.l.b16 %v1804
    %v2183 = vunpack.c.h.b16 %v1804
    %v2184 = vunpack.c.l.b16 %v1805
    %v2185 = vunpack.c.h.b16 %v1805
    %v2186 = vunpack.c.l.b16 %v1806
    %v2187 = vunpack.c.h.b16 %v1806
    %v2188 = vunpack.c.l.b16 %v1807
    %v2189 = vunpack.c.h.b16 %v1807
    %v2190 = vunpack.c.l.b16 %v1808
    %v2191 = vunpack.c.h.b16 %v1808
    %v2192 = vunpack.c.l.b16 %v1809
    %v2193 = vunpack.c.h.b16 %v1809
    %v2194 = vpack.c.b16 %v1942, %v1938
    %v2195 = vpack.c.b16 %v1943, %v1939
    %v2196 = vpack.c.b16 %v1944, %v1940
    %v2197 = vpack.c.b16 %v1945, %v1941
    %v2198 = vpack.c.b16 %v1950, %v1946
    %v2199 = vpack.c.b16 %v1951, %v1947
    %v2200 = vpack.c.b16 %v1952, %v1948
    %v2201 = vpack.c.b16 %v1953, %v1949
    %v2202 = vpack.c.b16 %v1958, %v1954
    %v2203 = vpack.c.b16 %v1959, %v1955
    %v2204 = vpack.c.b16 %v1960, %v1956
    %v2205 = vpack.c.b16 %v1961, %v1957
    %v2206 = vpack.c.b16 %v1966, %v1962
    %v2207 = vpack.c.b16 %v1967, %v1963
    %v2208 = vpack.c.b16 %v1968, %v1964
    %v2209 = vpack.c.b16 %v1969, %v1965
    %v2210 = vpack.c.b16 %v1974, %v1970
    %v2211 = vpack.c.b16 %v1975, %v1971
    %v2212 = vpack.c.b16 %v1976, %v1972
    %v2213 = vpack.c.b16 %v1977, %v1973
    %v2214 = vpack.c.b16 %v1982, %v1978
    %v2215 = vpack.c.b16 %v1983, %v1979
    %v2216 = vpack.c.b16 %v1984, %v1980
    %v2217 = vpack.c.b16 %v1985, %v1981
    %v2218 = vpack.c.b16 %v1990, %v1986
    %v2219 = vpack.c.b16 %v1991, %v1987
    %v2220 = vpack.c.b16 %v1992, %v1988
    %v2221 = vpack.c.b16 %v1993, %v1989
    %v2222 = vpack.c.b16 %v1998, %v1994
    %v2223 = vpack.c.b16 %v1999, %v1995
    %v2224 = vpack.c.b16 %v2000, %v1996
    %v2225 = vpack.c.b16 %v2001, %v1997
    %v2226 = vpack.c.b16 %v2006, %v2002
    %v2227 = vpack.c.b16 %v2007, %v2003
    %v2228 = vpack.c.b16 %v2008, %v2004
    %v2229 = vpack.c.b16 %v2009, %v2005
    %v2230 = vpack.c.b16 %v2014, %v2010
    %v2231 = vpack.c.b16 %v2015, %v2011
    %v2232 = vpack.c.b16 %v2016, %v2012
    %v2233 = vpack.c.b16 %v2017, %v2013
    %v2234 = vpack.c.b16 %v2022, %v2018
    %v2235 = vpack.c.b16 %v2023, %v2019
    %v2236 = vpack.c.b16 %v2024, %v2020
    %v2237 = vpack.c.b16 %v2025, %v2021
    %v2238 = vpack.c.b16 %v2030, %v2026
    %v2239 = vpack.c.b16 %v2031, %v2027
    %v2240 = vpack.c.b16 %v2032, %v2028
    %v2241 = vpack.c.b16 %v2033, %v2029
    %v2242 = vpack.c.b16 %v2038, %v2034
    %v2243 = vpack.c.b16 %v2039, %v2035
    %v2244 = vpack.c.b16 %v2040, %v2036
    %v2245 = vpack.c.b16 %v2041, %v2037
    %v2246 = vpack.c.b16 %v2046, %v2042
    %v2247 = vpack.c.b16 %v2047, %v2043
    %v2248 = vpack.c.b16 %v2048, %v2044
    %v2249 = vpack.c.b16 %v2049, %v2045
    %v2250 = vpack.c.b16 %v2054, %v2050
    %v2251 = vpack.c.b16 %v2055, %v2051
    %v2252 = vpack.c.b16 %v2056, %v2052
    %v2253 = vpack.c.b16 %v2057, %v2053
    %v2254 = vpack.c.b16 %v2062, %v2058
    %v2255 = vpack.c.b16 %v2063, %v2059
    %v2256 = vpack.c.b16 %v2064, %v2060
    %v2257 = vpack.c.b16 %v2065, %v2061
    %v2258 = vpack.c.b16 %v2070, %v2066
    %v2259 = vpack.c.b16 %v2071, %v2067
    %v2260 = vpack.c.b16 %v2072, %v2068
    %v2261 = vpack.c.b16 %v2073, %v2069
    %v2262 = vpack.c.b16 %v2078, %v2074
    %v2263 = vpack.c.b16 %v2079, %v2075
    %v2264 = vpack.c.b16 %v2080, %v2076
    %v2265 = vpack.c.b16 %v2081, %v2077
    %v2266 = vpack.c.b16 %v2086, %v2082
    %v2267 = vpack.c.b16 %v2087, %v2083
    %v2268 = vpack.c.b16 %v2088, %v2084
    %v2269 = vpack.c.b16 %v2089, %v2085
    %v2270 = vpack.c.b16 %v2094, %v2090
    %v2271 = vpack.c.b16 %v2095, %v2091
    %v2272 = vpack.c.b16 %v2096, %v2092
    %v2273 = vpack.c.b16 %v2097, %v2093
    %v2274 = vpack.c.b16 %v2102, %v2098
    %v2275 = vpack.c.b16 %v2103, %v2099
    %v2276 = vpack.c.b16 %v2104, %v2100
    %v2277 = vpack.c.b16 %v2105, %v2101
    %v2278 = vpack.c.b16 %v2110, %v2106
    %v2279 = vpack.c.b16 %v2111, %v2107
    %v2280 = vpack.c.b16 %v2112, %v2108
    %v2281 = vpack.c.b16 %v2113, %v2109
    %v2282 = vpack.c.b16 %v2118, %v2114
    %v2283 = vpack.c.b16 %v2119, %v2115
    %v2284 = vpack.c.b16 %v2120, %v2116
    %v2285 = vpack.c.b16 %v2121, %v2117
    %v2286 = vpack.c.b16 %v2126, %v2122
    %v2287 = vpack.c.b16 %v2127, %v2123
    %v2288 = vpack.c.b16 %v2128, %v2124
    %v2289 = vpack.c.b16 %v2129, %v2125
    %v2290 = vpack.c.b16 %v2134, %v2130
    %v2291 = vpack.c.b16 %v2135, %v2131
    %v2292 = vpack.c.b16 %v2136, %v2132
    %v2293 = vpack.c.b16 %v2137, %v2133
    %v2294 = vpack.c.b16 %v2142, %v2138
    %v2295 = vpack.c.b16 %v2143, %v2139
    %v2296 = vpack.c.b16 %v2144, %v2140
    %v2297 = vpack.c.b16 %v2145, %v2141
    %v2298 = vpack.c.b16 %v2150, %v2146
    %v2299 = vpack.c.b16 %v2151, %v2147
    %v2300 = vpack.c.b16 %v2152, %v2148
    %v2301 = vpack.c.b16 %v2153, %v2149
    %v2302 = vpack.c.b16 %v2158, %v2154
    %v2303 = vpack.c.b16 %v2159, %v2155
    %v2304 = vpack.c.b16 %v2160, %v2156
    %v2305 = vpack.c.b16 %v2161, %v2157
    %v2306 = vpack.c.b16 %v2166, %v2162
    %v2307 = vpack.c.b16 %v2167, %v2163
    %v2308 = vpack.c.b16 %v2168, %v2164
    %v2309 = vpack.c.b16 %v2169, %v2165
    %v2310 = vpack.c.b16 %v2174, %v2170
    %v2311 = vpack.c.b16 %v2175, %v2171
    %v2312 = vpack.c.b16 %v2176, %v2172
    %v2313 = vpack.c.b16 %v2177, %v2173
    %v2314 = vpack.c.b16 %v2182, %v2178
    %v2315 = vpack.c.b16 %v2183, %v2179
    %v2316 = vpack.c.b16 %v2184, %v2180
    %v2317 = vpack.c.b16 %v2185, %v2181
    %v2318 = vpack.c.b16 %v2190, %v2186
    %v2319 = vpack.c.b16 %v2191, %v2187
    %v2320 = vpack.c.b16 %v2192, %v2188
    %v2321 = vpack.c.b16 %v2193, %v2189
    %2450 = vmatprep.subr.bf16.mxu0 %v2195
    %2451 = vmatpush1.bf16.msra.mxu0 %v2194
    %2452 = vmatprep.subr.bf16.mxu0 %v2199
    %2453 = vmatpush1.bf16.msra.mxu0 %v2198
    %2454 = vmatprep.subr.bf16.mxu0 %v2203
    %2455 = vmatpush1.bf16.msra.mxu0 %v2202
    %2456 = vmatprep.subr.bf16.mxu0 %v2207
    %2457 = vmatpush1.bf16.msra.mxu0 %v2206
    %2458 = vmatprep.subr.bf16.mxu0 %v2211
    %2459 = vmatpush1.bf16.msra.mxu0 %v2210
    %2460 = vmatprep.subr.bf16.mxu0 %v2215
    %2461 = vmatpush1.bf16.msra.mxu0 %v2214
    %2462 = vmatprep.subr.bf16.mxu0 %v2219
    %2463 = vmatpush1.bf16.msra.mxu0 %v2218
    %2464 = vmatprep.subr.bf16.mxu0 %v2223
    %2465 = vmatpush1.bf16.msra.mxu0 %v2222
    %2466 = vmatprep.subr.bf16.mxu0 %v2227
    %2467 = vmatpush1.bf16.msra.mxu0 %v2226
    %2468 = vmatprep.subr.bf16.mxu0 %v2231
    %2469 = vmatpush1.bf16.msra.mxu0 %v2230
    %2470 = vmatprep.subr.bf16.mxu0 %v2235
    %2471 = vmatpush1.bf16.msra.mxu0 %v2234
    %2472 = vmatprep.subr.bf16.mxu0 %v2239
    %2473 = vmatpush1.bf16.msra.mxu0 %v2238
    %2474 = vmatprep.subr.bf16.mxu0 %v2243
    %2475 = vmatpush1.bf16.msra.mxu0 %v2242
    %2476 = vmatprep.subr.bf16.mxu0 %v2247
    %2477 = vmatpush1.bf16.msra.mxu0 %v2246
    %2478 = vmatprep.subr.bf16.mxu0 %v2251
    %2479 = vmatpush1.bf16.msra.mxu0 %v2250
    %2480 = vmatprep.subr.bf16.mxu0 %v2255
    %2481 = vmatpush1.bf16.msra.mxu0 %v2254
    %2482 = vmatprep.mubr.bf16.mxu0 %v1679
    %2483 = vmatmul.mubr.bf16.gmra.mrb[0].mxu0 %v1678
    %v2484 = vpop.f32.mrb[0].mxu0
    %v2485 = vadd.f32 0.0, %v2484
    %v2486 = vpop.f32.mrb[0].mxu0
    %v2487 = vadd.f32 0.0, %v2486
    %v2488 = vpop.f32.mrb[0].mxu0
    %v2489 = vpop.f32.mrb[0].mxu0
    %2490 = vdwg.mxu0
    %2491 = vmatprep.subr.bf16.mxu0 %v2259
    %2492 = vmatpush1.bf16.msra.mxu0 %v2258
    %2493 = vmatprep.subr.bf16.mxu0 %v2263
    %2494 = vmatpush1.bf16.msra.mxu0 %v2262
    %2495 = vmatprep.subr.bf16.mxu0 %v2267
    %2496 = vmatpush1.bf16.msra.mxu0 %v2266
    %2497 = vmatprep.subr.bf16.mxu0 %v2271
    %2498 = vmatpush1.bf16.msra.mxu0 %v2270
    %2499 = vmatprep.subr.bf16.mxu0 %v2275
    %2500 = vmatpush1.bf16.msra.mxu0 %v2274
    %2501 = vmatprep.subr.bf16.mxu0 %v2279
    %2502 = vmatpush1.bf16.msra.mxu0 %v2278
    %2503 = vmatprep.subr.bf16.mxu0 %v2283
    %2504 = vmatpush1.bf16.msra.mxu0 %v2282
    %2505 = vmatprep.subr.bf16.mxu0 %v2287
    %2506 = vmatpush1.bf16.msra.mxu0 %v2286
    %2507 = vmatprep.subr.bf16.mxu0 %v2291
    %2508 = vmatpush1.bf16.msra.mxu0 %v2290
    %2509 = vmatprep.subr.bf16.mxu0 %v2295
    %2510 = vmatpush1.bf16.msra.mxu0 %v2294
    %2511 = vmatprep.subr.bf16.mxu0 %v2299
    %2512 = vmatpush1.bf16.msra.mxu0 %v2298
    %2513 = vmatprep.subr.bf16.mxu0 %v2303
    %2514 = vmatpush1.bf16.msra.mxu0 %v2302
    %2515 = vmatprep.subr.bf16.mxu0 %v2307
    %2516 = vmatpush1.bf16.msra.mxu0 %v2306
    %2517 = vmatprep.subr.bf16.mxu0 %v2311
    %2518 = vmatpush1.bf16.msra.mxu0 %v2310
    %2519 = vmatprep.subr.bf16.mxu0 %v2315
    %2520 = vmatpush1.bf16.msra.mxu0 %v2314
    %2521 = vmatprep.subr.bf16.mxu0 %v2319
    %2522 = vmatpush1.bf16.msra.mxu0 %v2318
    %2523 = vmatprep.mubr.bf16.mxu0 %v1681
    %2524 = vmatmul.mubr.bf16.gmra.mrb[0].mxu0 %v1680
    %v2525 = vpop.f32.mrb[0].mxu0
    %v2526 = vadd.f32 %v2485, %v2525
    %v2527 = vpop.f32.mrb[0].mxu0
    %v2528 = vadd.f32 %v2487, %v2527
    %v2529 = vpop.f32.mrb[0].mxu0
    %v2530 = vpop.f32.mrb[0].mxu0
    %2531 = vdwg.mxu0
    %2532 = vmatprep.subr.bf16.mxu0 %v2197
    %2533 = vmatpush1.bf16.msra.mxu0 %v2196
    %2534 = vmatprep.subr.bf16.mxu0 %v2201
    %2535 = vmatpush1.bf16.msra.mxu0 %v2200
    %2536 = vmatprep.subr.bf16.mxu0 %v2205
    %2537 = vmatpush1.bf16.msra.mxu0 %v2204
    %2538 = vmatprep.subr.bf16.mxu0 %v2209
    %2539 = vmatpush1.bf16.msra.mxu0 %v2208
    %2540 = vmatprep.subr.bf16.mxu0 %v2213
    %2541 = vmatpush1.bf16.msra.mxu0 %v2212
    %2542 = vmatprep.subr.bf16.mxu0 %v2217
    %2543 = vmatpush1.bf16.msra.mxu0 %v2216
    %2544 = vmatprep.subr.bf16.mxu0 %v2221
    %2545 = vmatpush1.bf16.msra.mxu0 %v2220
    %2546 = vmatprep.subr.bf16.mxu0 %v2225
    %2547 = vmatpush1.bf16.msra.mxu0 %v2224
    %2548 = vmatprep.subr.bf16.mxu0 %v2229
    %2549 = vmatpush1.bf16.msra.mxu0 %v2228
    %2550 = vmatprep.subr.bf16.mxu0 %v2233
    %2551 = vmatpush1.bf16.msra.mxu0 %v2232
    %2552 = vmatprep.subr.bf16.mxu0 %v2237
    %2553 = vmatpush1.bf16.msra.mxu0 %v2236
    %2554 = vmatprep.subr.bf16.mxu0 %v2241
    %2555 = vmatpush1.bf16.msra.mxu0 %v2240
    %2556 = vmatprep.subr.bf16.mxu0 %v2245
    %2557 = vmatpush1.bf16.msra.mxu0 %v2244
    %2558 = vmatprep.subr.bf16.mxu0 %v2249
    %2559 = vmatpush1.bf16.msra.mxu0 %v2248
    %2560 = vmatprep.subr.bf16.mxu0 %v2253
    %2561 = vmatpush1.bf16.msra.mxu0 %v2252
    %2562 = vmatprep.subr.bf16.mxu0 %v2257
    %2563 = vmatpush1.bf16.msra.mxu0 %v2256
    %2564 = vmatprep.mubr.bf16.mxu0 %v1679
    %2565 = vmatmul.mubr.bf16.gmra.mrb[0].mxu0 %v1678
    %v2566 = vpop.f32.mrb[0].mxu0
    %v2567 = vadd.f32 0.0, %v2566
    %v2568 = vpop.f32.mrb[0].mxu0
    %v2569 = vadd.f32 0.0, %v2568
    %v2570 = vpop.f32.mrb[0].mxu0
    %v2571 = vpop.f32.mrb[0].mxu0
    %2572 = vdwg.mxu0
    %2573 = vmatprep.subr.bf16.mxu0 %v2261
    %2574 = vmatpush1.bf16.msra.mxu0 %v2260
    %2575 = vmatprep.subr.bf16.mxu0 %v2265
    %2576 = vmatpush1.bf16.msra.mxu0 %v2264
    %2577 = vmatprep.subr.bf16.mxu0 %v2269
    %2578 = vmatpush1.bf16.msra.mxu0 %v2268
    %2579 = vmatprep.subr.bf16.mxu0 %v2273
    %2580 = vmatpush1.bf16.msra.mxu0 %v2272
    %2581 = vmatprep.subr.bf16.mxu0 %v2277
    %2582 = vmatpush1.bf16.msra.mxu0 %v2276
    %2583 = vmatprep.subr.bf16.mxu0 %v2281
    %2584 = vmatpush1.bf16.msra.mxu0 %v2280
    %2585 = vmatprep.subr.bf16.mxu0 %v2285
    %2586 = vmatpush1.bf16.msra.mxu0 %v2284
    %2587 = vmatprep.subr.bf16.mxu0 %v2289
    %2588 = vmatpush1.bf16.msra.mxu0 %v2288
    %2589 = vmatprep.subr.bf16.mxu0 %v2293
    %2590 = vmatpush1.bf16.msra.mxu0 %v2292
    %2591 = vmatprep.subr.bf16.mxu0 %v2297
    %2592 = vmatpush1.bf16.msra.mxu0 %v2296
    %2593 = vmatprep.subr.bf16.mxu0 %v2301
    %2594 = vmatpush1.bf16.msra.mxu0 %v2300
    %2595 = vmatprep.subr.bf16.mxu0 %v2305
    %2596 = vmatpush1.bf16.msra.mxu0 %v2304
    %2597 = vmatprep.subr.bf16.mxu0 %v2309
    %2598 = vmatpush1.bf16.msra.mxu0 %v2308
    %2599 = vmatprep.subr.bf16.mxu0 %v2313
    %2600 = vmatpush1.bf16.msra.mxu0 %v2312
    %2601 = vmatprep.subr.bf16.mxu0 %v2317
    %2602 = vmatpush1.bf16.msra.mxu0 %v2316
    %2603 = vmatprep.subr.bf16.mxu0 %v2321
    %2604 = vmatpush1.bf16.msra.mxu0 %v2320
    %2605 = vmatprep.mubr.bf16.mxu0 %v1681
    %2606 = vmatmul.mubr.bf16.gmra.mrb[0].mxu0 %v1680
    %v2607 = vpop.f32.mrb[0].mxu0
    %v2608 = vadd.f32 %v2567, %v2607
    %v2609 = vpop.f32.mrb[0].mxu0
    %v2610 = vadd.f32 %v2569, %v2609
    %v2611 = vpop.f32.mrb[0].mxu0
    %v2612 = vpop.f32.mrb[0].mxu0
    %2613 = vdwg.mxu0
    %v2614 = vpack.c.bf16 %v2526, %v2526
    %v2615 = vpack.c.bf16 %v2528, %v2528
    %v2616 = vpack.c.bf16 %v2608, %v2608
    %v2617 = vpack.c.bf16 %v2610, %v2610
    %v2618 = vshrl.u32 %v1642, 16
    %v2619 = vpack.i.b16 %v2618, %v2618
    %v2621 = vlaneseq
    %v2622 = vshrl.u32 %v2621, 7
    %v2623 = vsub.s32 0, %v2622
    %v2624 = vrot.slane %v2619, %v2623
    %v2625 = vshrl.u32 %v1643, 16
    %v2626 = vpack.i.b16 %v2625, %v2625
    %v2628 = vlaneseq
    %v2629 = vshrl.u32 %v2628, 7
    %v2630 = vsub.s32 0, %v2629
    %v2631 = vrot.slane %v2626, %v2630
    %v2632 = vshrl.u32 %v1644, 16
    %v2633 = vpack.i.b16 %v2632, %v2632
    %v2635 = vlaneseq
    %v2636 = vshrl.u32 %v2635, 7
    %v2637 = vsub.s32 0, %v2636
    %v2638 = vrot.slane %v2633, %v2637
    %v2639 = vshrl.u32 %v1645, 16
    %v2640 = vpack.i.b16 %v2639, %v2639
    %v2642 = vlaneseq
    %v2643 = vshrl.u32 %v2642, 7
    %v2644 = vsub.s32 0, %v2643
    %v2645 = vrot.slane %v2640, %v2644
    %v2646 = vadd.bf16 %v2614, %v2624
    %v2647 = vadd.bf16 %v2615, %v2631
    %v2648 = vadd.bf16 %v2616, %v2638
    %v2649 = vadd.bf16 %v2617, %v2645
    %v2650 = vmax.bf16 %v2646, 0
    %v2651 = vmax.bf16 %v2647, 0
    %v2652 = vmax.bf16 %v2648, 0
    %v2653 = vmax.bf16 %v2649, 0
    %v2654 = vld [vmem:[#allocation8] sm:$0xff]
    %v2655 = vld [vmem:[#allocation8 + $0x8] sm:$0xff]
    %v2656 = vld [vmem:[#allocation8 + $0x10] sm:$0xff]
    %v2657 = vld [vmem:[#allocation8 + $0x18] sm:$0xff]
    %v2658 = vld [vmem:[#allocation8 + $0x20] sm:$0xff]
    %v2659 = vld [vmem:[#allocation8 + $0x28] sm:$0xff]
    %v2660 = vld [vmem:[#allocation8 + $0x30] sm:$0xff]
    %v2661 = vld [vmem:[#allocation8 + $0x38] sm:$0xff]
    %v2662 = vld [vmem:[#allocation8 + $0x40] sm:$0xff]
    %v2663 = vld [vmem:[#allocation8 + $0x48] sm:$0xff]
    %v2664 = vld [vmem:[#allocation8 + $0x50] sm:$0xff]
    %v2665 = vld [vmem:[#allocation8 + $0x58] sm:$0xff]
    %v2666 = vld [vmem:[#allocation8 + $0x60] sm:$0xff]
    %v2667 = vld [vmem:[#allocation8 + $0x68] sm:$0xff]
    %v2668 = vld [vmem:[#allocation8 + $0x70] sm:$0xff]
    %v2669 = vld [vmem:[#allocation8 + $0x78] sm:$0xff]
    %v2670 = vld [vmem:[#allocation8 + $0x80] sm:$0xff]
    %v2671 = vld [vmem:[#allocation8 + $0x88] sm:$0xff]
    %v2672 = vld [vmem:[#allocation8 + $0x90] sm:$0xff]
    %v2673 = vld [vmem:[#allocation8 + $0x98] sm:$0xff]
    %v2674 = vld [vmem:[#allocation8 + $0xa0] sm:$0xff]
    %v2675 = vld [vmem:[#allocation8 + $0xa8] sm:$0xff]
    %v2676 = vld [vmem:[#allocation8 + $0xb0] sm:$0xff]
    %v2677 = vld [vmem:[#allocation8 + $0xb8] sm:$0xff]
    %v2678 = vld [vmem:[#allocation8 + $0xc0] sm:$0xff]
    %v2679 = vld [vmem:[#allocation8 + $0xc8] sm:$0xff]
    %v2680 = vld [vmem:[#allocation8 + $0xd0] sm:$0xff]
    %v2681 = vld [vmem:[#allocation8 + $0xd8] sm:$0xff]
    %v2682 = vld [vmem:[#allocation8 + $0xe0] sm:$0xff]
    %v2683 = vld [vmem:[#allocation8 + $0xe8] sm:$0xff]
    %v2684 = vld [vmem:[#allocation8 + $0xf0] sm:$0xff]
    %v2685 = vld [vmem:[#allocation8 + $0xf8] sm:$0xff]
    %v2686 = vld [vmem:[#allocation8 + $0x100] sm:$0xff]
    %v2687 = vld [vmem:[#allocation8 + $0x108] sm:$0xff]
    %v2688 = vld [vmem:[#allocation8 + $0x110] sm:$0xff]
    %v2689 = vld [vmem:[#allocation8 + $0x118] sm:$0xff]
    %v2690 = vld [vmem:[#allocation8 + $0x120] sm:$0xff]
    %v2691 = vld [vmem:[#allocation8 + $0x128] sm:$0xff]
    %v2692 = vld [vmem:[#allocation8 + $0x130] sm:$0xff]
    %v2693 = vld [vmem:[#allocation8 + $0x138] sm:$0xff]
    %v2694 = vld [vmem:[#allocation8 + $0x140] sm:$0xff]
    %v2695 = vld [vmem:[#allocation8 + $0x148] sm:$0xff]
    %v2696 = vld [vmem:[#allocation8 + $0x150] sm:$0xff]
    %v2697 = vld [vmem:[#allocation8 + $0x158] sm:$0xff]
    %v2698 = vld [vmem:[#allocation8 + $0x160] sm:$0xff]
    %v2699 = vld [vmem:[#allocation8 + $0x168] sm:$0xff]
    %v2700 = vld [vmem:[#allocation8 + $0x170] sm:$0xff]
    %v2701 = vld [vmem:[#allocation8 + $0x178] sm:$0xff]
    %v2702 = vld [vmem:[#allocation8 + $0x180] sm:$0xff]
    %v2703 = vld [vmem:[#allocation8 + $0x188] sm:$0xff]
    %v2704 = vld [vmem:[#allocation8 + $0x190] sm:$0xff]
    %v2705 = vld [vmem:[#allocation8 + $0x198] sm:$0xff]
    %v2706 = vld [vmem:[#allocation8 + $0x1a0] sm:$0xff]
    %v2707 = vld [vmem:[#allocation8 + $0x1a8] sm:$0xff]
    %v2708 = vld [vmem:[#allocation8 + $0x1b0] sm:$0xff]
    %v2709 = vld [vmem:[#allocation8 + $0x1b8] sm:$0xff]
    %v2710 = vld [vmem:[#allocation8 + $0x1c0] sm:$0xff]
    %v2711 = vld [vmem:[#allocation8 + $0x1c8] sm:$0xff]
    %v2712 = vld [vmem:[#allocation8 + $0x1d0] sm:$0xff]
    %v2713 = vld [vmem:[#allocation8 + $0x1d8] sm:$0xff]
    %v2714 = vld [vmem:[#allocation8 + $0x1e0] sm:$0xff]
    %v2715 = vld [vmem:[#allocation8 + $0x1e8] sm:$0xff]
    %v2716 = vld [vmem:[#allocation8 + $0x1f0] sm:$0xff]
    %v2717 = vld [vmem:[#allocation8 + $0x1f8] sm:$0xff]
    %v2718 = vld [vmem:[#allocation8 + $0x200] sm:$0xff]
    %v2719 = vld [vmem:[#allocation8 + $0x208] sm:$0xff]
    %v2720 = vld [vmem:[#allocation8 + $0x210] sm:$0xff]
    %v2721 = vld [vmem:[#allocation8 + $0x218] sm:$0xff]
    %v2722 = vld [vmem:[#allocation8 + $0x220] sm:$0xff]
    %v2723 = vld [vmem:[#allocation8 + $0x228] sm:$0xff]
    %v2724 = vld [vmem:[#allocation8 + $0x230] sm:$0xff]
    %v2725 = vld [vmem:[#allocation8 + $0x238] sm:$0xff]
    %v2726 = vld [vmem:[#allocation8 + $0x240] sm:$0xff]
    %v2727 = vld [vmem:[#allocation8 + $0x248] sm:$0xff]
    %v2728 = vld [vmem:[#allocation8 + $0x250] sm:$0xff]
    %v2729 = vld [vmem:[#allocation8 + $0x258] sm:$0xff]
    %v2730 = vld [vmem:[#allocation8 + $0x260] sm:$0xff]
    %v2731 = vld [vmem:[#allocation8 + $0x268] sm:$0xff]
    %v2732 = vld [vmem:[#allocation8 + $0x270] sm:$0xff]
    %v2733 = vld [vmem:[#allocation8 + $0x278] sm:$0xff]
    %v2734 = vld [vmem:[#allocation8 + $0x280] sm:$0xff]
    %v2735 = vld [vmem:[#allocation8 + $0x288] sm:$0xff]
    %v2736 = vld [vmem:[#allocation8 + $0x290] sm:$0xff]
    %v2737 = vld [vmem:[#allocation8 + $0x298] sm:$0xff]
    %v2738 = vld [vmem:[#allocation8 + $0x2a0] sm:$0xff]
    %v2739 = vld [vmem:[#allocation8 + $0x2a8] sm:$0xff]
    %v2740 = vld [vmem:[#allocation8 + $0x2b0] sm:$0xff]
    %v2741 = vld [vmem:[#allocation8 + $0x2b8] sm:$0xff]
    %v2742 = vld [vmem:[#allocation8 + $0x2c0] sm:$0xff]
    %v2743 = vld [vmem:[#allocation8 + $0x2c8] sm:$0xff]
    %v2744 = vld [vmem:[#allocation8 + $0x2d0] sm:$0xff]
    %v2745 = vld [vmem:[#allocation8 + $0x2d8] sm:$0xff]
    %v2746 = vld [vmem:[#allocation8 + $0x2e0] sm:$0xff]
    %v2747 = vld [vmem:[#allocation8 + $0x2e8] sm:$0xff]
    %v2748 = vld [vmem:[#allocation8 + $0x2f0] sm:$0xff]
    %v2749 = vld [vmem:[#allocation8 + $0x2f8] sm:$0xff]
    %v2750 = vld [vmem:[#allocation8 + $0x300] sm:$0xff]
    %v2751 = vld [vmem:[#allocation8 + $0x308] sm:$0xff]
    %v2752 = vld [vmem:[#allocation8 + $0x310] sm:$0xff]
    %v2753 = vld [vmem:[#allocation8 + $0x318] sm:$0xff]
    %v2754 = vld [vmem:[#allocation8 + $0x320] sm:$0xff]
    %v2755 = vld [vmem:[#allocation8 + $0x328] sm:$0xff]
    %v2756 = vld [vmem:[#allocation8 + $0x330] sm:$0xff]
    %v2757 = vld [vmem:[#allocation8 + $0x338] sm:$0xff]
    %v2758 = vld [vmem:[#allocation8 + $0x340] sm:$0xff]
    %v2759 = vld [vmem:[#allocation8 + $0x348] sm:$0xff]
    %v2760 = vld [vmem:[#allocation8 + $0x350] sm:$0xff]
    %v2761 = vld [vmem:[#allocation8 + $0x358] sm:$0xff]
    %v2762 = vld [vmem:[#allocation8 + $0x360] sm:$0xff]
    %v2763 = vld [vmem:[#allocation8 + $0x368] sm:$0xff]
    %v2764 = vld [vmem:[#allocation8 + $0x370] sm:$0xff]
    %v2765 = vld [vmem:[#allocation8 + $0x378] sm:$0xff]
    %v2766 = vld [vmem:[#allocation8 + $0x380] sm:$0xff]
    %v2767 = vld [vmem:[#allocation8 + $0x388] sm:$0xff]
    %v2768 = vld [vmem:[#allocation8 + $0x390] sm:$0xff]
    %v2769 = vld [vmem:[#allocation8 + $0x398] sm:$0xff]
    %v2770 = vld [vmem:[#allocation8 + $0x3a0] sm:$0xff]
    %v2771 = vld [vmem:[#allocation8 + $0x3a8] sm:$0xff]
    %v2772 = vld [vmem:[#allocation8 + $0x3b0] sm:$0xff]
    %v2773 = vld [vmem:[#allocation8 + $0x3b8] sm:$0xff]
    %v2774 = vld [vmem:[#allocation8 + $0x3c0] sm:$0xff]
    %v2775 = vld [vmem:[#allocation8 + $0x3c8] sm:$0xff]
    %v2776 = vld [vmem:[#allocation8 + $0x3d0] sm:$0xff]
    %v2777 = vld [vmem:[#allocation8 + $0x3d8] sm:$0xff]
    %v2778 = vld [vmem:[#allocation8 + $0x3e0] sm:$0xff]
    %v2779 = vld [vmem:[#allocation8 + $0x3e8] sm:$0xff]
    %v2780 = vld [vmem:[#allocation8 + $0x3f0] sm:$0xff]
    %v2781 = vld [vmem:[#allocation8 + $0x3f8] sm:$0xff]
    %v2910 = vunpack.c.l.b16 %v2654
    %v2911 = vunpack.c.h.b16 %v2654
    %v2912 = vunpack.c.l.b16 %v2655
    %v2913 = vunpack.c.h.b16 %v2655
    %v2914 = vunpack.c.l.b16 %v2656
    %v2915 = vunpack.c.h.b16 %v2656
    %v2916 = vunpack.c.l.b16 %v2657
    %v2917 = vunpack.c.h.b16 %v2657
    %v2918 = vunpack.c.l.b16 %v2658
    %v2919 = vunpack.c.h.b16 %v2658
    %v2920 = vunpack.c.l.b16 %v2659
    %v2921 = vunpack.c.h.b16 %v2659
    %v2922 = vunpack.c.l.b16 %v2660
    %v2923 = vunpack.c.h.b16 %v2660
    %v2924 = vunpack.c.l.b16 %v2661
    %v2925 = vunpack.c.h.b16 %v2661
    %v2926 = vunpack.c.l.b16 %v2662
    %v2927 = vunpack.c.h.b16 %v2662
    %v2928 = vunpack.c.l.b16 %v2663
    %v2929 = vunpack.c.h.b16 %v2663
    %v2930 = vunpack.c.l.b16 %v2664
    %v2931 = vunpack.c.h.b16 %v2664
    %v2932 = vunpack.c.l.b16 %v2665
    %v2933 = vunpack.c.h.b16 %v2665
    %v2934 = vunpack.c.l.b16 %v2666
    %v2935 = vunpack.c.h.b16 %v2666
    %v2936 = vunpack.c.l.b16 %v2667
    %v2937 = vunpack.c.h.b16 %v2667
    %v2938 = vunpack.c.l.b16 %v2668
    %v2939 = vunpack.c.h.b16 %v2668
    %v2940 = vunpack.c.l.b16 %v2669
    %v2941 = vunpack.c.h.b16 %v2669
    %v2942 = vunpack.c.l.b16 %v2670
    %v2943 = vunpack.c.h.b16 %v2670
    %v2944 = vunpack.c.l.b16 %v2671
    %v2945 = vunpack.c.h.b16 %v2671
    %v2946 = vunpack.c.l.b16 %v2672
    %v2947 = vunpack.c.h.b16 %v2672
    %v2948 = vunpack.c.l.b16 %v2673
    %v2949 = vunpack.c.h.b16 %v2673
    %v2950 = vunpack.c.l.b16 %v2674
    %v2951 = vunpack.c.h.b16 %v2674
    %v2952 = vunpack.c.l.b16 %v2675
    %v2953 = vunpack.c.h.b16 %v2675
    %v2954 = vunpack.c.l.b16 %v2676
    %v2955 = vunpack.c.h.b16 %v2676
    %v2956 = vunpack.c.l.b16 %v2677
    %v2957 = vunpack.c.h.b16 %v2677
    %v2958 = vunpack.c.l.b16 %v2678
    %v2959 = vunpack.c.h.b16 %v2678
    %v2960 = vunpack.c.l.b16 %v2679
    %v2961 = vunpack.c.h.b16 %v2679
    %v2962 = vunpack.c.l.b16 %v2680
    %v2963 = vunpack.c.h.b16 %v2680
    %v2964 = vunpack.c.l.b16 %v2681
    %v2965 = vunpack.c.h.b16 %v2681
    %v2966 = vunpack.c.l.b16 %v2682
    %v2967 = vunpack.c.h.b16 %v2682
    %v2968 = vunpack.c.l.b16 %v2683
    %v2969 = vunpack.c.h.b16 %v2683
    %v2970 = vunpack.c.l.b16 %v2684
    %v2971 = vunpack.c.h.b16 %v2684
    %v2972 = vunpack.c.l.b16 %v2685
    %v2973 = vunpack.c.h.b16 %v2685
    %v2974 = vunpack.c.l.b16 %v2686
    %v2975 = vunpack.c.h.b16 %v2686
    %v2976 = vunpack.c.l.b16 %v2687
    %v2977 = vunpack.c.h.b16 %v2687
    %v2978 = vunpack.c.l.b16 %v2688
    %v2979 = vunpack.c.h.b16 %v2688
    %v2980 = vunpack.c.l.b16 %v2689
    %v2981 = vunpack.c.h.b16 %v2689
    %v2982 = vunpack.c.l.b16 %v2690
    %v2983 = vunpack.c.h.b16 %v2690
    %v2984 = vunpack.c.l.b16 %v2691
    %v2985 = vunpack.c.h.b16 %v2691
    %v2986 = vunpack.c.l.b16 %v2692
    %v2987 = vunpack.c.h.b16 %v2692
    %v2988 = vunpack.c.l.b16 %v2693
    %v2989 = vunpack.c.h.b16 %v2693
    %v2990 = vunpack.c.l.b16 %v2694
    %v2991 = vunpack.c.h.b16 %v2694
    %v2992 = vunpack.c.l.b16 %v2695
    %v2993 = vunpack.c.h.b16 %v2695
    %v2994 = vunpack.c.l.b16 %v2696
    %v2995 = vunpack.c.h.b16 %v2696
    %v2996 = vunpack.c.l.b16 %v2697
    %v2997 = vunpack.c.h.b16 %v2697
    %v2998 = vunpack.c.l.b16 %v2698
    %v2999 = vunpack.c.h.b16 %v2698
    %v3000 = vunpack.c.l.b16 %v2699
    %v3001 = vunpack.c.h.b16 %v2699
    %v3002 = vunpack.c.l.b16 %v2700
    %v3003 = vunpack.c.h.b16 %v2700
    %v3004 = vunpack.c.l.b16 %v2701
    %v3005 = vunpack.c.h.b16 %v2701
    %v3006 = vunpack.c.l.b16 %v2702
    %v3007 = vunpack.c.h.b16 %v2702
    %v3008 = vunpack.c.l.b16 %v2703
    %v3009 = vunpack.c.h.b16 %v2703
    %v3010 = vunpack.c.l.b16 %v2704
    %v3011 = vunpack.c.h.b16 %v2704
    %v3012 = vunpack.c.l.b16 %v2705
    %v3013 = vunpack.c.h.b16 %v2705
    %v3014 = vunpack.c.l.b16 %v2706
    %v3015 = vunpack.c.h.b16 %v2706
    %v3016 = vunpack.c.l.b16 %v2707
    %v3017 = vunpack.c.h.b16 %v2707
    %v3018 = vunpack.c.l.b16 %v2708
    %v3019 = vunpack.c.h.b16 %v2708
    %v3020 = vunpack.c.l.b16 %v2709
    %v3021 = vunpack.c.h.b16 %v2709
    %v3022 = vunpack.c.l.b16 %v2710
    %v3023 = vunpack.c.h.b16 %v2710
    %v3024 = vunpack.c.l.b16 %v2711
    %v3025 = vunpack.c.h.b16 %v2711
    %v3026 = vunpack.c.l.b16 %v2712
    %v3027 = vunpack.c.h.b16 %v2712
    %v3028 = vunpack.c.l.b16 %v2713
    %v3029 = vunpack.c.h.b16 %v2713
    %v3030 = vunpack.c.l.b16 %v2714
    %v3031 = vunpack.c.h.b16 %v2714
    %v3032 = vunpack.c.l.b16 %v2715
    %v3033 = vunpack.c.h.b16 %v2715
    %v3034 = vunpack.c.l.b16 %v2716
    %v3035 = vunpack.c.h.b16 %v2716
    %v3036 = vunpack.c.l.b16 %v2717
    %v3037 = vunpack.c.h.b16 %v2717
    %v3038 = vunpack.c.l.b16 %v2718
    %v3039 = vunpack.c.h.b16 %v2718
    %v3040 = vunpack.c.l.b16 %v2719
    %v3041 = vunpack.c.h.b16 %v2719
    %v3042 = vunpack.c.l.b16 %v2720
    %v3043 = vunpack.c.h.b16 %v2720
    %v3044 = vunpack.c.l.b16 %v2721
    %v3045 = vunpack.c.h.b16 %v2721
    %v3046 = vunpack.c.l.b16 %v2722
    %v3047 = vunpack.c.h.b16 %v2722
    %v3048 = vunpack.c.l.b16 %v2723
    %v3049 = vunpack.c.h.b16 %v2723
    %v3050 = vunpack.c.l.b16 %v2724
    %v3051 = vunpack.c.h.b16 %v2724
    %v3052 = vunpack.c.l.b16 %v2725
    %v3053 = vunpack.c.h.b16 %v2725
    %v3054 = vunpack.c.l.b16 %v2726
    %v3055 = vunpack.c.h.b16 %v2726
    %v3056 = vunpack.c.l.b16 %v2727
    %v3057 = vunpack.c.h.b16 %v2727
    %v3058 = vunpack.c.l.b16 %v2728
    %v3059 = vunpack.c.h.b16 %v2728
    %v3060 = vunpack.c.l.b16 %v2729
    %v3061 = vunpack.c.h.b16 %v2729
    %v3062 = vunpack.c.l.b16 %v2730
    %v3063 = vunpack.c.h.b16 %v2730
    %v3064 = vunpack.c.l.b16 %v2731
    %v3065 = vunpack.c.h.b16 %v2731
    %v3066 = vunpack.c.l.b16 %v2732
    %v3067 = vunpack.c.h.b16 %v2732
    %v3068 = vunpack.c.l.b16 %v2733
    %v3069 = vunpack.c.h.b16 %v2733
    %v3070 = vunpack.c.l.b16 %v2734
    %v3071 = vunpack.c.h.b16 %v2734
    %v3072 = vunpack.c.l.b16 %v2735
    %v3073 = vunpack.c.h.b16 %v2735
    %v3074 = vunpack.c.l.b16 %v2736
    %v3075 = vunpack.c.h.b16 %v2736
    %v3076 = vunpack.c.l.b16 %v2737
    %v3077 = vunpack.c.h.b16 %v2737
    %v3078 = vunpack.c.l.b16 %v2738
    %v3079 = vunpack.c.h.b16 %v2738
    %v3080 = vunpack.c.l.b16 %v2739
    %v3081 = vunpack.c.h.b16 %v2739
    %v3082 = vunpack.c.l.b16 %v2740
    %v3083 = vunpack.c.h.b16 %v2740
    %v3084 = vunpack.c.l.b16 %v2741
    %v3085 = vunpack.c.h.b16 %v2741
    %v3086 = vunpack.c.l.b16 %v2742
    %v3087 = vunpack.c.h.b16 %v2742
    %v3088 = vunpack.c.l.b16 %v2743
    %v3089 = vunpack.c.h.b16 %v2743
    %v3090 = vunpack.c.l.b16 %v2744
    %v3091 = vunpack.c.h.b16 %v2744
    %v3092 = vunpack.c.l.b16 %v2745
    %v3093 = vunpack.c.h.b16 %v2745
    %v3094 = vunpack.c.l.b16 %v2746
    %v3095 = vunpack.c.h.b16 %v2746
    %v3096 = vunpack.c.l.b16 %v2747
    %v3097 = vunpack.c.h.b16 %v2747
    %v3098 = vunpack.c.l.b16 %v2748
    %v3099 = vunpack.c.h.b16 %v2748
    %v3100 = vunpack.c.l.b16 %v2749
    %v3101 = vunpack.c.h.b16 %v2749
    %v3102 = vunpack.c.l.b16 %v2750
    %v3103 = vunpack.c.h.b16 %v2750
    %v3104 = vunpack.c.l.b16 %v2751
    %v3105 = vunpack.c.h.b16 %v2751
    %v3106 = vunpack.c.l.b16 %v2752
    %v3107 = vunpack.c.h.b16 %v2752
    %v3108 = vunpack.c.l.b16 %v2753
    %v3109 = vunpack.c.h.b16 %v2753
    %v3110 = vunpack.c.l.b16 %v2754
    %v3111 = vunpack.c.h.b16 %v2754
    %v3112 = vunpack.c.l.b16 %v2755
    %v3113 = vunpack.c.h.b16 %v2755
    %v3114 = vunpack.c.l.b16 %v2756
    %v3115 = vunpack.c.h.b16 %v2756
    %v3116 = vunpack.c.l.b16 %v2757
    %v3117 = vunpack.c.h.b16 %v2757
    %v3118 = vunpack.c.l.b16 %v2758
    %v3119 = vunpack.c.h.b16 %v2758
    %v3120 = vunpack.c.l.b16 %v2759
    %v3121 = vunpack.c.h.b16 %v2759
    %v3122 = vunpack.c.l.b16 %v2760
    %v3123 = vunpack.c.h.b16 %v2760
    %v3124 = vunpack.c.l.b16 %v2761
    %v3125 = vunpack.c.h.b16 %v2761
    %v3126 = vunpack.c.l.b16 %v2762
    %v3127 = vunpack.c.h.b16 %v2762
    %v3128 = vunpack.c.l.b16 %v2763
    %v3129 = vunpack.c.h.b16 %v2763
    %v3130 = vunpack.c.l.b16 %v2764
    %v3131 = vunpack.c.h.b16 %v2764
    %v3132 = vunpack.c.l.b16 %v2765
    %v3133 = vunpack.c.h.b16 %v2765
    %v3134 = vunpack.c.l.b16 %v2766
    %v3135 = vunpack.c.h.b16 %v2766
    %v3136 = vunpack.c.l.b16 %v2767
    %v3137 = vunpack.c.h.b16 %v2767
    %v3138 = vunpack.c.l.b16 %v2768
    %v3139 = vunpack.c.h.b16 %v2768
    %v3140 = vunpack.c.l.b16 %v2769
    %v3141 = vunpack.c.h.b16 %v2769
    %v3142 = vunpack.c.l.b16 %v2770
    %v3143 = vunpack.c.h.b16 %v2770
    %v3144 = vunpack.c.l.b16 %v2771
    %v3145 = vunpack.c.h.b16 %v2771
    %v3146 = vunpack.c.l.b16 %v2772
    %v3147 = vunpack.c.h.b16 %v2772
    %v3148 = vunpack.c.l.b16 %v2773
    %v3149 = vunpack.c.h.b16 %v2773
    %v3150 = vunpack.c.l.b16 %v2774
    %v3151 = vunpack.c.h.b16 %v2774
    %v3152 = vunpack.c.l.b16 %v2775
    %v3153 = vunpack.c.h.b16 %v2775
    %v3154 = vunpack.c.l.b16 %v2776
    %v3155 = vunpack.c.h.b16 %v2776
    %v3156 = vunpack.c.l.b16 %v2777
    %v3157 = vunpack.c.h.b16 %v2777
    %v3158 = vunpack.c.l.b16 %v2778
    %v3159 = vunpack.c.h.b16 %v2778
    %v3160 = vunpack.c.l.b16 %v2779
    %v3161 = vunpack.c.h.b16 %v2779
    %v3162 = vunpack.c.l.b16 %v2780
    %v3163 = vunpack.c.h.b16 %v2780
    %v3164 = vunpack.c.l.b16 %v2781
    %v3165 = vunpack.c.h.b16 %v2781
    %v3166 = vpack.c.b16 %v2914, %v2910
    %v3167 = vpack.c.b16 %v2915, %v2911
    %v3168 = vpack.c.b16 %v2916, %v2912
    %v3169 = vpack.c.b16 %v2917, %v2913
    %v3170 = vpack.c.b16 %v2922, %v2918
    %v3171 = vpack.c.b16 %v2923, %v2919
    %v3172 = vpack.c.b16 %v2924, %v2920
    %v3173 = vpack.c.b16 %v2925, %v2921
    %v3174 = vpack.c.b16 %v2930, %v2926
    %v3175 = vpack.c.b16 %v2931, %v2927
    %v3176 = vpack.c.b16 %v2932, %v2928
    %v3177 = vpack.c.b16 %v2933, %v2929
    %v3178 = vpack.c.b16 %v2938, %v2934
    %v3179 = vpack.c.b16 %v2939, %v2935
    %v3180 = vpack.c.b16 %v2940, %v2936
    %v3181 = vpack.c.b16 %v2941, %v2937
    %v3182 = vpack.c.b16 %v2946, %v2942
    %v3183 = vpack.c.b16 %v2947, %v2943
    %v3184 = vpack.c.b16 %v2948, %v2944
    %v3185 = vpack.c.b16 %v2949, %v2945
    %v3186 = vpack.c.b16 %v2954, %v2950
    %v3187 = vpack.c.b16 %v2955, %v2951
    %v3188 = vpack.c.b16 %v2956, %v2952
    %v3189 = vpack.c.b16 %v2957, %v2953
    %v3190 = vpack.c.b16 %v2962, %v2958
    %v3191 = vpack.c.b16 %v2963, %v2959
    %v3192 = vpack.c.b16 %v2964, %v2960
    %v3193 = vpack.c.b16 %v2965, %v2961
    %v3194 = vpack.c.b16 %v2970, %v2966
    %v3195 = vpack.c.b16 %v2971, %v2967
    %v3196 = vpack.c.b16 %v2972, %v2968
    %v3197 = vpack.c.b16 %v2973, %v2969
    %v3198 = vpack.c.b16 %v2978, %v2974
    %v3199 = vpack.c.b16 %v2979, %v2975
    %v3200 = vpack.c.b16 %v2980, %v2976
    %v3201 = vpack.c.b16 %v2981, %v2977
    %v3202 = vpack.c.b16 %v2986, %v2982
    %v3203 = vpack.c.b16 %v2987, %v2983
    %v3204 = vpack.c.b16 %v2988, %v2984
    %v3205 = vpack.c.b16 %v2989, %v2985
    %v3206 = vpack.c.b16 %v2994, %v2990
    %v3207 = vpack.c.b16 %v2995, %v2991
    %v3208 = vpack.c.b16 %v2996, %v2992
    %v3209 = vpack.c.b16 %v2997, %v2993
    %v3210 = vpack.c.b16 %v3002, %v2998
    %v3211 = vpack.c.b16 %v3003, %v2999
    %v3212 = vpack.c.b16 %v3004, %v3000
    %v3213 = vpack.c.b16 %v3005, %v3001
    %v3214 = vpack.c.b16 %v3010, %v3006
    %v3215 = vpack.c.b16 %v3011, %v3007
    %v3216 = vpack.c.b16 %v3012, %v3008
    %v3217 = vpack.c.b16 %v3013, %v3009
    %v3218 = vpack.c.b16 %v3018, %v3014
    %v3219 = vpack.c.b16 %v3019, %v3015
    %v3220 = vpack.c.b16 %v3020, %v3016
    %v3221 = vpack.c.b16 %v3021, %v3017
    %v3222 = vpack.c.b16 %v3026, %v3022
    %v3223 = vpack.c.b16 %v3027, %v3023
    %v3224 = vpack.c.b16 %v3028, %v3024
    %v3225 = vpack.c.b16 %v3029, %v3025
    %v3226 = vpack.c.b16 %v3034, %v3030
    %v3227 = vpack.c.b16 %v3035, %v3031
    %v3228 = vpack.c.b16 %v3036, %v3032
    %v3229 = vpack.c.b16 %v3037, %v3033
    %v3230 = vpack.c.b16 %v3042, %v3038
    %v3231 = vpack.c.b16 %v3043, %v3039
    %v3232 = vpack.c.b16 %v3044, %v3040
    %v3233 = vpack.c.b16 %v3045, %v3041
    %v3234 = vpack.c.b16 %v3050, %v3046
    %v3235 = vpack.c.b16 %v3051, %v3047
    %v3236 = vpack.c.b16 %v3052, %v3048
    %v3237 = vpack.c.b16 %v3053, %v3049
    %v3238 = vpack.c.b16 %v3058, %v3054
    %v3239 = vpack.c.b16 %v3059, %v3055
    %v3240 = vpack.c.b16 %v3060, %v3056
    %v3241 = vpack.c.b16 %v3061, %v3057
    %v3242 = vpack.c.b16 %v3066, %v3062
    %v3243 = vpack.c.b16 %v3067, %v3063
    %v3244 = vpack.c.b16 %v3068, %v3064
    %v3245 = vpack.c.b16 %v3069, %v3065
    %v3246 = vpack.c.b16 %v3074, %v3070
    %v3247 = vpack.c.b16 %v3075, %v3071
    %v3248 = vpack.c.b16 %v3076, %v3072
    %v3249 = vpack.c.b16 %v3077, %v3073
    %v3250 = vpack.c.b16 %v3082, %v3078
    %v3251 = vpack.c.b16 %v3083, %v3079
    %v3252 = vpack.c.b16 %v3084, %v3080
    %v3253 = vpack.c.b16 %v3085, %v3081
    %v3254 = vpack.c.b16 %v3090, %v3086
    %v3255 = vpack.c.b16 %v3091, %v3087
    %v3256 = vpack.c.b16 %v3092, %v3088
    %v3257 = vpack.c.b16 %v3093, %v3089
    %v3258 = vpack.c.b16 %v3098, %v3094
    %v3259 = vpack.c.b16 %v3099, %v3095
    %v3260 = vpack.c.b16 %v3100, %v3096
    %v3261 = vpack.c.b16 %v3101, %v3097
    %v3262 = vpack.c.b16 %v3106, %v3102
    %v3263 = vpack.c.b16 %v3107, %v3103
    %v3264 = vpack.c.b16 %v3108, %v3104
    %v3265 = vpack.c.b16 %v3109, %v3105
    %v3266 = vpack.c.b16 %v3114, %v3110
    %v3267 = vpack.c.b16 %v3115, %v3111
    %v3268 = vpack.c.b16 %v3116, %v3112
    %v3269 = vpack.c.b16 %v3117, %v3113
    %v3270 = vpack.c.b16 %v3122, %v3118
    %v3271 = vpack.c.b16 %v3123, %v3119
    %v3272 = vpack.c.b16 %v3124, %v3120
    %v3273 = vpack.c.b16 %v3125, %v3121
    %v3274 = vpack.c.b16 %v3130, %v3126
    %v3275 = vpack.c.b16 %v3131, %v3127
    %v3276 = vpack.c.b16 %v3132, %v3128
    %v3277 = vpack.c.b16 %v3133, %v3129
    %v3278 = vpack.c.b16 %v3138, %v3134
    %v3279 = vpack.c.b16 %v3139, %v3135
    %v3280 = vpack.c.b16 %v3140, %v3136
    %v3281 = vpack.c.b16 %v3141, %v3137
    %v3282 = vpack.c.b16 %v3146, %v3142
    %v3283 = vpack.c.b16 %v3147, %v3143
    %v3284 = vpack.c.b16 %v3148, %v3144
    %v3285 = vpack.c.b16 %v3149, %v3145
    %v3286 = vpack.c.b16 %v3154, %v3150
    %v3287 = vpack.c.b16 %v3155, %v3151
    %v3288 = vpack.c.b16 %v3156, %v3152
    %v3289 = vpack.c.b16 %v3157, %v3153
    %v3290 = vpack.c.b16 %v3162, %v3158
    %v3291 = vpack.c.b16 %v3163, %v3159
    %v3292 = vpack.c.b16 %v3164, %v3160
    %v3293 = vpack.c.b16 %v3165, %v3161
    %3422 = vmatprep.subr.bf16.mxu0 %v3167
    %3423 = vmatpush1.bf16.msra.mxu0 %v3166
    %3424 = vmatprep.subr.bf16.mxu0 %v3171
    %3425 = vmatpush1.bf16.msra.mxu0 %v3170
    %3426 = vmatprep.subr.bf16.mxu0 %v3175
    %3427 = vmatpush1.bf16.msra.mxu0 %v3174
    %3428 = vmatprep.subr.bf16.mxu0 %v3179
    %3429 = vmatpush1.bf16.msra.mxu0 %v3178
    %3430 = vmatprep.subr.bf16.mxu0 %v3183
    %3431 = vmatpush1.bf16.msra.mxu0 %v3182
    %3432 = vmatprep.subr.bf16.mxu0 %v3187
    %3433 = vmatpush1.bf16.msra.mxu0 %v3186
    %3434 = vmatprep.subr.bf16.mxu0 %v3191
    %3435 = vmatpush1.bf16.msra.mxu0 %v3190
    %3436 = vmatprep.subr.bf16.mxu0 %v3195
    %3437 = vmatpush1.bf16.msra.mxu0 %v3194
    %3438 = vmatprep.subr.bf16.mxu0 %v3199
    %3439 = vmatpush1.bf16.msra.mxu0 %v3198
    %3440 = vmatprep.subr.bf16.mxu0 %v3203
    %3441 = vmatpush1.bf16.msra.mxu0 %v3202
    %3442 = vmatprep.subr.bf16.mxu0 %v3207
    %3443 = vmatpush1.bf16.msra.mxu0 %v3206
    %3444 = vmatprep.subr.bf16.mxu0 %v3211
    %3445 = vmatpush1.bf16.msra.mxu0 %v3210
    %3446 = vmatprep.subr.bf16.mxu0 %v3215
    %3447 = vmatpush1.bf16.msra.mxu0 %v3214
    %3448 = vmatprep.subr.bf16.mxu0 %v3219
    %3449 = vmatpush1.bf16.msra.mxu0 %v3218
    %3450 = vmatprep.subr.bf16.mxu0 %v3223
    %3451 = vmatpush1.bf16.msra.mxu0 %v3222
    %3452 = vmatprep.subr.bf16.mxu0 %v3227
    %3453 = vmatpush1.bf16.msra.mxu0 %v3226
    %3454 = vmatprep.mubr.bf16.mxu0 %v2651
    %3455 = vmatmul.mubr.bf16.gmra.mrb[0].mxu0 %v2650
    %v3456 = vpop.f32.mrb[0].mxu0
    %v3457 = vadd.f32 0.0, %v3456
    %v3458 = vpop.f32.mrb[0].mxu0
    %v3459 = vadd.f32 0.0, %v3458
    %v3460 = vpop.f32.mrb[0].mxu0
    %v3461 = vpop.f32.mrb[0].mxu0
    %3462 = vdwg.mxu0
    %3463 = vmatprep.subr.bf16.mxu0 %v3231
    %3464 = vmatpush1.bf16.msra.mxu0 %v3230
    %3465 = vmatprep.subr.bf16.mxu0 %v3235
    %3466 = vmatpush1.bf16.msra.mxu0 %v3234
    %3467 = vmatprep.subr.bf16.mxu0 %v3239
    %3468 = vmatpush1.bf16.msra.mxu0 %v3238
    %3469 = vmatprep.subr.bf16.mxu0 %v3243
    %3470 = vmatpush1.bf16.msra.mxu0 %v3242
    %3471 = vmatprep.subr.bf16.mxu0 %v3247
    %3472 = vmatpush1.bf16.msra.mxu0 %v3246
    %3473 = vmatprep.subr.bf16.mxu0 %v3251
    %3474 = vmatpush1.bf16.msra.mxu0 %v3250
    %3475 = vmatprep.subr.bf16.mxu0 %v3255
    %3476 = vmatpush1.bf16.msra.mxu0 %v3254
    %3477 = vmatprep.subr.bf16.mxu0 %v3259
    %3478 = vmatpush1.bf16.msra.mxu0 %v3258
    %3479 = vmatprep.subr.bf16.mxu0 %v3263
    %3480 = vmatpush1.bf16.msra.mxu0 %v3262
    %3481 = vmatprep.subr.bf16.mxu0 %v3267
    %3482 = vmatpush1.bf16.msra.mxu0 %v3266
    %3483 = vmatprep.subr.bf16.mxu0 %v3271
    %3484 = vmatpush1.bf16.msra.mxu0 %v3270
    %3485 = vmatprep.subr.bf16.mxu0 %v3275
    %3486 = vmatpush1.bf16.msra.mxu0 %v3274
    %3487 = vmatprep.subr.bf16.mxu0 %v3279
    %3488 = vmatpush1.bf16.msra.mxu0 %v3278
    %3489 = vmatprep.subr.bf16.mxu0 %v3283
    %3490 = vmatpush1.bf16.msra.mxu0 %v3282
    %3491 = vmatprep.subr.bf16.mxu0 %v3287
    %3492 = vmatpush1.bf16.msra.mxu0 %v3286
    %3493 = vmatprep.subr.bf16.mxu0 %v3291
    %3494 = vmatpush1.bf16.msra.mxu0 %v3290
    %3495 = vmatprep.mubr.bf16.mxu0 %v2653
    %3496 = vmatmul.mubr.bf16.gmra.mrb[0].mxu0 %v2652
    %v3497 = vpop.f32.mrb[0].mxu0
    %v3498 = vadd.f32 %v3457, %v3497
    %v3499 = vpop.f32.mrb[0].mxu0
    %v3500 = vadd.f32 %v3459, %v3499
    %v3501 = vpop.f32.mrb[0].mxu0
    %v3502 = vpop.f32.mrb[0].mxu0
    %3503 = vdwg.mxu0
    %3504 = vmatprep.subr.bf16.mxu0 %v3169
    %3505 = vmatpush1.bf16.msra.mxu0 %v3168
    %3506 = vmatprep.subr.bf16.mxu0 %v3173
    %3507 = vmatpush1.bf16.msra.mxu0 %v3172
    %3508 = vmatprep.subr.bf16.mxu0 %v3177
    %3509 = vmatpush1.bf16.msra.mxu0 %v3176
    %3510 = vmatprep.subr.bf16.mxu0 %v3181
    %3511 = vmatpush1.bf16.msra.mxu0 %v3180
    %3512 = vmatprep.subr.bf16.mxu0 %v3185
    %3513 = vmatpush1.bf16.msra.mxu0 %v3184
    %3514 = vmatprep.subr.bf16.mxu0 %v3189
    %3515 = vmatpush1.bf16.msra.mxu0 %v3188
    %3516 = vmatprep.subr.bf16.mxu0 %v3193
    %3517 = vmatpush1.bf16.msra.mxu0 %v3192
    %3518 = vmatprep.subr.bf16.mxu0 %v3197
    %3519 = vmatpush1.bf16.msra.mxu0 %v3196
    %3520 = vmatprep.subr.bf16.mxu0 %v3201
    %3521 = vmatpush1.bf16.msra.mxu0 %v3200
    %3522 = vmatprep.subr.bf16.mxu0 %v3205
    %3523 = vmatpush1.bf16.msra.mxu0 %v3204
    %3524 = vmatprep.subr.bf16.mxu0 %v3209
    %3525 = vmatpush1.bf16.msra.mxu0 %v3208
    %3526 = vmatprep.subr.bf16.mxu0 %v3213
    %3527 = vmatpush1.bf16.msra.mxu0 %v3212
    %3528 = vmatprep.subr.bf16.mxu0 %v3217
    %3529 = vmatpush1.bf16.msra.mxu0 %v3216
    %3530 = vmatprep.subr.bf16.mxu0 %v3221
    %3531 = vmatpush1.bf16.msra.mxu0 %v3220
    %3532 = vmatprep.subr.bf16.mxu0 %v3225
    %3533 = vmatpush1.bf16.msra.mxu0 %v3224
    %3534 = vmatprep.subr.bf16.mxu0 %v3229
    %3535 = vmatpush1.bf16.msra.mxu0 %v3228
    %3536 = vmatprep.mubr.bf16.mxu0 %v2651
    %3537 = vmatmul.mubr.bf16.gmra.mrb[0].mxu0 %v2650
    %v3538 = vpop.f32.mrb[0].mxu0
    %v3539 = vadd.f32 0.0, %v3538
    %v3540 = vpop.f32.mrb[0].mxu0
    %v3541 = vadd.f32 0.0, %v3540
    %v3542 = vpop.f32.mrb[0].mxu0
    %v3543 = vpop.f32.mrb[0].mxu0
    %3544 = vdwg.mxu0
    %3545 = vmatprep.subr.bf16.mxu0 %v3233
    %3546 = vmatpush1.bf16.msra.mxu0 %v3232
    %3547 = vmatprep.subr.bf16.mxu0 %v3237
    %3548 = vmatpush1.bf16.msra.mxu0 %v3236
    %3549 = vmatprep.subr.bf16.mxu0 %v3241
    %3550 = vmatpush1.bf16.msra.mxu0 %v3240
    %3551 = vmatprep.subr.bf16.mxu0 %v3245
    %3552 = vmatpush1.bf16.msra.mxu0 %v3244
    %3553 = vmatprep.subr.bf16.mxu0 %v3249
    %3554 = vmatpush1.bf16.msra.mxu0 %v3248
    %3555 = vmatprep.subr.bf16.mxu0 %v3253
    %3556 = vmatpush1.bf16.msra.mxu0 %v3252
    %3557 = vmatprep.subr.bf16.mxu0 %v3257
    %3558 = vmatpush1.bf16.msra.mxu0 %v3256
    %3559 = vmatprep.subr.bf16.mxu0 %v3261
    %3560 = vmatpush1.bf16.msra.mxu0 %v3260
    %3561 = vmatprep.subr.bf16.mxu0 %v3265
    %3562 = vmatpush1.bf16.msra.mxu0 %v3264
    %3563 = vmatprep.subr.bf16.mxu0 %v3269
    %3564 = vmatpush1.bf16.msra.mxu0 %v3268
    %3565 = vmatprep.subr.bf16.mxu0 %v3273
    %3566 = vmatpush1.bf16.msra.mxu0 %v3272
    %3567 = vmatprep.subr.bf16.mxu0 %v3277
    %3568 = vmatpush1.bf16.msra.mxu0 %v3276
    %3569 = vmatprep.subr.bf16.mxu0 %v3281
    %3570 = vmatpush1.bf16.msra.mxu0 %v3280
    %3571 = vmatprep.subr.bf16.mxu0 %v3285
    %3572 = vmatpush1.bf16.msra.mxu0 %v3284
    %3573 = vmatprep.subr.bf16.mxu0 %v3289
    %3574 = vmatpush1.bf16.msra.mxu0 %v3288
    %3575 = vmatprep.subr.bf16.mxu0 %v3293
    %3576 = vmatpush1.bf16.msra.mxu0 %v3292
    %3577 = vmatprep.mubr.bf16.mxu0 %v2653
    %3578 = vmatmul.mubr.bf16.gmra.mrb[0].mxu0 %v2652
    %v3579 = vpop.f32.mrb[0].mxu0
    %v3580 = vadd.f32 %v3539, %v3579
    %v3581 = vpop.f32.mrb[0].mxu0
    %v3582 = vadd.f32 %v3541, %v3581
    %v3583 = vpop.f32.mrb[0].mxu0
    %v3584 = vpop.f32.mrb[0].mxu0
    %3585 = vdwg.mxu0
    %v3586 = vpack.c.bf16 %v3498, %v3498
    %v3587 = vpack.c.bf16 %v3500, %v3500
    %v3588 = vpack.c.bf16 %v3580, %v3580
    %v3589 = vpack.c.bf16 %v3582, %v3582
    %v3590 = vlaneseq
    %v3591 = vshrl.u32 %v3590, 7
    %v3592 = vsub.s32 1, %v3591
    %v3593 = vrot.slane %v1647, %v3592
    %v3594 = vlaneseq
    %v3595 = vshrl.u32 %v3594, 7
    %v3596 = vsub.s32 1, %v3595
    %v3597 = vrot.slane %v1654, %v3596
    %v3598 = vlaneseq
    %v3599 = vshrl.u32 %v3598, 7
    %v3600 = vsub.s32 1, %v3599
    %v3601 = vrot.slane %v1661, %v3600
    %v3602 = vlaneseq
    %v3603 = vshrl.u32 %v3602, 7
    %v3604 = vsub.s32 1, %v3603
    %v3605 = vrot.slane %v1668, %v3604
    %v3606 = vadd.bf16 %v3586, %v3593
    %v3607 = vadd.bf16 %v3587, %v3597
    %v3608 = vadd.bf16 %v3588, %v3601
    %v3609 = vadd.bf16 %v3589, %v3605
    %v3610 = vmax.bf16 %v3606, 0
    %v3611 = vmax.bf16 %v3607, 0
    %v3612 = vmax.bf16 %v3608, 0
    %v3613 = vmax.bf16 %v3609, 0
    %v3614 = vld [vmem:[#allocation10] sm:$0xff]
    %v3615 = vld [vmem:[#allocation10 + $0x8] sm:$0xff]
    %v3616 = vld [vmem:[#allocation10 + $0x10] sm:$0xff]
    %v3617 = vld [vmem:[#allocation10 + $0x18] sm:$0xff]
    %v3618 = vld [vmem:[#allocation10 + $0x20] sm:$0xff]
    %v3619 = vld [vmem:[#allocation10 + $0x28] sm:$0xff]
    %v3620 = vld [vmem:[#allocation10 + $0x30] sm:$0xff]
    %v3621 = vld [vmem:[#allocation10 + $0x38] sm:$0xff]
    %v3622 = vld [vmem:[#allocation10 + $0x40] sm:$0xff]
    %v3623 = vld [vmem:[#allocation10 + $0x48] sm:$0xff]
    %v3624 = vld [vmem:[#allocation10 + $0x50] sm:$0xff]
    %v3625 = vld [vmem:[#allocation10 + $0x58] sm:$0xff]
    %v3626 = vld [vmem:[#allocation10 + $0x60] sm:$0xff]
    %v3627 = vld [vmem:[#allocation10 + $0x68] sm:$0xff]
    %v3628 = vld [vmem:[#allocation10 + $0x70] sm:$0xff]
    %v3629 = vld [vmem:[#allocation10 + $0x78] sm:$0xff]
    %v3630 = vld [vmem:[#allocation10 + $0x80] sm:$0xff]
    %v3631 = vld [vmem:[#allocation10 + $0x88] sm:$0xff]
    %v3632 = vld [vmem:[#allocation10 + $0x90] sm:$0xff]
    %v3633 = vld [vmem:[#allocation10 + $0x98] sm:$0xff]
    %v3634 = vld [vmem:[#allocation10 + $0xa0] sm:$0xff]
    %v3635 = vld [vmem:[#allocation10 + $0xa8] sm:$0xff]
    %v3636 = vld [vmem:[#allocation10 + $0xb0] sm:$0xff]
    %v3637 = vld [vmem:[#allocation10 + $0xb8] sm:$0xff]
    %v3638 = vld [vmem:[#allocation10 + $0xc0] sm:$0xff]
    %v3639 = vld [vmem:[#allocation10 + $0xc8] sm:$0xff]
    %v3640 = vld [vmem:[#allocation10 + $0xd0] sm:$0xff]
    %v3641 = vld [vmem:[#allocation10 + $0xd8] sm:$0xff]
    %v3642 = vld [vmem:[#allocation10 + $0xe0] sm:$0xff]
    %v3643 = vld [vmem:[#allocation10 + $0xe8] sm:$0xff]
    %v3644 = vld [vmem:[#allocation10 + $0xf0] sm:$0xff]
    %v3645 = vld [vmem:[#allocation10 + $0xf8] sm:$0xff]
    %v3646 = vld [vmem:[#allocation10 + $0x100] sm:$0xff]
    %v3647 = vld [vmem:[#allocation10 + $0x108] sm:$0xff]
    %v3648 = vld [vmem:[#allocation10 + $0x110] sm:$0xff]
    %v3649 = vld [vmem:[#allocation10 + $0x118] sm:$0xff]
    %v3650 = vld [vmem:[#allocation10 + $0x120] sm:$0xff]
    %v3651 = vld [vmem:[#allocation10 + $0x128] sm:$0xff]
    %v3652 = vld [vmem:[#allocation10 + $0x130] sm:$0xff]
    %v3653 = vld [vmem:[#allocation10 + $0x138] sm:$0xff]
    %v3654 = vld [vmem:[#allocation10 + $0x140] sm:$0xff]
    %v3655 = vld [vmem:[#allocation10 + $0x148] sm:$0xff]
    %v3656 = vld [vmem:[#allocation10 + $0x150] sm:$0xff]
    %v3657 = vld [vmem:[#allocation10 + $0x158] sm:$0xff]
    %v3658 = vld [vmem:[#allocation10 + $0x160] sm:$0xff]
    %v3659 = vld [vmem:[#allocation10 + $0x168] sm:$0xff]
    %v3660 = vld [vmem:[#allocation10 + $0x170] sm:$0xff]
    %v3661 = vld [vmem:[#allocation10 + $0x178] sm:$0xff]
    %v3662 = vld [vmem:[#allocation10 + $0x180] sm:$0xff]
    %v3663 = vld [vmem:[#allocation10 + $0x188] sm:$0xff]
    %v3664 = vld [vmem:[#allocation10 + $0x190] sm:$0xff]
    %v3665 = vld [vmem:[#allocation10 + $0x198] sm:$0xff]
    %v3666 = vld [vmem:[#allocation10 + $0x1a0] sm:$0xff]
    %v3667 = vld [vmem:[#allocation10 + $0x1a8] sm:$0xff]
    %v3668 = vld [vmem:[#allocation10 + $0x1b0] sm:$0xff]
    %v3669 = vld [vmem:[#allocation10 + $0x1b8] sm:$0xff]
    %v3670 = vld [vmem:[#allocation10 + $0x1c0] sm:$0xff]
    %v3671 = vld [vmem:[#allocation10 + $0x1c8] sm:$0xff]
    %v3672 = vld [vmem:[#allocation10 + $0x1d0] sm:$0xff]
    %v3673 = vld [vmem:[#allocation10 + $0x1d8] sm:$0xff]
    %v3674 = vld [vmem:[#allocation10 + $0x1e0] sm:$0xff]
    %v3675 = vld [vmem:[#allocation10 + $0x1e8] sm:$0xff]
    %v3676 = vld [vmem:[#allocation10 + $0x1f0] sm:$0xff]
    %v3677 = vld [vmem:[#allocation10 + $0x1f8] sm:$0xff]
    %v3678 = vld [vmem:[#allocation10 + $0x200] sm:$0xff]
    %v3679 = vld [vmem:[#allocation10 + $0x208] sm:$0xff]
    %v3680 = vld [vmem:[#allocation10 + $0x210] sm:$0xff]
    %v3681 = vld [vmem:[#allocation10 + $0x218] sm:$0xff]
    %v3682 = vld [vmem:[#allocation10 + $0x220] sm:$0xff]
    %v3683 = vld [vmem:[#allocation10 + $0x228] sm:$0xff]
    %v3684 = vld [vmem:[#allocation10 + $0x230] sm:$0xff]
    %v3685 = vld [vmem:[#allocation10 + $0x238] sm:$0xff]
    %v3686 = vld [vmem:[#allocation10 + $0x240] sm:$0xff]
    %v3687 = vld [vmem:[#allocation10 + $0x248] sm:$0xff]
    %v3688 = vld [vmem:[#allocation10 + $0x250] sm:$0xff]
    %v3689 = vld [vmem:[#allocation10 + $0x258] sm:$0xff]
    %v3690 = vld [vmem:[#allocation10 + $0x260] sm:$0xff]
    %v3691 = vld [vmem:[#allocation10 + $0x268] sm:$0xff]
    %v3692 = vld [vmem:[#allocation10 + $0x270] sm:$0xff]
    %v3693 = vld [vmem:[#allocation10 + $0x278] sm:$0xff]
    %v3694 = vld [vmem:[#allocation10 + $0x280] sm:$0xff]
    %v3695 = vld [vmem:[#allocation10 + $0x288] sm:$0xff]
    %v3696 = vld [vmem:[#allocation10 + $0x290] sm:$0xff]
    %v3697 = vld [vmem:[#allocation10 + $0x298] sm:$0xff]
    %v3698 = vld [vmem:[#allocation10 + $0x2a0] sm:$0xff]
    %v3699 = vld [vmem:[#allocation10 + $0x2a8] sm:$0xff]
    %v3700 = vld [vmem:[#allocation10 + $0x2b0] sm:$0xff]
    %v3701 = vld [vmem:[#allocation10 + $0x2b8] sm:$0xff]
    %v3702 = vld [vmem:[#allocation10 + $0x2c0] sm:$0xff]
    %v3703 = vld [vmem:[#allocation10 + $0x2c8] sm:$0xff]
    %v3704 = vld [vmem:[#allocation10 + $0x2d0] sm:$0xff]
    %v3705 = vld [vmem:[#allocation10 + $0x2d8] sm:$0xff]
    %v3706 = vld [vmem:[#allocation10 + $0x2e0] sm:$0xff]
    %v3707 = vld [vmem:[#allocation10 + $0x2e8] sm:$0xff]
    %v3708 = vld [vmem:[#allocation10 + $0x2f0] sm:$0xff]
    %v3709 = vld [vmem:[#allocation10 + $0x2f8] sm:$0xff]
    %v3710 = vld [vmem:[#allocation10 + $0x300] sm:$0xff]
    %v3711 = vld [vmem:[#allocation10 + $0x308] sm:$0xff]
    %v3712 = vld [vmem:[#allocation10 + $0x310] sm:$0xff]
    %v3713 = vld [vmem:[#allocation10 + $0x318] sm:$0xff]
    %v3714 = vld [vmem:[#allocation10 + $0x320] sm:$0xff]
    %v3715 = vld [vmem:[#allocation10 + $0x328] sm:$0xff]
    %v3716 = vld [vmem:[#allocation10 + $0x330] sm:$0xff]
    %v3717 = vld [vmem:[#allocation10 + $0x338] sm:$0xff]
    %v3718 = vld [vmem:[#allocation10 + $0x340] sm:$0xff]
    %v3719 = vld [vmem:[#allocation10 + $0x348] sm:$0xff]
    %v3720 = vld [vmem:[#allocation10 + $0x350] sm:$0xff]
    %v3721 = vld [vmem:[#allocation10 + $0x358] sm:$0xff]
    %v3722 = vld [vmem:[#allocation10 + $0x360] sm:$0xff]
    %v3723 = vld [vmem:[#allocation10 + $0x368] sm:$0xff]
    %v3724 = vld [vmem:[#allocation10 + $0x370] sm:$0xff]
    %v3725 = vld [vmem:[#allocation10 + $0x378] sm:$0xff]
    %v3726 = vld [vmem:[#allocation10 + $0x380] sm:$0xff]
    %v3727 = vld [vmem:[#allocation10 + $0x388] sm:$0xff]
    %v3728 = vld [vmem:[#allocation10 + $0x390] sm:$0xff]
    %v3729 = vld [vmem:[#allocation10 + $0x398] sm:$0xff]
    %v3730 = vld [vmem:[#allocation10 + $0x3a0] sm:$0xff]
    %v3731 = vld [vmem:[#allocation10 + $0x3a8] sm:$0xff]
    %v3732 = vld [vmem:[#allocation10 + $0x3b0] sm:$0xff]
    %v3733 = vld [vmem:[#allocation10 + $0x3b8] sm:$0xff]
    %v3734 = vld [vmem:[#allocation10 + $0x3c0] sm:$0xff]
    %v3735 = vld [vmem:[#allocation10 + $0x3c8] sm:$0xff]
    %v3736 = vld [vmem:[#allocation10 + $0x3d0] sm:$0xff]
    %v3737 = vld [vmem:[#allocation10 + $0x3d8] sm:$0xff]
    %v3738 = vld [vmem:[#allocation10 + $0x3e0] sm:$0xff]
    %v3739 = vld [vmem:[#allocation10 + $0x3e8] sm:$0xff]
    %v3740 = vld [vmem:[#allocation10 + $0x3f0] sm:$0xff]
    %v3741 = vld [vmem:[#allocation10 + $0x3f8] sm:$0xff]
    %v3870 = vunpack.c.l.b16 %v3614
    %v3871 = vunpack.c.h.b16 %v3614
    %v3872 = vunpack.c.l.b16 %v3615
    %v3873 = vunpack.c.h.b16 %v3615
    %v3874 = vunpack.c.l.b16 %v3616
    %v3875 = vunpack.c.h.b16 %v3616
    %v3876 = vunpack.c.l.b16 %v3617
    %v3877 = vunpack.c.h.b16 %v3617
    %v3878 = vunpack.c.l.b16 %v3618
    %v3879 = vunpack.c.h.b16 %v3618
    %v3880 = vunpack.c.l.b16 %v3619
    %v3881 = vunpack.c.h.b16 %v3619
    %v3882 = vunpack.c.l.b16 %v3620
    %v3883 = vunpack.c.h.b16 %v3620
    %v3884 = vunpack.c.l.b16 %v3621
    %v3885 = vunpack.c.h.b16 %v3621
    %v3886 = vunpack.c.l.b16 %v3622
    %v3887 = vunpack.c.h.b16 %v3622
    %v3888 = vunpack.c.l.b16 %v3623
    %v3889 = vunpack.c.h.b16 %v3623
    %v3890 = vunpack.c.l.b16 %v3624
    %v3891 = vunpack.c.h.b16 %v3624
    %v3892 = vunpack.c.l.b16 %v3625
    %v3893 = vunpack.c.h.b16 %v3625
    %v3894 = vunpack.c.l.b16 %v3626
    %v3895 = vunpack.c.h.b16 %v3626
    %v3896 = vunpack.c.l.b16 %v3627
    %v3897 = vunpack.c.h.b16 %v3627
    %v3898 = vunpack.c.l.b16 %v3628
    %v3899 = vunpack.c.h.b16 %v3628
    %v3900 = vunpack.c.l.b16 %v3629
    %v3901 = vunpack.c.h.b16 %v3629
    %v3902 = vunpack.c.l.b16 %v3630
    %v3903 = vunpack.c.h.b16 %v3630
    %v3904 = vunpack.c.l.b16 %v3631
    %v3905 = vunpack.c.h.b16 %v3631
    %v3906 = vunpack.c.l.b16 %v3632
    %v3907 = vunpack.c.h.b16 %v3632
    %v3908 = vunpack.c.l.b16 %v3633
    %v3909 = vunpack.c.h.b16 %v3633
    %v3910 = vunpack.c.l.b16 %v3634
    %v3911 = vunpack.c.h.b16 %v3634
    %v3912 = vunpack.c.l.b16 %v3635
    %v3913 = vunpack.c.h.b16 %v3635
    %v3914 = vunpack.c.l.b16 %v3636
    %v3915 = vunpack.c.h.b16 %v3636
    %v3916 = vunpack.c.l.b16 %v3637
    %v3917 = vunpack.c.h.b16 %v3637
    %v3918 = vunpack.c.l.b16 %v3638
    %v3919 = vunpack.c.h.b16 %v3638
    %v3920 = vunpack.c.l.b16 %v3639
    %v3921 = vunpack.c.h.b16 %v3639
    %v3922 = vunpack.c.l.b16 %v3640
    %v3923 = vunpack.c.h.b16 %v3640
    %v3924 = vunpack.c.l.b16 %v3641
    %v3925 = vunpack.c.h.b16 %v3641
    %v3926 = vunpack.c.l.b16 %v3642
    %v3927 = vunpack.c.h.b16 %v3642
    %v3928 = vunpack.c.l.b16 %v3643
    %v3929 = vunpack.c.h.b16 %v3643
    %v3930 = vunpack.c.l.b16 %v3644
    %v3931 = vunpack.c.h.b16 %v3644
    %v3932 = vunpack.c.l.b16 %v3645
    %v3933 = vunpack.c.h.b16 %v3645
    %v3934 = vunpack.c.l.b16 %v3646
    %v3935 = vunpack.c.h.b16 %v3646
    %v3936 = vunpack.c.l.b16 %v3647
    %v3937 = vunpack.c.h.b16 %v3647
    %v3938 = vunpack.c.l.b16 %v3648
    %v3939 = vunpack.c.h.b16 %v3648
    %v3940 = vunpack.c.l.b16 %v3649
    %v3941 = vunpack.c.h.b16 %v3649
    %v3942 = vunpack.c.l.b16 %v3650
    %v3943 = vunpack.c.h.b16 %v3650
    %v3944 = vunpack.c.l.b16 %v3651
    %v3945 = vunpack.c.h.b16 %v3651
    %v3946 = vunpack.c.l.b16 %v3652
    %v3947 = vunpack.c.h.b16 %v3652
    %v3948 = vunpack.c.l.b16 %v3653
    %v3949 = vunpack.c.h.b16 %v3653
    %v3950 = vunpack.c.l.b16 %v3654
    %v3951 = vunpack.c.h.b16 %v3654
    %v3952 = vunpack.c.l.b16 %v3655
    %v3953 = vunpack.c.h.b16 %v3655
    %v3954 = vunpack.c.l.b16 %v3656
    %v3955 = vunpack.c.h.b16 %v3656
    %v3956 = vunpack.c.l.b16 %v3657
    %v3957 = vunpack.c.h.b16 %v3657
    %v3958 = vunpack.c.l.b16 %v3658
    %v3959 = vunpack.c.h.b16 %v3658
    %v3960 = vunpack.c.l.b16 %v3659
    %v3961 = vunpack.c.h.b16 %v3659
    %v3962 = vunpack.c.l.b16 %v3660
    %v3963 = vunpack.c.h.b16 %v3660
    %v3964 = vunpack.c.l.b16 %v3661
    %v3965 = vunpack.c.h.b16 %v3661
    %v3966 = vunpack.c.l.b16 %v3662
    %v3967 = vunpack.c.h.b16 %v3662
    %v3968 = vunpack.c.l.b16 %v3663
    %v3969 = vunpack.c.h.b16 %v3663
    %v3970 = vunpack.c.l.b16 %v3664
    %v3971 = vunpack.c.h.b16 %v3664
    %v3972 = vunpack.c.l.b16 %v3665
    %v3973 = vunpack.c.h.b16 %v3665
    %v3974 = vunpack.c.l.b16 %v3666
    %v3975 = vunpack.c.h.b16 %v3666
    %v3976 = vunpack.c.l.b16 %v3667
    %v3977 = vunpack.c.h.b16 %v3667
    %v3978 = vunpack.c.l.b16 %v3668
    %v3979 = vunpack.c.h.b16 %v3668
    %v3980 = vunpack.c.l.b16 %v3669
    %v3981 = vunpack.c.h.b16 %v3669
    %v3982 = vunpack.c.l.b16 %v3670
    %v3983 = vunpack.c.h.b16 %v3670
    %v3984 = vunpack.c.l.b16 %v3671
    %v3985 = vunpack.c.h.b16 %v3671
    %v3986 = vunpack.c.l.b16 %v3672
    %v3987 = vunpack.c.h.b16 %v3672
    %v3988 = vunpack.c.l.b16 %v3673
    %v3989 = vunpack.c.h.b16 %v3673
    %v3990 = vunpack.c.l.b16 %v3674
    %v3991 = vunpack.c.h.b16 %v3674
    %v3992 = vunpack.c.l.b16 %v3675
    %v3993 = vunpack.c.h.b16 %v3675
    %v3994 = vunpack.c.l.b16 %v3676
    %v3995 = vunpack.c.h.b16 %v3676
    %v3996 = vunpack.c.l.b16 %v3677
    %v3997 = vunpack.c.h.b16 %v3677
    %v3998 = vunpack.c.l.b16 %v3678
    %v3999 = vunpack.c.h.b16 %v3678
    %v4000 = vunpack.c.l.b16 %v3679
    %v4001 = vunpack.c.h.b16 %v3679
    %v4002 = vunpack.c.l.b16 %v3680
    %v4003 = vunpack.c.h.b16 %v3680
    %v4004 = vunpack.c.l.b16 %v3681
    %v4005 = vunpack.c.h.b16 %v3681
    %v4006 = vunpack.c.l.b16 %v3682
    %v4007 = vunpack.c.h.b16 %v3682
    %v4008 = vunpack.c.l.b16 %v3683
    %v4009 = vunpack.c.h.b16 %v3683
    %v4010 = vunpack.c.l.b16 %v3684
    %v4011 = vunpack.c.h.b16 %v3684
    %v4012 = vunpack.c.l.b16 %v3685
    %v4013 = vunpack.c.h.b16 %v3685
    %v4014 = vunpack.c.l.b16 %v3686
    %v4015 = vunpack.c.h.b16 %v3686
    %v4016 = vunpack.c.l.b16 %v3687
    %v4017 = vunpack.c.h.b16 %v3687
    %v4018 = vunpack.c.l.b16 %v3688
    %v4019 = vunpack.c.h.b16 %v3688
    %v4020 = vunpack.c.l.b16 %v3689
    %v4021 = vunpack.c.h.b16 %v3689
    %v4022 = vunpack.c.l.b16 %v3690
    %v4023 = vunpack.c.h.b16 %v3690
    %v4024 = vunpack.c.l.b16 %v3691
    %v4025 = vunpack.c.h.b16 %v3691
    %v4026 = vunpack.c.l.b16 %v3692
    %v4027 = vunpack.c.h.b16 %v3692
    %v4028 = vunpack.c.l.b16 %v3693
    %v4029 = vunpack.c.h.b16 %v3693
    %v4030 = vunpack.c.l.b16 %v3694
    %v4031 = vunpack.c.h.b16 %v3694
    %v4032 = vunpack.c.l.b16 %v3695
    %v4033 = vunpack.c.h.b16 %v3695
    %v4034 = vunpack.c.l.b16 %v3696
    %v4035 = vunpack.c.h.b16 %v3696
    %v4036 = vunpack.c.l.b16 %v3697
    %v4037 = vunpack.c.h.b16 %v3697
    %v4038 = vunpack.c.l.b16 %v3698
    %v4039 = vunpack.c.h.b16 %v3698
    %v4040 = vunpack.c.l.b16 %v3699
    %v4041 = vunpack.c.h.b16 %v3699
    %v4042 = vunpack.c.l.b16 %v3700
    %v4043 = vunpack.c.h.b16 %v3700
    %v4044 = vunpack.c.l.b16 %v3701
    %v4045 = vunpack.c.h.b16 %v3701
    %v4046 = vunpack.c.l.b16 %v3702
    %v4047 = vunpack.c.h.b16 %v3702
    %v4048 = vunpack.c.l.b16 %v3703
    %v4049 = vunpack.c.h.b16 %v3703
    %v4050 = vunpack.c.l.b16 %v3704
    %v4051 = vunpack.c.h.b16 %v3704
    %v4052 = vunpack.c.l.b16 %v3705
    %v4053 = vunpack.c.h.b16 %v3705
    %v4054 = vunpack.c.l.b16 %v3706
    %v4055 = vunpack.c.h.b16 %v3706
    %v4056 = vunpack.c.l.b16 %v3707
    %v4057 = vunpack.c.h.b16 %v3707
    %v4058 = vunpack.c.l.b16 %v3708
    %v4059 = vunpack.c.h.b16 %v3708
    %v4060 = vunpack.c.l.b16 %v3709
    %v4061 = vunpack.c.h.b16 %v3709
    %v4062 = vunpack.c.l.b16 %v3710
    %v4063 = vunpack.c.h.b16 %v3710
    %v4064 = vunpack.c.l.b16 %v3711
    %v4065 = vunpack.c.h.b16 %v3711
    %v4066 = vunpack.c.l.b16 %v3712
    %v4067 = vunpack.c.h.b16 %v3712
    %v4068 = vunpack.c.l.b16 %v3713
    %v4069 = vunpack.c.h.b16 %v3713
    %v4070 = vunpack.c.l.b16 %v3714
    %v4071 = vunpack.c.h.b16 %v3714
    %v4072 = vunpack.c.l.b16 %v3715
    %v4073 = vunpack.c.h.b16 %v3715
    %v4074 = vunpack.c.l.b16 %v3716
    %v4075 = vunpack.c.h.b16 %v3716
    %v4076 = vunpack.c.l.b16 %v3717
    %v4077 = vunpack.c.h.b16 %v3717
    %v4078 = vunpack.c.l.b16 %v3718
    %v4079 = vunpack.c.h.b16 %v3718
    %v4080 = vunpack.c.l.b16 %v3719
    %v4081 = vunpack.c.h.b16 %v3719
    %v4082 = vunpack.c.l.b16 %v3720
    %v4083 = vunpack.c.h.b16 %v3720
    %v4084 = vunpack.c.l.b16 %v3721
    %v4085 = vunpack.c.h.b16 %v3721
    %v4086 = vunpack.c.l.b16 %v3722
    %v4087 = vunpack.c.h.b16 %v3722
    %v4088 = vunpack.c.l.b16 %v3723
    %v4089 = vunpack.c.h.b16 %v3723
    %v4090 = vunpack.c.l.b16 %v3724
    %v4091 = vunpack.c.h.b16 %v3724
    %v4092 = vunpack.c.l.b16 %v3725
    %v4093 = vunpack.c.h.b16 %v3725
    %v4094 = vunpack.c.l.b16 %v3726
    %v4095 = vunpack.c.h.b16 %v3726
    %v4096 = vunpack.c.l.b16 %v3727
    %v4097 = vunpack.c.h.b16 %v3727
    %v4098 = vunpack.c.l.b16 %v3728
    %v4099 = vunpack.c.h.b16 %v3728
    %v4100 = vunpack.c.l.b16 %v3729
    %v4101 = vunpack.c.h.b16 %v3729
    %v4102 = vunpack.c.l.b16 %v3730
    %v4103 = vunpack.c.h.b16 %v3730
    %v4104 = vunpack.c.l.b16 %v3731
    %v4105 = vunpack.c.h.b16 %v3731
    %v4106 = vunpack.c.l.b16 %v3732
    %v4107 = vunpack.c.h.b16 %v3732
    %v4108 = vunpack.c.l.b16 %v3733
    %v4109 = vunpack.c.h.b16 %v3733
    %v4110 = vunpack.c.l.b16 %v3734
    %v4111 = vunpack.c.h.b16 %v3734
    %v4112 = vunpack.c.l.b16 %v3735
    %v4113 = vunpack.c.h.b16 %v3735
    %v4114 = vunpack.c.l.b16 %v3736
    %v4115 = vunpack.c.h.b16 %v3736
    %v4116 = vunpack.c.l.b16 %v3737
    %v4117 = vunpack.c.h.b16 %v3737
    %v4118 = vunpack.c.l.b16 %v3738
    %v4119 = vunpack.c.h.b16 %v3738
    %v4120 = vunpack.c.l.b16 %v3739
    %v4121 = vunpack.c.h.b16 %v3739
    %v4122 = vunpack.c.l.b16 %v3740
    %v4123 = vunpack.c.h.b16 %v3740
    %v4124 = vunpack.c.l.b16 %v3741
    %v4125 = vunpack.c.h.b16 %v3741
    %v4126 = vpack.c.b16 %v3874, %v3870
    %v4127 = vpack.c.b16 %v3875, %v3871
    %v4128 = vpack.c.b16 %v3876, %v3872
    %v4129 = vpack.c.b16 %v3877, %v3873
    %v4130 = vpack.c.b16 %v3882, %v3878
    %v4131 = vpack.c.b16 %v3883, %v3879
    %v4132 = vpack.c.b16 %v3884, %v3880
    %v4133 = vpack.c.b16 %v3885, %v3881
    %v4134 = vpack.c.b16 %v3890, %v3886
    %v4135 = vpack.c.b16 %v3891, %v3887
    %v4136 = vpack.c.b16 %v3892, %v3888
    %v4137 = vpack.c.b16 %v3893, %v3889
    %v4138 = vpack.c.b16 %v3898, %v3894
    %v4139 = vpack.c.b16 %v3899, %v3895
    %v4140 = vpack.c.b16 %v3900, %v3896
    %v4141 = vpack.c.b16 %v3901, %v3897
    %v4142 = vpack.c.b16 %v3906, %v3902
    %v4143 = vpack.c.b16 %v3907, %v3903
    %v4144 = vpack.c.b16 %v3908, %v3904
    %v4145 = vpack.c.b16 %v3909, %v3905
    %v4146 = vpack.c.b16 %v3914, %v3910
    %v4147 = vpack.c.b16 %v3915, %v3911
    %v4148 = vpack.c.b16 %v3916, %v3912
    %v4149 = vpack.c.b16 %v3917, %v3913
    %v4150 = vpack.c.b16 %v3922, %v3918
    %v4151 = vpack.c.b16 %v3923, %v3919
    %v4152 = vpack.c.b16 %v3924, %v3920
    %v4153 = vpack.c.b16 %v3925, %v3921
    %v4154 = vpack.c.b16 %v3930, %v3926
    %v4155 = vpack.c.b16 %v3931, %v3927
    %v4156 = vpack.c.b16 %v3932, %v3928
    %v4157 = vpack.c.b16 %v3933, %v3929
    %v4158 = vpack.c.b16 %v3938, %v3934
    %v4159 = vpack.c.b16 %v3939, %v3935
    %v4160 = vpack.c.b16 %v3940, %v3936
    %v4161 = vpack.c.b16 %v3941, %v3937
    %v4162 = vpack.c.b16 %v3946, %v3942
    %v4163 = vpack.c.b16 %v3947, %v3943
    %v4164 = vpack.c.b16 %v3948, %v3944
    %v4165 = vpack.c.b16 %v3949, %v3945
    %v4166 = vpack.c.b16 %v3954, %v3950
    %v4167 = vpack.c.b16 %v3955, %v3951
    %v4168 = vpack.c.b16 %v3956, %v3952
    %v4169 = vpack.c.b16 %v3957, %v3953
    %v4170 = vpack.c.b16 %v3962, %v3958
    %v4171 = vpack.c.b16 %v3963, %v3959
    %v4172 = vpack.c.b16 %v3964, %v3960
    %v4173 = vpack.c.b16 %v3965, %v3961
    %v4174 = vpack.c.b16 %v3970, %v3966
    %v4175 = vpack.c.b16 %v3971, %v3967
    %v4176 = vpack.c.b16 %v3972, %v3968
    %v4177 = vpack.c.b16 %v3973, %v3969
    %v4178 = vpack.c.b16 %v3978, %v3974
    %v4179 = vpack.c.b16 %v3979, %v3975
    %v4180 = vpack.c.b16 %v3980, %v3976
    %v4181 = vpack.c.b16 %v3981, %v3977
    %v4182 = vpack.c.b16 %v3986, %v3982
    %v4183 = vpack.c.b16 %v3987, %v3983
    %v4184 = vpack.c.b16 %v3988, %v3984
    %v4185 = vpack.c.b16 %v3989, %v3985
    %v4186 = vpack.c.b16 %v3994, %v3990
    %v4187 = vpack.c.b16 %v3995, %v3991
    %v4188 = vpack.c.b16 %v3996, %v3992
    %v4189 = vpack.c.b16 %v3997, %v3993
    %v4190 = vpack.c.b16 %v4002, %v3998
    %v4191 = vpack.c.b16 %v4003, %v3999
    %v4192 = vpack.c.b16 %v4004, %v4000
    %v4193 = vpack.c.b16 %v4005, %v4001
    %v4194 = vpack.c.b16 %v4010, %v4006
    %v4195 = vpack.c.b16 %v4011, %v4007
    %v4196 = vpack.c.b16 %v4012, %v4008
    %v4197 = vpack.c.b16 %v4013, %v4009
    %v4198 = vpack.c.b16 %v4018, %v4014
    %v4199 = vpack.c.b16 %v4019, %v4015
    %v4200 = vpack.c.b16 %v4020, %v4016
    %v4201 = vpack.c.b16 %v4021, %v4017
    %v4202 = vpack.c.b16 %v4026, %v4022
    %v4203 = vpack.c.b16 %v4027, %v4023
    %v4204 = vpack.c.b16 %v4028, %v4024
    %v4205 = vpack.c.b16 %v4029, %v4025
    %v4206 = vpack.c.b16 %v4034, %v4030
    %v4207 = vpack.c.b16 %v4035, %v4031
    %v4208 = vpack.c.b16 %v4036, %v4032
    %v4209 = vpack.c.b16 %v4037, %v4033
    %v4210 = vpack.c.b16 %v4042, %v4038
    %v4211 = vpack.c.b16 %v4043, %v4039
    %v4212 = vpack.c.b16 %v4044, %v4040
    %v4213 = vpack.c.b16 %v4045, %v4041
    %v4214 = vpack.c.b16 %v4050, %v4046
    %v4215 = vpack.c.b16 %v4051, %v4047
    %v4216 = vpack.c.b16 %v4052, %v4048
    %v4217 = vpack.c.b16 %v4053, %v4049
    %v4218 = vpack.c.b16 %v4058, %v4054
    %v4219 = vpack.c.b16 %v4059, %v4055
    %v4220 = vpack.c.b16 %v4060, %v4056
    %v4221 = vpack.c.b16 %v4061, %v4057
    %v4222 = vpack.c.b16 %v4066, %v4062
    %v4223 = vpack.c.b16 %v4067, %v4063
    %v4224 = vpack.c.b16 %v4068, %v4064
    %v4225 = vpack.c.b16 %v4069, %v4065
    %v4226 = vpack.c.b16 %v4074, %v4070
    %v4227 = vpack.c.b16 %v4075, %v4071
    %v4228 = vpack.c.b16 %v4076, %v4072
    %v4229 = vpack.c.b16 %v4077, %v4073
    %v4230 = vpack.c.b16 %v4082, %v4078
    %v4231 = vpack.c.b16 %v4083, %v4079
    %v4232 = vpack.c.b16 %v4084, %v4080
    %v4233 = vpack.c.b16 %v4085, %v4081
    %v4234 = vpack.c.b16 %v4090, %v4086
    %v4235 = vpack.c.b16 %v4091, %v4087
    %v4236 = vpack.c.b16 %v4092, %v4088
    %v4237 = vpack.c.b16 %v4093, %v4089
    %v4238 = vpack.c.b16 %v4098, %v4094
    %v4239 = vpack.c.b16 %v4099, %v4095
    %v4240 = vpack.c.b16 %v4100, %v4096
    %v4241 = vpack.c.b16 %v4101, %v4097
    %v4242 = vpack.c.b16 %v4106, %v4102
    %v4243 = vpack.c.b16 %v4107, %v4103
    %v4244 = vpack.c.b16 %v4108, %v4104
    %v4245 = vpack.c.b16 %v4109, %v4105
    %v4246 = vpack.c.b16 %v4114, %v4110
    %v4247 = vpack.c.b16 %v4115, %v4111
    %v4248 = vpack.c.b16 %v4116, %v4112
    %v4249 = vpack.c.b16 %v4117, %v4113
    %v4250 = vpack.c.b16 %v4122, %v4118
    %v4251 = vpack.c.b16 %v4123, %v4119
    %v4252 = vpack.c.b16 %v4124, %v4120
    %v4253 = vpack.c.b16 %v4125, %v4121
    %4382 = vmatprep.subr.bf16.mxu0 %v4127
    %4383 = vmatpush1.bf16.msra.mxu0 %v4126
    %4384 = vmatprep.subr.bf16.mxu0 %v4131
    %4385 = vmatpush1.bf16.msra.mxu0 %v4130
    %4386 = vmatprep.subr.bf16.mxu0 %v4135
    %4387 = vmatpush1.bf16.msra.mxu0 %v4134
    %4388 = vmatprep.subr.bf16.mxu0 %v4139
    %4389 = vmatpush1.bf16.msra.mxu0 %v4138
    %4390 = vmatprep.subr.bf16.mxu0 %v4143
    %4391 = vmatpush1.bf16.msra.mxu0 %v4142
    %4392 = vmatprep.subr.bf16.mxu0 %v4147
    %4393 = vmatpush1.bf16.msra.mxu0 %v4146
    %4394 = vmatprep.subr.bf16.mxu0 %v4151
    %4395 = vmatpush1.bf16.msra.mxu0 %v4150
    %4396 = vmatprep.subr.bf16.mxu0 %v4155
    %4397 = vmatpush1.bf16.msra.mxu0 %v4154
    %4398 = vmatprep.subr.bf16.mxu0 %v4159
    %4399 = vmatpush1.bf16.msra.mxu0 %v4158
    %4400 = vmatprep.subr.bf16.mxu0 %v4163
    %4401 = vmatpush1.bf16.msra.mxu0 %v4162
    %4402 = vmatprep.subr.bf16.mxu0 %v4167
    %4403 = vmatpush1.bf16.msra.mxu0 %v4166
    %4404 = vmatprep.subr.bf16.mxu0 %v4171
    %4405 = vmatpush1.bf16.msra.mxu0 %v4170
    %4406 = vmatprep.subr.bf16.mxu0 %v4175
    %4407 = vmatpush1.bf16.msra.mxu0 %v4174
    %4408 = vmatprep.subr.bf16.mxu0 %v4179
    %4409 = vmatpush1.bf16.msra.mxu0 %v4178
    %4410 = vmatprep.subr.bf16.mxu0 %v4183
    %4411 = vmatpush1.bf16.msra.mxu0 %v4182
    %4412 = vmatprep.subr.bf16.mxu0 %v4187
    %4413 = vmatpush1.bf16.msra.mxu0 %v4186
    %4414 = vmatprep.mubr.bf16.mxu0 %v3611
    %4415 = vmatmul.mubr.bf16.gmra.mrb[0].mxu0 %v3610
    %v4416 = vpop.f32.mrb[0].mxu0
    %v4417 = vadd.f32 0.0, %v4416
    %v4418 = vpop.f32.mrb[0].mxu0
    %v4419 = vadd.f32 0.0, %v4418
    %v4420 = vpop.f32.mrb[0].mxu0
    %v4421 = vpop.f32.mrb[0].mxu0
    %4422 = vdwg.mxu0
    %4423 = vmatprep.subr.bf16.mxu0 %v4191
    %4424 = vmatpush1.bf16.msra.mxu0 %v4190
    %4425 = vmatprep.subr.bf16.mxu0 %v4195
    %4426 = vmatpush1.bf16.msra.mxu0 %v4194
    %4427 = vmatprep.subr.bf16.mxu0 %v4199
    %4428 = vmatpush1.bf16.msra.mxu0 %v4198
    %4429 = vmatprep.subr.bf16.mxu0 %v4203
    %4430 = vmatpush1.bf16.msra.mxu0 %v4202
    %4431 = vmatprep.subr.bf16.mxu0 %v4207
    %4432 = vmatpush1.bf16.msra.mxu0 %v4206
    %4433 = vmatprep.subr.bf16.mxu0 %v4211
    %4434 = vmatpush1.bf16.msra.mxu0 %v4210
    %4435 = vmatprep.subr.bf16.mxu0 %v4215
    %4436 = vmatpush1.bf16.msra.mxu0 %v4214
    %4437 = vmatprep.subr.bf16.mxu0 %v4219
    %4438 = vmatpush1.bf16.msra.mxu0 %v4218
    %4439 = vmatprep.subr.bf16.mxu0 %v4223
    %4440 = vmatpush1.bf16.msra.mxu0 %v4222
    %4441 = vmatprep.subr.bf16.mxu0 %v4227
    %4442 = vmatpush1.bf16.msra.mxu0 %v4226
    %4443 = vmatprep.subr.bf16.mxu0 %v4231
    %4444 = vmatpush1.bf16.msra.mxu0 %v4230
    %4445 = vmatprep.subr.bf16.mxu0 %v4235
    %4446 = vmatpush1.bf16.msra.mxu0 %v4234
    %4447 = vmatprep.subr.bf16.mxu0 %v4239
    %4448 = vmatpush1.bf16.msra.mxu0 %v4238
    %4449 = vmatprep.subr.bf16.mxu0 %v4243
    %4450 = vmatpush1.bf16.msra.mxu0 %v4242
    %4451 = vmatprep.subr.bf16.mxu0 %v4247
    %4452 = vmatpush1.bf16.msra.mxu0 %v4246
    %4453 = vmatprep.subr.bf16.mxu0 %v4251
    %4454 = vmatpush1.bf16.msra.mxu0 %v4250
    %4455 = vmatprep.mubr.bf16.mxu0 %v3613
    %4456 = vmatmul.mubr.bf16.gmra.mrb[0].mxu0 %v3612
    %v4457 = vpop.f32.mrb[0].mxu0
    %v4458 = vadd.f32 %v4417, %v4457
    %v4459 = vpop.f32.mrb[0].mxu0
    %v4460 = vadd.f32 %v4419, %v4459
    %v4461 = vpop.f32.mrb[0].mxu0
    %v4462 = vpop.f32.mrb[0].mxu0
    %4463 = vdwg.mxu0
    %4464 = vmatprep.subr.bf16.mxu0 %v4129
    %4465 = vmatpush1.bf16.msra.mxu0 %v4128
    %4466 = vmatprep.subr.bf16.mxu0 %v4133
    %4467 = vmatpush1.bf16.msra.mxu0 %v4132
    %4468 = vmatprep.subr.bf16.mxu0 %v4137
    %4469 = vmatpush1.bf16.msra.mxu0 %v4136
    %4470 = vmatprep.subr.bf16.mxu0 %v4141
    %4471 = vmatpush1.bf16.msra.mxu0 %v4140
    %4472 = vmatprep.subr.bf16.mxu0 %v4145
    %4473 = vmatpush1.bf16.msra.mxu0 %v4144
    %4474 = vmatprep.subr.bf16.mxu0 %v4149
    %4475 = vmatpush1.bf16.msra.mxu0 %v4148
    %4476 = vmatprep.subr.bf16.mxu0 %v4153
    %4477 = vmatpush1.bf16.msra.mxu0 %v4152
    %4478 = vmatprep.subr.bf16.mxu0 %v4157
    %4479 = vmatpush1.bf16.msra.mxu0 %v4156
    %4480 = vmatprep.subr.bf16.mxu0 %v4161
    %4481 = vmatpush1.bf16.msra.mxu0 %v4160
    %4482 = vmatprep.subr.bf16.mxu0 %v4165
    %4483 = vmatpush1.bf16.msra.mxu0 %v4164
    %4484 = vmatprep.subr.bf16.mxu0 %v4169
    %4485 = vmatpush1.bf16.msra.mxu0 %v4168
    %4486 = vmatprep.subr.bf16.mxu0 %v4173
    %4487 = vmatpush1.bf16.msra.mxu0 %v4172
    %4488 = vmatprep.subr.bf16.mxu0 %v4177
    %4489 = vmatpush1.bf16.msra.mxu0 %v4176
    %4490 = vmatprep.subr.bf16.mxu0 %v4181
    %4491 = vmatpush1.bf16.msra.mxu0 %v4180
    %4492 = vmatprep.subr.bf16.mxu0 %v4185
    %4493 = vmatpush1.bf16.msra.mxu0 %v4184
    %4494 = vmatprep.subr.bf16.mxu0 %v4189
    %4495 = vmatpush1.bf16.msra.mxu0 %v4188
    %4496 = vmatprep.mubr.bf16.mxu0 %v3611
    %4497 = vmatmul.mubr.bf16.gmra.mrb[0].mxu0 %v3610
    %v4498 = vpop.f32.mrb[0].mxu0
    %v4499 = vadd.f32 0.0, %v4498
    %v4500 = vpop.f32.mrb[0].mxu0
    %v4501 = vadd.f32 0.0, %v4500
    %v4502 = vpop.f32.mrb[0].mxu0
    %v4503 = vpop.f32.mrb[0].mxu0
    %4504 = vdwg.mxu0
    %4505 = vmatprep.subr.bf16.mxu0 %v4193
    %4506 = vmatpush1.bf16.msra.mxu0 %v4192
    %4507 = vmatprep.subr.bf16.mxu0 %v4197
    %4508 = vmatpush1.bf16.msra.mxu0 %v4196
    %4509 = vmatprep.subr.bf16.mxu0 %v4201
    %4510 = vmatpush1.bf16.msra.mxu0 %v4200
    %4511 = vmatprep.subr.bf16.mxu0 %v4205
    %4512 = vmatpush1.bf16.msra.mxu0 %v4204
    %4513 = vmatprep.subr.bf16.mxu0 %v4209
    %4514 = vmatpush1.bf16.msra.mxu0 %v4208
    %4515 = vmatprep.subr.bf16.mxu0 %v4213
    %4516 = vmatpush1.bf16.msra.mxu0 %v4212
    %4517 = vmatprep.subr.bf16.mxu0 %v4217
    %4518 = vmatpush1.bf16.msra.mxu0 %v4216
    %4519 = vmatprep.subr.bf16.mxu0 %v4221
    %4520 = vmatpush1.bf16.msra.mxu0 %v4220
    %4521 = vmatprep.subr.bf16.mxu0 %v4225
    %4522 = vmatpush1.bf16.msra.mxu0 %v4224
    %4523 = vmatprep.subr.bf16.mxu0 %v4229
    %4524 = vmatpush1.bf16.msra.mxu0 %v4228
    %4525 = vmatprep.subr.bf16.mxu0 %v4233
    %4526 = vmatpush1.bf16.msra.mxu0 %v4232
    %4527 = vmatprep.subr.bf16.mxu0 %v4237
    %4528 = vmatpush1.bf16.msra.mxu0 %v4236
    %4529 = vmatprep.subr.bf16.mxu0 %v4241
    %4530 = vmatpush1.bf16.msra.mxu0 %v4240
    %4531 = vmatprep.subr.bf16.mxu0 %v4245
    %4532 = vmatpush1.bf16.msra.mxu0 %v4244
    %4533 = vmatprep.subr.bf16.mxu0 %v4249
    %4534 = vmatpush1.bf16.msra.mxu0 %v4248
    %4535 = vmatprep.subr.bf16.mxu0 %v4253
    %4536 = vmatpush1.bf16.msra.mxu0 %v4252
    %4537 = vmatprep.mubr.bf16.mxu0 %v3613
    %4538 = vmatmul.mubr.bf16.gmra.mrb[0].mxu0 %v3612
    %v4539 = vpop.f32.mrb[0].mxu0
    %v4540 = vadd.f32 %v4499, %v4539
    %v4541 = vpop.f32.mrb[0].mxu0
    %v4542 = vadd.f32 %v4501, %v4541
    %v4543 = vpop.f32.mrb[0].mxu0
    %v4544 = vpop.f32.mrb[0].mxu0
    %4545 = vdwg.mxu0
    %v4546 = vpack.c.bf16 %v4458, %v4458
    %v4547 = vpack.c.bf16 %v4460, %v4460
    %v4548 = vpack.c.bf16 %v4540, %v4540
    %v4549 = vpack.c.bf16 %v4542, %v4542
    %v4550 = vlaneseq
    %v4551 = vshrl.u32 %v4550, 7
    %v4552 = vsub.s32 1, %v4551
    %v4553 = vrot.slane %v2619, %v4552
    %v4554 = vlaneseq
    %v4555 = vshrl.u32 %v4554, 7
    %v4556 = vsub.s32 1, %v4555
    %v4557 = vrot.slane %v2626, %v4556
    %v4558 = vlaneseq
    %v4559 = vshrl.u32 %v4558, 7
    %v4560 = vsub.s32 1, %v4559
    %v4561 = vrot.slane %v2633, %v4560
    %v4562 = vlaneseq
    %v4563 = vshrl.u32 %v4562, 7
    %v4564 = vsub.s32 1, %v4563
    %v4565 = vrot.slane %v2640, %v4564
    %v4566 = vadd.bf16 %v4546, %v4553
    %v4567 = vadd.bf16 %v4547, %v4557
    %v4568 = vadd.bf16 %v4548, %v4561
    %v4569 = vadd.bf16 %v4549, %v4565
    %v4570 = vmax.bf16 %v4566, 0
    %v4571 = vmax.bf16 %v4567, 0
    %v4572 = vmax.bf16 %v4568, 0
    %v4573 = vmax.bf16 %v4569, 0
    %v4574 = vld [vmem:[#allocation11] sm:$0xf]
    %v4575 = vld [vmem:[#allocation11 + $0x4] sm:$0xf]
    %v4576 = vld [vmem:[#allocation11 + $0x8] sm:$0xf]
    %v4577 = vld [vmem:[#allocation11 + $0xc] sm:$0xf]
    %v4578 = vld [vmem:[#allocation11 + $0x10] sm:$0xf]
    %v4579 = vld [vmem:[#allocation11 + $0x14] sm:$0xf]
    %v4580 = vld [vmem:[#allocation11 + $0x18] sm:$0xf]
    %v4581 = vld [vmem:[#allocation11 + $0x1c] sm:$0xf]
    %v4582 = vld [vmem:[#allocation11 + $0x20] sm:$0xf]
    %v4583 = vld [vmem:[#allocation11 + $0x24] sm:$0xf]
    %v4584 = vld [vmem:[#allocation11 + $0x28] sm:$0xf]
    %v4585 = vld [vmem:[#allocation11 + $0x2c] sm:$0xf]
    %v4586 = vld [vmem:[#allocation11 + $0x30] sm:$0xf]
    %v4587 = vld [vmem:[#allocation11 + $0x34] sm:$0xf]
    %v4588 = vld [vmem:[#allocation11 + $0x38] sm:$0xf]
    %v4589 = vld [vmem:[#allocation11 + $0x3c] sm:$0xf]
    %v4590 = vld [vmem:[#allocation11 + $0x40] sm:$0xf]
    %v4591 = vld [vmem:[#allocation11 + $0x44] sm:$0xf]
    %v4592 = vld [vmem:[#allocation11 + $0x48] sm:$0xf]
    %v4593 = vld [vmem:[#allocation11 + $0x4c] sm:$0xf]
    %v4594 = vld [vmem:[#allocation11 + $0x50] sm:$0xf]
    %v4595 = vld [vmem:[#allocation11 + $0x54] sm:$0xf]
    %v4596 = vld [vmem:[#allocation11 + $0x58] sm:$0xf]
    %v4597 = vld [vmem:[#allocation11 + $0x5c] sm:$0xf]
    %v4598 = vld [vmem:[#allocation11 + $0x60] sm:$0xf]
    %v4599 = vld [vmem:[#allocation11 + $0x64] sm:$0xf]
    %v4600 = vld [vmem:[#allocation11 + $0x68] sm:$0xf]
    %v4601 = vld [vmem:[#allocation11 + $0x6c] sm:$0xf]
    %v4602 = vld [vmem:[#allocation11 + $0x70] sm:$0xf]
    %v4603 = vld [vmem:[#allocation11 + $0x74] sm:$0xf]
    %v4604 = vld [vmem:[#allocation11 + $0x78] sm:$0xf]
    %v4605 = vld [vmem:[#allocation11 + $0x7c] sm:$0xf]
    %v4606 = vld [vmem:[#allocation11 + $0x80] sm:$0xf]
    %v4607 = vld [vmem:[#allocation11 + $0x84] sm:$0xf]
    %v4608 = vld [vmem:[#allocation11 + $0x88] sm:$0xf]
    %v4609 = vld [vmem:[#allocation11 + $0x8c] sm:$0xf]
    %v4610 = vld [vmem:[#allocation11 + $0x90] sm:$0xf]
    %v4611 = vld [vmem:[#allocation11 + $0x94] sm:$0xf]
    %v4612 = vld [vmem:[#allocation11 + $0x98] sm:$0xf]
    %v4613 = vld [vmem:[#allocation11 + $0x9c] sm:$0xf]
    %v4614 = vld [vmem:[#allocation11 + $0xa0] sm:$0xf]
    %v4615 = vld [vmem:[#allocation11 + $0xa4] sm:$0xf]
    %v4616 = vld [vmem:[#allocation11 + $0xa8] sm:$0xf]
    %v4617 = vld [vmem:[#allocation11 + $0xac] sm:$0xf]
    %v4618 = vld [vmem:[#allocation11 + $0xb0] sm:$0xf]
    %v4619 = vld [vmem:[#allocation11 + $0xb4] sm:$0xf]
    %v4620 = vld [vmem:[#allocation11 + $0xb8] sm:$0xf]
    %v4621 = vld [vmem:[#allocation11 + $0xbc] sm:$0xf]
    %v4622 = vld [vmem:[#allocation11 + $0xc0] sm:$0xf]
    %v4623 = vld [vmem:[#allocation11 + $0xc4] sm:$0xf]
    %v4624 = vld [vmem:[#allocation11 + $0xc8] sm:$0xf]
    %v4625 = vld [vmem:[#allocation11 + $0xcc] sm:$0xf]
    %v4626 = vld [vmem:[#allocation11 + $0xd0] sm:$0xf]
    %v4627 = vld [vmem:[#allocation11 + $0xd4] sm:$0xf]
    %v4628 = vld [vmem:[#allocation11 + $0xd8] sm:$0xf]
    %v4629 = vld [vmem:[#allocation11 + $0xdc] sm:$0xf]
    %v4630 = vld [vmem:[#allocation11 + $0xe0] sm:$0xf]
    %v4631 = vld [vmem:[#allocation11 + $0xe4] sm:$0xf]
    %v4632 = vld [vmem:[#allocation11 + $0xe8] sm:$0xf]
    %v4633 = vld [vmem:[#allocation11 + $0xec] sm:$0xf]
    %v4634 = vld [vmem:[#allocation11 + $0xf0] sm:$0xf]
    %v4635 = vld [vmem:[#allocation11 + $0xf4] sm:$0xf]
    %v4636 = vld [vmem:[#allocation11 + $0xf8] sm:$0xf]
    %v4637 = vld [vmem:[#allocation11 + $0xfc] sm:$0xf]
    %v4702 = vunpack.c.l.b16 %v4574
    %v4703 = vunpack.c.l.b16 %v4575
    %v4704 = vunpack.c.l.b16 %v4576
    %v4705 = vunpack.c.l.b16 %v4577
    %v4706 = vunpack.c.l.b16 %v4578
    %v4707 = vunpack.c.l.b16 %v4579
    %v4708 = vunpack.c.l.b16 %v4580
    %v4709 = vunpack.c.l.b16 %v4581
    %v4710 = vunpack.c.l.b16 %v4582
    %v4711 = vunpack.c.l.b16 %v4583
    %v4712 = vunpack.c.l.b16 %v4584
    %v4713 = vunpack.c.l.b16 %v4585
    %v4714 = vunpack.c.l.b16 %v4586
    %v4715 = vunpack.c.l.b16 %v4587
    %v4716 = vunpack.c.l.b16 %v4588
    %v4717 = vunpack.c.l.b16 %v4589
    %v4718 = vunpack.c.l.b16 %v4590
    %v4719 = vunpack.c.l.b16 %v4591
    %v4720 = vunpack.c.l.b16 %v4592
    %v4721 = vunpack.c.l.b16 %v4593
    %v4722 = vunpack.c.l.b16 %v4594
    %v4723 = vunpack.c.l.b16 %v4595
    %v4724 = vunpack.c.l.b16 %v4596
    %v4725 = vunpack.c.l.b16 %v4597
    %v4726 = vunpack.c.l.b16 %v4598
    %v4727 = vunpack.c.l.b16 %v4599
    %v4728 = vunpack.c.l.b16 %v4600
    %v4729 = vunpack.c.l.b16 %v4601
    %v4730 = vunpack.c.l.b16 %v4602
    %v4731 = vunpack.c.l.b16 %v4603
    %v4732 = vunpack.c.l.b16 %v4604
    %v4733 = vunpack.c.l.b16 %v4605
    %v4734 = vunpack.c.l.b16 %v4606
    %v4735 = vunpack.c.l.b16 %v4607
    %v4736 = vunpack.c.l.b16 %v4608
    %v4737 = vunpack.c.l.b16 %v4609
    %v4738 = vunpack.c.l.b16 %v4610
    %v4739 = vunpack.c.l.b16 %v4611
    %v4740 = vunpack.c.l.b16 %v4612
    %v4741 = vunpack.c.l.b16 %v4613
    %v4742 = vunpack.c.l.b16 %v4614
    %v4743 = vunpack.c.l.b16 %v4615
    %v4744 = vunpack.c.l.b16 %v4616
    %v4745 = vunpack.c.l.b16 %v4617
    %v4746 = vunpack.c.l.b16 %v4618
    %v4747 = vunpack.c.l.b16 %v4619
    %v4748 = vunpack.c.l.b16 %v4620
    %v4749 = vunpack.c.l.b16 %v4621
    %v4750 = vunpack.c.l.b16 %v4622
    %v4751 = vunpack.c.l.b16 %v4623
    %v4752 = vunpack.c.l.b16 %v4624
    %v4753 = vunpack.c.l.b16 %v4625
    %v4754 = vunpack.c.l.b16 %v4626
    %v4755 = vunpack.c.l.b16 %v4627
    %v4756 = vunpack.c.l.b16 %v4628
    %v4757 = vunpack.c.l.b16 %v4629
    %v4758 = vunpack.c.l.b16 %v4630
    %v4759 = vunpack.c.l.b16 %v4631
    %v4760 = vunpack.c.l.b16 %v4632
    %v4761 = vunpack.c.l.b16 %v4633
    %v4762 = vunpack.c.l.b16 %v4634
    %v4763 = vunpack.c.l.b16 %v4635
    %v4764 = vunpack.c.l.b16 %v4636
    %v4765 = vunpack.c.l.b16 %v4637
    %v4766 = vpack.c.b16 %v4703, %v4702
    %v4767 = vpack.c.b16 %v4705, %v4704
    %v4768 = vpack.c.b16 %v4707, %v4706
    %v4769 = vpack.c.b16 %v4709, %v4708
    %v4770 = vpack.c.b16 %v4711, %v4710
    %v4771 = vpack.c.b16 %v4713, %v4712
    %v4772 = vpack.c.b16 %v4715, %v4714
    %v4773 = vpack.c.b16 %v4717, %v4716
    %v4774 = vpack.c.b16 %v4719, %v4718
    %v4775 = vpack.c.b16 %v4721, %v4720
    %v4776 = vpack.c.b16 %v4723, %v4722
    %v4777 = vpack.c.b16 %v4725, %v4724
    %v4778 = vpack.c.b16 %v4727, %v4726
    %v4779 = vpack.c.b16 %v4729, %v4728
    %v4780 = vpack.c.b16 %v4731, %v4730
    %v4781 = vpack.c.b16 %v4733, %v4732
    %v4782 = vpack.c.b16 %v4735, %v4734
    %v4783 = vpack.c.b16 %v4737, %v4736
    %v4784 = vpack.c.b16 %v4739, %v4738
    %v4785 = vpack.c.b16 %v4741, %v4740
    %v4786 = vpack.c.b16 %v4743, %v4742
    %v4787 = vpack.c.b16 %v4745, %v4744
    %v4788 = vpack.c.b16 %v4747, %v4746
    %v4789 = vpack.c.b16 %v4749, %v4748
    %v4790 = vpack.c.b16 %v4751, %v4750
    %v4791 = vpack.c.b16 %v4753, %v4752
    %v4792 = vpack.c.b16 %v4755, %v4754
    %v4793 = vpack.c.b16 %v4757, %v4756
    %v4794 = vpack.c.b16 %v4759, %v4758
    %v4795 = vpack.c.b16 %v4761, %v4760
    %v4796 = vpack.c.b16 %v4763, %v4762
    %v4797 = vpack.c.b16 %v4765, %v4764
    %4830 = vmatprep.subr.bf16.mxu0 0
    %4831 = vmatpush1.bf16.msra.mxu0 %v4766
    %4832 = vmatprep.subr.bf16.mxu0 0
    %4833 = vmatpush1.bf16.msra.mxu0 %v4767
    %4834 = vmatprep.subr.bf16.mxu0 0
    %4835 = vmatpush1.bf16.msra.mxu0 %v4768
    %4836 = vmatprep.subr.bf16.mxu0 0
    %4837 = vmatpush1.bf16.msra.mxu0 %v4769
    %4838 = vmatprep.subr.bf16.mxu0 0
    %4839 = vmatpush1.bf16.msra.mxu0 %v4770
    %4840 = vmatprep.subr.bf16.mxu0 0
    %4841 = vmatpush1.bf16.msra.mxu0 %v4771
    %4842 = vmatprep.subr.bf16.mxu0 0
    %4843 = vmatpush1.bf16.msra.mxu0 %v4772
    %4844 = vmatprep.subr.bf16.mxu0 0
    %4845 = vmatpush1.bf16.msra.mxu0 %v4773
    %4846 = vmatprep.subr.bf16.mxu0 0
    %4847 = vmatpush1.bf16.msra.mxu0 %v4774
    %4848 = vmatprep.subr.bf16.mxu0 0
    %4849 = vmatpush1.bf16.msra.mxu0 %v4775
    %4850 = vmatprep.subr.bf16.mxu0 0
    %4851 = vmatpush1.bf16.msra.mxu0 %v4776
    %4852 = vmatprep.subr.bf16.mxu0 0
    %4853 = vmatpush1.bf16.msra.mxu0 %v4777
    %4854 = vmatprep.subr.bf16.mxu0 0
    %4855 = vmatpush1.bf16.msra.mxu0 %v4778
    %4856 = vmatprep.subr.bf16.mxu0 0
    %4857 = vmatpush1.bf16.msra.mxu0 %v4779
    %4858 = vmatprep.subr.bf16.mxu0 0
    %4859 = vmatpush1.bf16.msra.mxu0 %v4780
    %4860 = vmatprep.subr.bf16.mxu0 0
    %4861 = vmatpush1.bf16.msra.mxu0 %v4781
    %4862 = vmatprep.mubr.bf16.mxu0 %v4571
    %4863 = vmatmul.mubr.bf16.gmra.mrb[0].mxu0 %v4570
    %v4864 = vpop.f32.mrb[0].mxu0
    %v4865 = vadd.f32 0.0, %v4864
    %v4866 = vpop.f32.mrb[0].mxu0
    %v4867 = vpop.f32.mrb[0].mxu0
    %v4868 = vpop.f32.mrb[0].mxu0
    %4869 = vdwg.mxu0
    %4870 = vmatprep.subr.bf16.mxu0 0
    %4871 = vmatpush1.bf16.msra.mxu0 %v4782
    %4872 = vmatprep.subr.bf16.mxu0 0
    %4873 = vmatpush1.bf16.msra.mxu0 %v4783
    %4874 = vmatprep.subr.bf16.mxu0 0
    %4875 = vmatpush1.bf16.msra.mxu0 %v4784
    %4876 = vmatprep.subr.bf16.mxu0 0
    %4877 = vmatpush1.bf16.msra.mxu0 %v4785
    %4878 = vmatprep.subr.bf16.mxu0 0
    %4879 = vmatpush1.bf16.msra.mxu0 %v4786
    %4880 = vmatprep.subr.bf16.mxu0 0
    %4881 = vmatpush1.bf16.msra.mxu0 %v4787
    %4882 = vmatprep.subr.bf16.mxu0 0
    %4883 = vmatpush1.bf16.msra.mxu0 %v4788
    %4884 = vmatprep.subr.bf16.mxu0 0
    %4885 = vmatpush1.bf16.msra.mxu0 %v4789
    %4886 = vmatprep.subr.bf16.mxu0 0
    %4887 = vmatpush1.bf16.msra.mxu0 %v4790
    %4888 = vmatprep.subr.bf16.mxu0 0
    %4889 = vmatpush1.bf16.msra.mxu0 %v4791
    %4890 = vmatprep.subr.bf16.mxu0 0
    %4891 = vmatpush1.bf16.msra.mxu0 %v4792
    %4892 = vmatprep.subr.bf16.mxu0 0
    %4893 = vmatpush1.bf16.msra.mxu0 %v4793
    %4894 = vmatprep.subr.bf16.mxu0 0
    %4895 = vmatpush1.bf16.msra.mxu0 %v4794
    %4896 = vmatprep.subr.bf16.mxu0 0
    %4897 = vmatpush1.bf16.msra.mxu0 %v4795
    %4898 = vmatprep.subr.bf16.mxu0 0
    %4899 = vmatpush1.bf16.msra.mxu0 %v4796
    %4900 = vmatprep.subr.bf16.mxu0 0
    %4901 = vmatpush1.bf16.msra.mxu0 %v4797
    %4902 = vmatprep.mubr.bf16.mxu0 %v4573
    %4903 = vmatmul.mubr.bf16.gmra.mrb[0].mxu0 %v4572
    %v4904 = vpop.f32.mrb[0].mxu0
    %v4905 = vadd.f32 %v4865, %v4904
    %v4906 = vpop.f32.mrb[0].mxu0
    %v4907 = vpop.f32.mrb[0].mxu0
    %v4908 = vpop.f32.mrb[0].mxu0
    %4909 = vdwg.mxu0
    %v4910 = vpack.c.bf16 %v4905, %v4905
    %v4912 = vpack.i.b16 %v108, %v108
    %v4914 = vlaneseq
    %v4915 = vshrl.u32 %v4914, 7
    %v4916 = vsub.s32 2, %v4915
    %v4917 = vrot.slane %v4912, %v4916
    %v4918 = vadd.bf16 %v4910, %v4917
    %4919 = vst [vmem:[#allocation13] sm:$0xf] %v4918
    // Predicated region
    $region54: #{tpu_custom_call.1} parent=1 // pred_check
      _
    $region55: #{tpu_custom_call.1} parent=1 // pred_check_branch
      %4921 = sbr.rel (0) target = $region57
    $region56: #{tpu_custom_call.1} parent=1 // pred_region
      %s4923 = ssub.s32 64, 64
      %4924 = vsyncadd [#allocation4], %s4923
      %s4926 = sshll.u32 [#allocation13], 4
      %s4927 = int_to_ptr.vmem [resolvable:$true] %s4926
      %4929 = dma.vmem_to_hbm [thread:$0]  %s4927, 64, %s7, [#allocation4]
    $region57: #{tpu_custom_call.1} parent=1 // pred_fallthru
      _
    // Predicated region
    $region58: #{tpu_custom_call.1} parent=1 // pred_check
      _
    $region59: #{tpu_custom_call.1} parent=1 // pred_check_branch
      %4931 = sbr.rel (0) target = $region61
    $region60: #{tpu_custom_call.1} parent=1 // pred_region
      %4932 = dma.done [#allocation4], 64
    $region61: #{tpu_custom_call.1} parent=1 // pred_fallthru
      _
    %4933 = vsyncpa [#allocation3], 1
    %4934 = vsyncpa [#allocation6], 1
    %4935 = vsyncpa [#allocation9], 1
    %4936 = vsyncpa [#allocation12], 1
    %4937 = vsyncpa [#allocation4], 1

</llo_original>
